<compile_context>
chip_gen: v7x
topology: tpu7x:2x2x1
jax: 0.10.0
libtpu: 0.0.40
codegen_flags: <defaults>
</compile_context>

<pallas_src>
import functools

import jax
import jax.numpy as jnp
from jax.experimental import pallas as pl
from jax.experimental.pallas import tpu as pltpu


# ----------------------------------------------------------------------------
# In-kernel helpers (element-wise math stays f32)
# ----------------------------------------------------------------------------
def _ln(x, g, b, eps=1e-12):
    mu = jnp.mean(x, axis=-1, keepdims=True)
    xc = x - mu
    var = jnp.mean(xc * xc, axis=-1, keepdims=True)
    return xc * jax.lax.rsqrt(var + eps) * g + b


def _gelu(y):
    # tanh-approx GELU (EUP tanh).
    return 0.5 * y * (1.0 + jnp.tanh(0.7978845608028654 * (y + 0.044715 * y * y * y)))


# ----------------------------------------------------------------------------
# Pallas kernels
# ----------------------------------------------------------------------------
def _embed_ln_kernel(ids_ref, pos_ref, g_ref, beta_ref, tok_hbm_ref, o_ref,
                     gather_buf, sems, *, seq_len):
    # Fused token-embedding gather (manual HBM->VMEM row DMAs driven by SMEM-prefetched
    # ids) + position add + LayerNorm.  One batch element per grid step.
    b = pl.program_id(0)
    copies = []
    for s in range(seq_len):                       # static unroll (S is small)
        cp = pltpu.make_async_copy(tok_hbm_ref.at[ids_ref[b, s]],
                                   gather_buf.at[s], sems.at[s])
        cp.start()
        copies.append(cp)
    for cp in copies:
        cp.wait()
    x = gather_buf[...] + pos_ref[...]             # fold position-add into the LN kernel
    o_ref[0] = _ln(x, g_ref[...], beta_ref[...]).astype(o_ref.dtype)


def _encoder_layer_kernel(x_ref, mask_ref,
                          wqkv_ref, bqkv_ref, wo_ref, bo_ref,
                          ln1g_ref, ln1b_ref,
                          w1_ref, b1_ref, w2_ref, b2_ref,
                          ln2g_ref, ln2b_ref,
                          o_ref, cls_ref, *, num_heads, head_dim):
    # One batch element per grid step; whole layer fused in VMEM.
    x = x_ref[0]                                   # (S, H) bf16 hidden state
    S, H = x.shape
    x32 = x.astype(jnp.float32)

    # Fused QKV projection (bf16 MXU operands, f32 accumulation).  1/sqrt(Dh) is folded
    # into the Q columns of wqkv at init, so no per-head score scaling is needed here.
    qkv = jnp.dot(x, wqkv_ref[...], preferred_element_type=jnp.float32) + bqkv_ref[...]

    # Head-major attention: one batched MXU contraction over all heads.
    def _to_heads(block):                          # (S, H) -> (NH, S, Dh)
        return jnp.transpose(block.reshape(S, num_heads, head_dim), (1, 0, 2))

    q = _to_heads(qkv[:, :H]).astype(jnp.bfloat16)
    k = _to_heads(qkv[:, H:2 * H]).astype(jnp.bfloat16)
    v = _to_heads(qkv[:, 2 * H:3 * H]).astype(jnp.bfloat16)

    # Additive attention-mask bias, built in-kernel from the compact (1, S) mask row.
    bias = ((1.0 - mask_ref[0]) * -1e9).reshape(1, 1, S)

    s = jnp.einsum("hqd,hkd->hqk", q, k,
                   preferred_element_type=jnp.float32) + bias        # (NH, S, S) f32
    s = s - jnp.max(s, axis=-1, keepdims=True)
    p = jnp.exp(s)
    p = p * pl.reciprocal(jnp.sum(p, axis=-1, keepdims=True), approx=True)
    ctx = jnp.einsum("hqk,hkd->hqd", p.astype(jnp.bfloat16), v,
                     preferred_element_type=jnp.float32)              # (NH, S, Dh)
    ctx = jnp.transpose(ctx, (1, 0, 2)).reshape(S, H)                 # back to (S, H)

    attn = jnp.dot(ctx.astype(jnp.bfloat16), wo_ref[...],
                   preferred_element_type=jnp.float32) + bo_ref[...]
    h1 = _ln(x32 + attn, ln1g_ref[...], ln1b_ref[...])                # residual folded in

    ff = jnp.dot(h1.astype(jnp.bfloat16), w1_ref[...],
                 preferred_element_type=jnp.float32) + b1_ref[...]
    ff = _gelu(ff)
    ff = jnp.dot(ff.astype(jnp.bfloat16), w2_ref[...],
                 preferred_element_type=jnp.float32) + b2_ref[...]
    out = _ln(h1 + ff, ln2g_ref[...], ln2b_ref[...])                  # residual folded in

    o_ref[0] = out.astype(o_ref.dtype)
    cls_ref[0] = out[0:1, :].astype(cls_ref.dtype)   # CLS row -> pooled path (no XLA slice)


def _heads_xent_kernel(*refs, offsets, n_classes, compute_loss):
    # All task-head classifiers as one lane-dense (H, 128)-padded matmul, plus both
    # cross-entropies built in-kernel from integer labels + iota compares.
    if compute_loss:
        x_ref, w_ref, b_ref, lab_ref, logits_ref, loss_ref = refs
    else:
        x_ref, w_ref, b_ref, logits_ref = refs

    z = jnp.dot(x_ref[...].astype(jnp.bfloat16), w_ref[...],
                preferred_element_type=jnp.float32) + b_ref[...]      # (B, C_pad) f32
    logits_ref[...] = z

    if compute_loss:
        B, C = z.shape
        col = jax.lax.broadcasted_iota(jnp.int32, (B, C), 1)
        acc = jnp.zeros((B, 1), jnp.float32)
        for t, (off, n) in enumerate(zip(offsets, n_classes)):        # static unroll
            valid = (col >= off) & (col < off + n)
            zt = jnp.where(valid, z, -1e30)                           # mask other tasks' cols
            m = jnp.max(zt, axis=-1, keepdims=True)
            lse = jnp.log(jnp.sum(jnp.exp(zt - m), axis=-1, keepdims=True)) + m
            lab_col = off + lab_ref[:, t:t + 1]                       # (B, 1) int32
            picked = jnp.sum(jnp.where(col == lab_col, z, 0.0), axis=-1, keepdims=True)
            acc = acc + (lse - picked)
        loss_ref[...] = jnp.sum(acc, axis=0, keepdims=True) * (1.0 / B)


# ----------------------------------------------------------------------------
# Pallas wrappers
# ----------------------------------------------------------------------------
def embed_layernorm(input_ids, pos, g, b, tok_emb):
    B, S = input_ids.shape
    H = tok_emb.shape[1]
    kern = functools.partial(_embed_ln_kernel, seq_len=S)
    return pl.pallas_call(
        kern,
        out_shape=jax.ShapeDtypeStruct((B, S, H), jnp.bfloat16),
        grid_spec=pltpu.PrefetchScalarGridSpec(
            num_scalar_prefetch=1,                   # input_ids -> SMEM
            grid=(B,),
            in_specs=[
                pl.BlockSpec((S, H), lambda i, ids: (0, 0)),       # position embeddings
                pl.BlockSpec((1, H), lambda i, ids: (0, 0)),       # LN gamma
                pl.BlockSpec((1, H), lambda i, ids: (0, 0)),       # LN beta
                pl.BlockSpec(memory_space=pl.ANY),                 # token table stays in HBM
            ],
            out_specs=pl.BlockSpec((1, S, H), lambda i, ids: (i, 0, 0)),
            scratch_shapes=[pltpu.VMEM((S, H), jnp.float32),
                            pltpu.SemaphoreType.DMA((S,))],
        ),
        compiler_params=pltpu.CompilerParams(dimension_semantics=("parallel",)),
    )(input_ids.astype(jnp.int32), pos, g, b, tok_emb)


def _layer_vmem_limit(cfg, seq_len):
    # Explicit scoped-VMEM budget for the fused layer: bf16 single-buffered weights +
    # bf16 double-buffered activations + f32 intermediates, 2x headroom; clamped to
    # [32 MiB, 64 MiB] so the request is valid on v5e/v6e (128 MiB) and v7x (64 MiB).
    H, F, NH, S = cfg.hidden_size, cfg.ffn_size, cfg.num_heads, seq_len
    weights = 2 * (3 * H * H + H * H + 2 * H * F)              # bf16, single-buffered
    small = 4 * (3 * H + F + 8 * H)                            # f32 biases + LN params
    acts = 2 * 2 * 2 * (2 * S * H)                             # x/out/cls bf16, 2x buffered
    interm = 4 * (3 * S * H + NH * S * S + S * F + 4 * S * H)  # f32 intermediates
    est = 2 * (weights + small + acts + interm)
    return int(min(64 * 1024 * 1024, max(32 * 1024 * 1024, est)))


def encoder_layer(x, mask_b, p, cfg):
    B, S, H = x.shape
    NH = cfg.num_heads
    Dh = H // NH
    F = p["w1"].shape[1]
    kern = functools.partial(_encoder_layer_kernel, num_heads=NH, head_dim=Dh)

    def wspec(shape):
        # Constant-index weight/bias blocks: single-buffered — their block index never
        # changes, so double-buffering only wastes VMEM (critical on v7x's 64 MiB).
        return pl.BlockSpec(shape, lambda b: (0,) * len(shape),
                            pipeline_mode=pl.Buffered(1))

    return pl.pallas_call(
        kern,
        out_shape=(jax.ShapeDtypeStruct((B, S, H), jnp.bfloat16),
                   jax.ShapeDtypeStruct((B, 1, H), jnp.bfloat16)),
        grid=(B,),
        in_specs=[
            pl.BlockSpec((1, S, H), lambda b: (b, 0, 0)),    # hidden state (bf16)
            pl.BlockSpec((1, 1, S), lambda b: (b, 0, 0)),    # attention-mask row
            wspec((H, 3 * H)), wspec((1, 3 * H)),            # fused QKV (bf16 W / f32 b)
            wspec((H, H)), wspec((1, H)),                    # out proj
            wspec((1, H)), wspec((1, H)),                    # LN1
            wspec((H, F)), wspec((1, F)),                    # FFN up
            wspec((F, H)), wspec((1, H)),                    # FFN down
            wspec((1, H)), wspec((1, H)),                    # LN2
        ],
        out_specs=(pl.BlockSpec((1, S, H), lambda b: (b, 0, 0)),
                   pl.BlockSpec((1, 1, H), lambda b: (b, 0, 0))),
        compiler_params=pltpu.CompilerParams(
            dimension_semantics=("parallel",),               # B=2 -> both v7x TCs busy
            vmem_limit_bytes=_layer_vmem_limit(cfg, S)),
    )(x, mask_b,
      p["wqkv"], p["bqkv"], p["wo"], p["bo"],
      p["ln1_g"], p["ln1_b"],
      p["w1"], p["b1"], p["w2"], p["b2"],
      p["ln2_g"], p["ln2_b"])


def heads_and_loss(pooled, w, b, labels_bt, offsets, n_classes):
    """Fused task-head matmul (+ both cross-entropies when labels are given)."""
    B, H = pooled.shape
    C = w.shape[1]
    compute_loss = labels_bt is not None
    kern = functools.partial(_heads_xent_kernel, offsets=tuple(offsets),
                             n_classes=tuple(n_classes), compute_loss=compute_loss)

    in_specs = [pl.BlockSpec((B, H), lambda i: (0, 0)),
                pl.BlockSpec((H, C), lambda i: (0, 0)),
                pl.BlockSpec((1, C), lambda i: (0, 0))]
    args = [pooled, w, b]
    out_shape = [jax.ShapeDtypeStruct((B, C), jnp.float32)]
    out_specs = [pl.BlockSpec((B, C), lambda i: (0, 0))]
    if compute_loss:
        in_specs.append(pl.BlockSpec((B, len(n_classes)), lambda i: (0, 0)))
        args.append(labels_bt)
        out_shape.append(jax.ShapeDtypeStruct((1, 1), jnp.float32))
        out_specs.append(pl.BlockSpec((1, 1), lambda i: (0, 0)))

    res = pl.pallas_call(
        kern, out_shape=tuple(out_shape), grid=(1,),
        in_specs=in_specs, out_specs=tuple(out_specs),
    )(*args)

    if compute_loss:
        logits_pad, loss = res
        return logits_pad, loss[0, 0]
    (logits_pad,) = res
    return logits_pad, None


# ----------------------------------------------------------------------------
# Model (synthetic "FlaubertModel" encoder + multi-task heads)
# ----------------------------------------------------------------------------
class Config:
    vocab_size = 50
    max_position = 64
    hidden_size = 32
    num_heads = 4
    ffn_size = 64
    num_layers = 2


HEAD_PAD = 128  # lane-dense width for the fused task-head matmul


def init_params(cfg, list_n_class, key):
    def nrm(k, shape, scale=0.02):
        return (scale * jax.random.normal(k, shape)).astype(jnp.float32)

    H, F = cfg.hidden_size, cfg.ffn_size
    Dh = H // cfg.num_heads
    q_scale = Dh ** -0.5
    n_keys = 2 + 4 * cfg.num_layers + len(list_n_class)
    keys = iter(jax.random.split(key, n_keys))

    params = {
        "tok_emb": nrm(next(keys), (cfg.vocab_size, H)),     # f32, row-gathered via DMA
        "pos_emb": nrm(next(keys), (cfg.max_position, H)),
        "emb_ln_g": jnp.ones((1, H), jnp.float32),
        "emb_ln_b": jnp.zeros((1, H), jnp.float32),
        "layers": [],
    }
    for _ in range(cfg.num_layers):
        wqkv = nrm(next(keys), (H, 3 * H))
        # Fold 1/sqrt(head_dim) into the Q projection (bias is zero so nothing to scale).
        wqkv = jnp.concatenate([wqkv[:, :H] * q_scale, wqkv[:, H:]], axis=1)
        layer = {
            "wqkv": wqkv.astype(jnp.bfloat16),
            "bqkv": jnp.zeros((1, 3 * H), jnp.float32),
            "wo": nrm(next(keys), (H, H)).astype(jnp.bfloat16),
            "bo": jnp.zeros((1, H), jnp.float32),
            "ln1_g": jnp.ones((1, H), jnp.float32),
            "ln1_b": jnp.zeros((1, H), jnp.float32),
            "w1": nrm(next(keys), (H, F)).astype(jnp.bfloat16),
            "b1": jnp.zeros((1, F), jnp.float32),
            "w2": nrm(next(keys), (F, H)).astype(jnp.bfloat16),
            "b2": jnp.zeros((1, H), jnp.float32),
            "ln2_g": jnp.ones((1, H), jnp.float32),
            "ln2_b": jnp.zeros((1, H), jnp.float32),
        }
        params["layers"].append(layer)

    # all task heads concatenated into one lane-dense (128-wide) padded matmul
    w_cat = jnp.zeros((H, HEAD_PAD), jnp.float32)
    off = 0
    for n_class in list_n_class:
        w_cat = w_cat.at[:, off:off + n_class].set(nrm(next(keys), (H, n_class)))
        off += n_class
    params["head_w"] = w_cat.astype(jnp.bfloat16)
    params["head_b"] = jnp.zeros((1, HEAD_PAD), jnp.float32)
    return params


def _head_offsets(list_n_class):
    offsets, off = [], 0
    for n in list_n_class:
        offsets.append(off)
        off += n
    return offsets


def bert_multitask_forward(params, cfg, batch, num_tasks, list_n_class):
    """batch = [input_ids, attention_mask, meta_features, (labels_0, ..., labels_{T-1})?]"""
    input_ids, attention_mask = batch[0], batch[1]
    # batch[2] (meta features) is unused by the reference forward.
    B, S = input_ids.shape

    # --- embeddings: gather + pos-add + LN fused in one kernel (ids scalar-prefetched) ---
    x = embed_layernorm(input_ids, params["pos_emb"][:S],
                        params["emb_ln_g"], params["emb_ln_b"], params["tok_emb"])

    # attention mask kept compact: (B, 1, S); additive bias built in-kernel
    mask_b = attention_mask.astype(jnp.float32).reshape(B, 1, S)

    cls = None
    for layer in params["layers"]:
        x, cls = encoder_layer(x, mask_b, layer, cfg)
    pooled = cls.reshape(B, -1)                    # CLS row emitted by the last layer
    # dropout -> identity (eval); see TODO(synk) at top of file.

    offsets = _head_offsets(list_n_class)

    have_labels = (len(batch) >= 4 and isinstance(batch[3], (tuple, list))
                   and len(batch[3]) == num_tasks)
    labels_bt = None
    if have_labels:
        labels_bt = jnp.stack([lab.reshape(-1).astype(jnp.int32) for lab in batch[3]],
                              axis=1)              # (B, T) int32

    logits_pad, loss = heads_and_loss(pooled, params["head_w"], params["head_b"],
                                      labels_bt, offsets, list_n_class)

    logits = tuple(logits_pad[:, offsets[i]:offsets[i] + list_n_class[i]]
                   for i in range(num_tasks))
    if have_labels:
        return (loss,) + logits
    return logits


# ----------------------------------------------------------------------------
if __name__ == "__main__":
    cfg = Config()
    num_tasks = 2
    list_n_class = [3, 5]

    key = jax.random.PRNGKey(0)
    k_ids, k_meta, k_lab0, k_lab1, k_params = jax.random.split(key, 5)

    B, S = 2, 8
    input_ids = jax.random.randint(k_ids, (B, S), 0, cfg.vocab_size, dtype=jnp.int32)
    attention_mask = jnp.concatenate(
        [jnp.ones((B, S - 2), jnp.int32), jnp.array([[1, 1], [0, 0]], jnp.int32)], axis=1
    )                                              # second example has 2 padded tokens
    meta_features = jax.random.normal(k_meta, (B, 4), dtype=jnp.float32)
    labels = (
        jax.random.randint(k_lab0, (B,), 0, list_n_class[0], dtype=jnp.int32),
        jax.random.randint(k_lab1, (B,), 0, list_n_class[1], dtype=jnp.int32),
    )

    params = init_params(cfg, list_n_class, k_params)

    fwd = jax.jit(
        lambda prm, ids, msk, meta, labs: bert_multitask_forward(
            prm, cfg, [ids, msk, meta, labs], num_tasks, list_n_class)
    )

    outputs = jax.block_until_ready(
        fwd(params, input_ids, attention_mask, meta_features, labels))

    loss, logit_list = outputs[0], outputs[1:]
    assert len(logit_list) == num_tasks
    for i, lg in enumerate(logit_list):
        assert lg.shape == (B, list_n_class[i]), lg.shape
    assert bool(jnp.isfinite(loss))
    print("KERNEL_OK")
</pallas_src>

<mosaic_0001>
module attributes {stable_mosaic.version = 11 : i64} {
  func.func @_embed_ln_kernel(%arg0: i32, %arg1: memref<2x8xi32, #tpu.memory_space<smem>>, %arg2: memref<8x32xf32, #tpu.memory_space<vmem>>, %arg3: memref<1x32xf32, #tpu.memory_space<vmem>>, %arg4: memref<1x32xf32, #tpu.memory_space<vmem>>, %arg5: memref<50x32xf32, #tpu.memory_space<any>>, %arg6: memref<1x8x32xbf16, #tpu.memory_space<vmem>>, %arg7: memref<8x32xf32, #tpu.memory_space<vmem>>, %arg8: memref<8x!tpu.dma_semaphore, #tpu.memory_space<semaphore_mem>>) attributes {dimension_semantics = [#tpu.dimension_semantics<parallel>], iteration_bounds = array<i64: 2>, scalar_prefetch = 1 : i64, scratch_operands = 2 : i64, tpu.core_type = #tpu.core_type<tc>, window_params = [{pipeline_mode = #tpu.pipeline_mode<synchronous>, transform_indices = @transform_0, window_bounds = array<i64: 8, 32>}, {pipeline_mode = #tpu.pipeline_mode<synchronous>, transform_indices = @transform_1, window_bounds = array<i64: 1, 32>}, {pipeline_mode = #tpu.pipeline_mode<synchronous>, transform_indices = @transform_2, window_bounds = array<i64: 1, 32>}, {}, {transform_indices = @transform_4, window_bounds = array<i64: 1, 8, 32>}]} {
    %0 = arith.index_cast %arg0 : i32 to index
    %c0 = arith.constant 0 : index
    %1 = memref.load %arg1[%0, %c0] : memref<2x8xi32, #tpu.memory_space<smem>>
    %c0_i32 = arith.constant 0 : i32
    %c0_i32_0 = arith.constant 0 : i32
    %c0_i32_1 = arith.constant 0 : i32
    %2 = tpu.memref_slice %arg5[%1, %c0_i32_1] : memref<50x32xf32, #tpu.memory_space<any>> -> memref<1x32xf32, #tpu.memory_space<any>>
    %3 = tpu.memref_squeeze %2 : memref<1x32xf32, #tpu.memory_space<any>> -> memref<32xf32, #tpu.memory_space<any>>
    %c0_i32_2 = arith.constant 0 : i32
    %4 = tpu.memref_slice %arg7[%c0_i32, %c0_i32_2] : memref<8x32xf32, #tpu.memory_space<vmem>> -> memref<1x32xf32, #tpu.memory_space<vmem>>
    %5 = tpu.memref_squeeze %4 : memref<1x32xf32, #tpu.memory_space<vmem>> -> memref<32xf32, #tpu.memory_space<vmem>>
    %6 = tpu.memref_slice %arg8[%c0_i32_0] : memref<8x!tpu.dma_semaphore, #tpu.memory_space<semaphore_mem>> -> memref<1x!tpu.dma_semaphore, #tpu.memory_space<semaphore_mem>>
    %7 = tpu.memref_squeeze %6 : memref<1x!tpu.dma_semaphore, #tpu.memory_space<semaphore_mem>> -> memref<!tpu.dma_semaphore, #tpu.memory_space<semaphore_mem>>
    tpu.enqueue_dma source(%3 : memref<32xf32, #tpu.memory_space<any>>) target(%5 : memref<32xf32, #tpu.memory_space<vmem>>) target_semaphore(%7 : memref<!tpu.dma_semaphore, #tpu.memory_space<semaphore_mem>>)
    %8 = arith.index_cast %arg0 : i32 to index
    %c1 = arith.constant 1 : index
    %9 = memref.load %arg1[%8, %c1] : memref<2x8xi32, #tpu.memory_space<smem>>
    %c1_i32 = arith.constant 1 : i32
    %c1_i32_3 = arith.constant 1 : i32
    %c0_i32_4 = arith.constant 0 : i32
    %10 = tpu.memref_slice %arg5[%9, %c0_i32_4] : memref<50x32xf32, #tpu.memory_space<any>> -> memref<1x32xf32, #tpu.memory_space<any>>
    %11 = tpu.memref_squeeze %10 : memref<1x32xf32, #tpu.memory_space<any>> -> memref<32xf32, #tpu.memory_space<any>>
    %c0_i32_5 = arith.constant 0 : i32
    %12 = tpu.memref_slice %arg7[%c1_i32, %c0_i32_5] : memref<8x32xf32, #tpu.memory_space<vmem>> -> memref<1x32xf32, #tpu.memory_space<vmem>>
    %13 = tpu.memref_squeeze %12 : memref<1x32xf32, #tpu.memory_space<vmem>> -> memref<32xf32, #tpu.memory_space<vmem>>
    %14 = tpu.memref_slice %arg8[%c1_i32_3] : memref<8x!tpu.dma_semaphore, #tpu.memory_space<semaphore_mem>> -> memref<1x!tpu.dma_semaphore, #tpu.memory_space<semaphore_mem>>
    %15 = tpu.memref_squeeze %14 : memref<1x!tpu.dma_semaphore, #tpu.memory_space<semaphore_mem>> -> memref<!tpu.dma_semaphore, #tpu.memory_space<semaphore_mem>>
    tpu.enqueue_dma source(%11 : memref<32xf32, #tpu.memory_space<any>>) target(%13 : memref<32xf32, #tpu.memory_space<vmem>>) target_semaphore(%15 : memref<!tpu.dma_semaphore, #tpu.memory_space<semaphore_mem>>)
    %16 = arith.index_cast %arg0 : i32 to index
    %c2 = arith.constant 2 : index
    %17 = memref.load %arg1[%16, %c2] : memref<2x8xi32, #tpu.memory_space<smem>>
    %c2_i32 = arith.constant 2 : i32
    %c2_i32_6 = arith.constant 2 : i32
    %c0_i32_7 = arith.constant 0 : i32
    %18 = tpu.memref_slice %arg5[%17, %c0_i32_7] : memref<50x32xf32, #tpu.memory_space<any>> -> memref<1x32xf32, #tpu.memory_space<any>>
    %19 = tpu.memref_squeeze %18 : memref<1x32xf32, #tpu.memory_space<any>> -> memref<32xf32, #tpu.memory_space<any>>
    %c0_i32_8 = arith.constant 0 : i32
    %20 = tpu.memref_slice %arg7[%c2_i32, %c0_i32_8] : memref<8x32xf32, #tpu.memory_space<vmem>> -> memref<1x32xf32, #tpu.memory_space<vmem>>
    %21 = tpu.memref_squeeze %20 : memref<1x32xf32, #tpu.memory_space<vmem>> -> memref<32xf32, #tpu.memory_space<vmem>>
    %22 = tpu.memref_slice %arg8[%c2_i32_6] : memref<8x!tpu.dma_semaphore, #tpu.memory_space<semaphore_mem>> -> memref<1x!tpu.dma_semaphore, #tpu.memory_space<semaphore_mem>>
    %23 = tpu.memref_squeeze %22 : memref<1x!tpu.dma_semaphore, #tpu.memory_space<semaphore_mem>> -> memref<!tpu.dma_semaphore, #tpu.memory_space<semaphore_mem>>
    tpu.enqueue_dma source(%19 : memref<32xf32, #tpu.memory_space<any>>) target(%21 : memref<32xf32, #tpu.memory_space<vmem>>) target_semaphore(%23 : memref<!tpu.dma_semaphore, #tpu.memory_space<semaphore_mem>>)
    %24 = arith.index_cast %arg0 : i32 to index
    %c3 = arith.constant 3 : index
    %25 = memref.load %arg1[%24, %c3] : memref<2x8xi32, #tpu.memory_space<smem>>
    %c3_i32 = arith.constant 3 : i32
    %c3_i32_9 = arith.constant 3 : i32
    %c0_i32_10 = arith.constant 0 : i32
    %26 = tpu.memref_slice %arg5[%25, %c0_i32_10] : memref<50x32xf32, #tpu.memory_space<any>> -> memref<1x32xf32, #tpu.memory_space<any>>
    %27 = tpu.memref_squeeze %26 : memref<1x32xf32, #tpu.memory_space<any>> -> memref<32xf32, #tpu.memory_space<any>>
    %c0_i32_11 = arith.constant 0 : i32
    %28 = tpu.memref_slice %arg7[%c3_i32, %c0_i32_11] : memref<8x32xf32, #tpu.memory_space<vmem>> -> memref<1x32xf32, #tpu.memory_space<vmem>>
    %29 = tpu.memref_squeeze %28 : memref<1x32xf32, #tpu.memory_space<vmem>> -> memref<32xf32, #tpu.memory_space<vmem>>
    %30 = tpu.memref_slice %arg8[%c3_i32_9] : memref<8x!tpu.dma_semaphore, #tpu.memory_space<semaphore_mem>> -> memref<1x!tpu.dma_semaphore, #tpu.memory_space<semaphore_mem>>
    %31 = tpu.memref_squeeze %30 : memref<1x!tpu.dma_semaphore, #tpu.memory_space<semaphore_mem>> -> memref<!tpu.dma_semaphore, #tpu.memory_space<semaphore_mem>>
    tpu.enqueue_dma source(%27 : memref<32xf32, #tpu.memory_space<any>>) target(%29 : memref<32xf32, #tpu.memory_space<vmem>>) target_semaphore(%31 : memref<!tpu.dma_semaphore, #tpu.memory_space<semaphore_mem>>)
    %32 = arith.index_cast %arg0 : i32 to index
    %c4 = arith.constant 4 : index
    %33 = memref.load %arg1[%32, %c4] : memref<2x8xi32, #tpu.memory_space<smem>>
    %c4_i32 = arith.constant 4 : i32
    %c4_i32_12 = arith.constant 4 : i32
    %c0_i32_13 = arith.constant 0 : i32
    %34 = tpu.memref_slice %arg5[%33, %c0_i32_13] : memref<50x32xf32, #tpu.memory_space<any>> -> memref<1x32xf32, #tpu.memory_space<any>>
    %35 = tpu.memref_squeeze %34 : memref<1x32xf32, #tpu.memory_space<any>> -> memref<32xf32, #tpu.memory_space<any>>
    %c0_i32_14 = arith.constant 0 : i32
    %36 = tpu.memref_slice %arg7[%c4_i32, %c0_i32_14] : memref<8x32xf32, #tpu.memory_space<vmem>> -> memref<1x32xf32, #tpu.memory_space<vmem>>
    %37 = tpu.memref_squeeze %36 : memref<1x32xf32, #tpu.memory_space<vmem>> -> memref<32xf32, #tpu.memory_space<vmem>>
    %38 = tpu.memref_slice %arg8[%c4_i32_12] : memref<8x!tpu.dma_semaphore, #tpu.memory_space<semaphore_mem>> -> memref<1x!tpu.dma_semaphore, #tpu.memory_space<semaphore_mem>>
    %39 = tpu.memref_squeeze %38 : memref<1x!tpu.dma_semaphore, #tpu.memory_space<semaphore_mem>> -> memref<!tpu.dma_semaphore, #tpu.memory_space<semaphore_mem>>
    tpu.enqueue_dma source(%35 : memref<32xf32, #tpu.memory_space<any>>) target(%37 : memref<32xf32, #tpu.memory_space<vmem>>) target_semaphore(%39 : memref<!tpu.dma_semaphore, #tpu.memory_space<semaphore_mem>>)
    %40 = arith.index_cast %arg0 : i32 to index
    %c5 = arith.constant 5 : index
    %41 = memref.load %arg1[%40, %c5] : memref<2x8xi32, #tpu.memory_space<smem>>
    %c5_i32 = arith.constant 5 : i32
    %c5_i32_15 = arith.constant 5 : i32
    %c0_i32_16 = arith.constant 0 : i32
    %42 = tpu.memref_slice %arg5[%41, %c0_i32_16] : memref<50x32xf32, #tpu.memory_space<any>> -> memref<1x32xf32, #tpu.memory_space<any>>
    %43 = tpu.memref_squeeze %42 : memref<1x32xf32, #tpu.memory_space<any>> -> memref<32xf32, #tpu.memory_space<any>>
    %c0_i32_17 = arith.constant 0 : i32
    %44 = tpu.memref_slice %arg7[%c5_i32, %c0_i32_17] : memref<8x32xf32, #tpu.memory_space<vmem>> -> memref<1x32xf32, #tpu.memory_space<vmem>>
    %45 = tpu.memref_squeeze %44 : memref<1x32xf32, #tpu.memory_space<vmem>> -> memref<32xf32, #tpu.memory_space<vmem>>
    %46 = tpu.memref_slice %arg8[%c5_i32_15] : memref<8x!tpu.dma_semaphore, #tpu.memory_space<semaphore_mem>> -> memref<1x!tpu.dma_semaphore, #tpu.memory_space<semaphore_mem>>
    %47 = tpu.memref_squeeze %46 : memref<1x!tpu.dma_semaphore, #tpu.memory_space<semaphore_mem>> -> memref<!tpu.dma_semaphore, #tpu.memory_space<semaphore_mem>>
    tpu.enqueue_dma source(%43 : memref<32xf32, #tpu.memory_space<any>>) target(%45 : memref<32xf32, #tpu.memory_space<vmem>>) target_semaphore(%47 : memref<!tpu.dma_semaphore, #tpu.memory_space<semaphore_mem>>)
    %48 = arith.index_cast %arg0 : i32 to index
    %c6 = arith.constant 6 : index
    %49 = memref.load %arg1[%48, %c6] : memref<2x8xi32, #tpu.memory_space<smem>>
    %c6_i32 = arith.constant 6 : i32
    %c6_i32_18 = arith.constant 6 : i32
    %c0_i32_19 = arith.constant 0 : i32
    %50 = tpu.memref_slice %arg5[%49, %c0_i32_19] : memref<50x32xf32, #tpu.memory_space<any>> -> memref<1x32xf32, #tpu.memory_space<any>>
    %51 = tpu.memref_squeeze %50 : memref<1x32xf32, #tpu.memory_space<any>> -> memref<32xf32, #tpu.memory_space<any>>
    %c0_i32_20 = arith.constant 0 : i32
    %52 = tpu.memref_slice %arg7[%c6_i32, %c0_i32_20] : memref<8x32xf32, #tpu.memory_space<vmem>> -> memref<1x32xf32, #tpu.memory_space<vmem>>
    %53 = tpu.memref_squeeze %52 : memref<1x32xf32, #tpu.memory_space<vmem>> -> memref<32xf32, #tpu.memory_space<vmem>>
    %54 = tpu.memref_slice %arg8[%c6_i32_18] : memref<8x!tpu.dma_semaphore, #tpu.memory_space<semaphore_mem>> -> memref<1x!tpu.dma_semaphore, #tpu.memory_space<semaphore_mem>>
    %55 = tpu.memref_squeeze %54 : memref<1x!tpu.dma_semaphore, #tpu.memory_space<semaphore_mem>> -> memref<!tpu.dma_semaphore, #tpu.memory_space<semaphore_mem>>
    tpu.enqueue_dma source(%51 : memref<32xf32, #tpu.memory_space<any>>) target(%53 : memref<32xf32, #tpu.memory_space<vmem>>) target_semaphore(%55 : memref<!tpu.dma_semaphore, #tpu.memory_space<semaphore_mem>>)
    %56 = arith.index_cast %arg0 : i32 to index
    %c7 = arith.constant 7 : index
    %57 = memref.load %arg1[%56, %c7] : memref<2x8xi32, #tpu.memory_space<smem>>
    %c7_i32 = arith.constant 7 : i32
    %c7_i32_21 = arith.constant 7 : i32
    %c0_i32_22 = arith.constant 0 : i32
    %58 = tpu.memref_slice %arg5[%57, %c0_i32_22] : memref<50x32xf32, #tpu.memory_space<any>> -> memref<1x32xf32, #tpu.memory_space<any>>
    %59 = tpu.memref_squeeze %58 : memref<1x32xf32, #tpu.memory_space<any>> -> memref<32xf32, #tpu.memory_space<any>>
    %c0_i32_23 = arith.constant 0 : i32
    %60 = tpu.memref_slice %arg7[%c7_i32, %c0_i32_23] : memref<8x32xf32, #tpu.memory_space<vmem>> -> memref<1x32xf32, #tpu.memory_space<vmem>>
    %61 = tpu.memref_squeeze %60 : memref<1x32xf32, #tpu.memory_space<vmem>> -> memref<32xf32, #tpu.memory_space<vmem>>
    %62 = tpu.memref_slice %arg8[%c7_i32_21] : memref<8x!tpu.dma_semaphore, #tpu.memory_space<semaphore_mem>> -> memref<1x!tpu.dma_semaphore, #tpu.memory_space<semaphore_mem>>
    %63 = tpu.memref_squeeze %62 : memref<1x!tpu.dma_semaphore, #tpu.memory_space<semaphore_mem>> -> memref<!tpu.dma_semaphore, #tpu.memory_space<semaphore_mem>>
    tpu.enqueue_dma source(%59 : memref<32xf32, #tpu.memory_space<any>>) target(%61 : memref<32xf32, #tpu.memory_space<vmem>>) target_semaphore(%63 : memref<!tpu.dma_semaphore, #tpu.memory_space<semaphore_mem>>)
    %c0_i32_24 = arith.constant 0 : i32
    %c0_i32_25 = arith.constant 0 : i32
    %c0_i32_26 = arith.constant 0 : i32
    %64 = tpu.memref_slice %arg5[%1, %c0_i32_26] : memref<50x32xf32, #tpu.memory_space<any>> -> memref<1x32xf32, #tpu.memory_space<any>>
    %65 = tpu.memref_squeeze %64 : memref<1x32xf32, #tpu.memory_space<any>> -> memref<32xf32, #tpu.memory_space<any>>
    %c0_i32_27 = arith.constant 0 : i32
    %66 = tpu.memref_slice %arg7[%c0_i32_24, %c0_i32_27] : memref<8x32xf32, #tpu.memory_space<vmem>> -> memref<1x32xf32, #tpu.memory_space<vmem>>
    %67 = tpu.memref_squeeze %66 : memref<1x32xf32, #tpu.memory_space<vmem>> -> memref<32xf32, #tpu.memory_space<vmem>>
    %68 = tpu.memref_slice %arg8[%c0_i32_25] : memref<8x!tpu.dma_semaphore, #tpu.memory_space<semaphore_mem>> -> memref<1x!tpu.dma_semaphore, #tpu.memory_space<semaphore_mem>>
    %69 = tpu.memref_squeeze %68 : memref<1x!tpu.dma_semaphore, #tpu.memory_space<semaphore_mem>> -> memref<!tpu.dma_semaphore, #tpu.memory_space<semaphore_mem>>
    tpu.wait_dma2 semaphore(%69 : memref<!tpu.dma_semaphore, #tpu.memory_space<semaphore_mem>>) src(%65 : memref<32xf32, #tpu.memory_space<any>>) dst(%67 : memref<32xf32, #tpu.memory_space<vmem>>)
    %c1_i32_28 = arith.constant 1 : i32
    %c1_i32_29 = arith.constant 1 : i32
    %c0_i32_30 = arith.constant 0 : i32
    %70 = tpu.memref_slice %arg5[%9, %c0_i32_30] : memref<50x32xf32, #tpu.memory_space<any>> -> memref<1x32xf32, #tpu.memory_space<any>>
    %71 = tpu.memref_squeeze %70 : memref<1x32xf32, #tpu.memory_space<any>> -> memref<32xf32, #tpu.memory_space<any>>
    %c0_i32_31 = arith.constant 0 : i32
    %72 = tpu.memref_slice %arg7[%c1_i32_28, %c0_i32_31] : memref<8x32xf32, #tpu.memory_space<vmem>> -> memref<1x32xf32, #tpu.memory_space<vmem>>
    %73 = tpu.memref_squeeze %72 : memref<1x32xf32, #tpu.memory_space<vmem>> -> memref<32xf32, #tpu.memory_space<vmem>>
    %74 = tpu.memref_slice %arg8[%c1_i32_29] : memref<8x!tpu.dma_semaphore, #tpu.memory_space<semaphore_mem>> -> memref<1x!tpu.dma_semaphore, #tpu.memory_space<semaphore_mem>>
    %75 = tpu.memref_squeeze %74 : memref<1x!tpu.dma_semaphore, #tpu.memory_space<semaphore_mem>> -> memref<!tpu.dma_semaphore, #tpu.memory_space<semaphore_mem>>
    tpu.wait_dma2 semaphore(%75 : memref<!tpu.dma_semaphore, #tpu.memory_space<semaphore_mem>>) src(%71 : memref<32xf32, #tpu.memory_space<any>>) dst(%73 : memref<32xf32, #tpu.memory_space<vmem>>)
    %c2_i32_32 = arith.constant 2 : i32
    %c2_i32_33 = arith.constant 2 : i32
    %c0_i32_34 = arith.constant 0 : i32
    %76 = tpu.memref_slice %arg5[%17, %c0_i32_34] : memref<50x32xf32, #tpu.memory_space<any>> -> memref<1x32xf32, #tpu.memory_space<any>>
    %77 = tpu.memref_squeeze %76 : memref<1x32xf32, #tpu.memory_space<any>> -> memref<32xf32, #tpu.memory_space<any>>
    %c0_i32_35 = arith.constant 0 : i32
    %78 = tpu.memref_slice %arg7[%c2_i32_32, %c0_i32_35] : memref<8x32xf32, #tpu.memory_space<vmem>> -> memref<1x32xf32, #tpu.memory_space<vmem>>
    %79 = tpu.memref_squeeze %78 : memref<1x32xf32, #tpu.memory_space<vmem>> -> memref<32xf32, #tpu.memory_space<vmem>>
    %80 = tpu.memref_slice %arg8[%c2_i32_33] : memref<8x!tpu.dma_semaphore, #tpu.memory_space<semaphore_mem>> -> memref<1x!tpu.dma_semaphore, #tpu.memory_space<semaphore_mem>>
    %81 = tpu.memref_squeeze %80 : memref<1x!tpu.dma_semaphore, #tpu.memory_space<semaphore_mem>> -> memref<!tpu.dma_semaphore, #tpu.memory_space<semaphore_mem>>
    tpu.wait_dma2 semaphore(%81 : memref<!tpu.dma_semaphore, #tpu.memory_space<semaphore_mem>>) src(%77 : memref<32xf32, #tpu.memory_space<any>>) dst(%79 : memref<32xf32, #tpu.memory_space<vmem>>)
    %c3_i32_36 = arith.constant 3 : i32
    %c3_i32_37 = arith.constant 3 : i32
    %c0_i32_38 = arith.constant 0 : i32
    %82 = tpu.memref_slice %arg5[%25, %c0_i32_38] : memref<50x32xf32, #tpu.memory_space<any>> -> memref<1x32xf32, #tpu.memory_space<any>>
    %83 = tpu.memref_squeeze %82 : memref<1x32xf32, #tpu.memory_space<any>> -> memref<32xf32, #tpu.memory_space<any>>
    %c0_i32_39 = arith.constant 0 : i32
    %84 = tpu.memref_slice %arg7[%c3_i32_36, %c0_i32_39] : memref<8x32xf32, #tpu.memory_space<vmem>> -> memref<1x32xf32, #tpu.memory_space<vmem>>
    %85 = tpu.memref_squeeze %84 : memref<1x32xf32, #tpu.memory_space<vmem>> -> memref<32xf32, #tpu.memory_space<vmem>>
    %86 = tpu.memref_slice %arg8[%c3_i32_37] : memref<8x!tpu.dma_semaphore, #tpu.memory_space<semaphore_mem>> -> memref<1x!tpu.dma_semaphore, #tpu.memory_space<semaphore_mem>>
    %87 = tpu.memref_squeeze %86 : memref<1x!tpu.dma_semaphore, #tpu.memory_space<semaphore_mem>> -> memref<!tpu.dma_semaphore, #tpu.memory_space<semaphore_mem>>
    tpu.wait_dma2 semaphore(%87 : memref<!tpu.dma_semaphore, #tpu.memory_space<semaphore_mem>>) src(%83 : memref<32xf32, #tpu.memory_space<any>>) dst(%85 : memref<32xf32, #tpu.memory_space<vmem>>)
    %c4_i32_40 = arith.constant 4 : i32
    %c4_i32_41 = arith.constant 4 : i32
    %c0_i32_42 = arith.constant 0 : i32
    %88 = tpu.memref_slice %arg5[%33, %c0_i32_42] : memref<50x32xf32, #tpu.memory_space<any>> -> memref<1x32xf32, #tpu.memory_space<any>>
    %89 = tpu.memref_squeeze %88 : memref<1x32xf32, #tpu.memory_space<any>> -> memref<32xf32, #tpu.memory_space<any>>
    %c0_i32_43 = arith.constant 0 : i32
    %90 = tpu.memref_slice %arg7[%c4_i32_40, %c0_i32_43] : memref<8x32xf32, #tpu.memory_space<vmem>> -> memref<1x32xf32, #tpu.memory_space<vmem>>
    %91 = tpu.memref_squeeze %90 : memref<1x32xf32, #tpu.memory_space<vmem>> -> memref<32xf32, #tpu.memory_space<vmem>>
    %92 = tpu.memref_slice %arg8[%c4_i32_41] : memref<8x!tpu.dma_semaphore, #tpu.memory_space<semaphore_mem>> -> memref<1x!tpu.dma_semaphore, #tpu.memory_space<semaphore_mem>>
    %93 = tpu.memref_squeeze %92 : memref<1x!tpu.dma_semaphore, #tpu.memory_space<semaphore_mem>> -> memref<!tpu.dma_semaphore, #tpu.memory_space<semaphore_mem>>
    tpu.wait_dma2 semaphore(%93 : memref<!tpu.dma_semaphore, #tpu.memory_space<semaphore_mem>>) src(%89 : memref<32xf32, #tpu.memory_space<any>>) dst(%91 : memref<32xf32, #tpu.memory_space<vmem>>)
    %c5_i32_44 = arith.constant 5 : i32
    %c5_i32_45 = arith.constant 5 : i32
    %c0_i32_46 = arith.constant 0 : i32
    %94 = tpu.memref_slice %arg5[%41, %c0_i32_46] : memref<50x32xf32, #tpu.memory_space<any>> -> memref<1x32xf32, #tpu.memory_space<any>>
    %95 = tpu.memref_squeeze %94 : memref<1x32xf32, #tpu.memory_space<any>> -> memref<32xf32, #tpu.memory_space<any>>
    %c0_i32_47 = arith.constant 0 : i32
    %96 = tpu.memref_slice %arg7[%c5_i32_44, %c0_i32_47] : memref<8x32xf32, #tpu.memory_space<vmem>> -> memref<1x32xf32, #tpu.memory_space<vmem>>
    %97 = tpu.memref_squeeze %96 : memref<1x32xf32, #tpu.memory_space<vmem>> -> memref<32xf32, #tpu.memory_space<vmem>>
    %98 = tpu.memref_slice %arg8[%c5_i32_45] : memref<8x!tpu.dma_semaphore, #tpu.memory_space<semaphore_mem>> -> memref<1x!tpu.dma_semaphore, #tpu.memory_space<semaphore_mem>>
    %99 = tpu.memref_squeeze %98 : memref<1x!tpu.dma_semaphore, #tpu.memory_space<semaphore_mem>> -> memref<!tpu.dma_semaphore, #tpu.memory_space<semaphore_mem>>
    tpu.wait_dma2 semaphore(%99 : memref<!tpu.dma_semaphore, #tpu.memory_space<semaphore_mem>>) src(%95 : memref<32xf32, #tpu.memory_space<any>>) dst(%97 : memref<32xf32, #tpu.memory_space<vmem>>)
    %c6_i32_48 = arith.constant 6 : i32
    %c6_i32_49 = arith.constant 6 : i32
    %c0_i32_50 = arith.constant 0 : i32
    %100 = tpu.memref_slice %arg5[%49, %c0_i32_50] : memref<50x32xf32, #tpu.memory_space<any>> -> memref<1x32xf32, #tpu.memory_space<any>>
    %101 = tpu.memref_squeeze %100 : memref<1x32xf32, #tpu.memory_space<any>> -> memref<32xf32, #tpu.memory_space<any>>
    %c0_i32_51 = arith.constant 0 : i32
    %102 = tpu.memref_slice %arg7[%c6_i32_48, %c0_i32_51] : memref<8x32xf32, #tpu.memory_space<vmem>> -> memref<1x32xf32, #tpu.memory_space<vmem>>
    %103 = tpu.memref_squeeze %102 : memref<1x32xf32, #tpu.memory_space<vmem>> -> memref<32xf32, #tpu.memory_space<vmem>>
    %104 = tpu.memref_slice %arg8[%c6_i32_49] : memref<8x!tpu.dma_semaphore, #tpu.memory_space<semaphore_mem>> -> memref<1x!tpu.dma_semaphore, #tpu.memory_space<semaphore_mem>>
    %105 = tpu.memref_squeeze %104 : memref<1x!tpu.dma_semaphore, #tpu.memory_space<semaphore_mem>> -> memref<!tpu.dma_semaphore, #tpu.memory_space<semaphore_mem>>
    tpu.wait_dma2 semaphore(%105 : memref<!tpu.dma_semaphore, #tpu.memory_space<semaphore_mem>>) src(%101 : memref<32xf32, #tpu.memory_space<any>>) dst(%103 : memref<32xf32, #tpu.memory_space<vmem>>)
    %c7_i32_52 = arith.constant 7 : i32
    %c7_i32_53 = arith.constant 7 : i32
    %c0_i32_54 = arith.constant 0 : i32
    %106 = tpu.memref_slice %arg5[%57, %c0_i32_54] : memref<50x32xf32, #tpu.memory_space<any>> -> memref<1x32xf32, #tpu.memory_space<any>>
    %107 = tpu.memref_squeeze %106 : memref<1x32xf32, #tpu.memory_space<any>> -> memref<32xf32, #tpu.memory_space<any>>
    %c0_i32_55 = arith.constant 0 : i32
    %108 = tpu.memref_slice %arg7[%c7_i32_52, %c0_i32_55] : memref<8x32xf32, #tpu.memory_space<vmem>> -> memref<1x32xf32, #tpu.memory_space<vmem>>
    %109 = tpu.memref_squeeze %108 : memref<1x32xf32, #tpu.memory_space<vmem>> -> memref<32xf32, #tpu.memory_space<vmem>>
    %110 = tpu.memref_slice %arg8[%c7_i32_53] : memref<8x!tpu.dma_semaphore, #tpu.memory_space<semaphore_mem>> -> memref<1x!tpu.dma_semaphore, #tpu.memory_space<semaphore_mem>>
    %111 = tpu.memref_squeeze %110 : memref<1x!tpu.dma_semaphore, #tpu.memory_space<semaphore_mem>> -> memref<!tpu.dma_semaphore, #tpu.memory_space<semaphore_mem>>
    tpu.wait_dma2 semaphore(%111 : memref<!tpu.dma_semaphore, #tpu.memory_space<semaphore_mem>>) src(%107 : memref<32xf32, #tpu.memory_space<any>>) dst(%109 : memref<32xf32, #tpu.memory_space<vmem>>)
    %c0_56 = arith.constant 0 : index
    %c0_57 = arith.constant 0 : index
    %112 = vector.load %arg7[%c0_56, %c0_57] : memref<8x32xf32, #tpu.memory_space<vmem>>, vector<8x32xf32>
    %c0_58 = arith.constant 0 : index
    %c0_59 = arith.constant 0 : index
    %113 = vector.load %arg2[%c0_58, %c0_59] : memref<8x32xf32, #tpu.memory_space<vmem>>, vector<8x32xf32>
    %114 = arith.addf %112, %113 : vector<8x32xf32>
    %c0_60 = arith.constant 0 : index
    %c0_61 = arith.constant 0 : index
    %115 = vector.load %arg3[%c0_60, %c0_61] : memref<1x32xf32, #tpu.memory_space<vmem>>, vector<1x32xf32>
    %c0_62 = arith.constant 0 : index
    %c0_63 = arith.constant 0 : index
    %116 = vector.load %arg4[%c0_62, %c0_63] : memref<1x32xf32, #tpu.memory_space<vmem>>, vector<1x32xf32>
    %cst = arith.constant dense<0.000000e+00> : vector<8xf32>
    %117 = vector.multi_reduction <add>, %114, %cst [1] : vector<8x32xf32> to vector<8xf32>
    %118 = vector.shape_cast %117 : vector<8xf32> to vector<8x1xf32>
    %cst_64 = arith.constant 3.200000e+01 : f32
    %119 = vector.broadcast %cst_64 : f32 to vector<8x1xf32>
    %120 = arith.divf %118, %119 : vector<8x1xf32>
    %121 = vector.broadcast %120 : vector<8x1xf32> to vector<8x32xf32>
    %122 = arith.subf %114, %121 : vector<8x32xf32>
    %123 = arith.mulf %122, %122 : vector<8x32xf32>
    %cst_65 = arith.constant dense<0.000000e+00> : vector<8xf32>
    %124 = vector.multi_reduction <add>, %123, %cst_65 [1] : vector<8x32xf32> to vector<8xf32>
    %125 = vector.shape_cast %124 : vector<8xf32> to vector<8x1xf32>
    %cst_66 = arith.constant 3.200000e+01 : f32
    %126 = vector.broadcast %cst_66 : f32 to vector<8x1xf32>
    %127 = arith.divf %125, %126 : vector<8x1xf32>
    %cst_67 = arith.constant 9.99999996E-13 : f32
    %128 = vector.broadcast %cst_67 : f32 to vector<8x1xf32>
    %129 = arith.addf %127, %128 : vector<8x1xf32>
    %130 = math.rsqrt %129 : vector<8x1xf32>
    %131 = vector.broadcast %130 : vector<8x1xf32> to vector<8x32xf32>
    %132 = arith.mulf %122, %131 : vector<8x32xf32>
    %133 = vector.broadcast %115 : vector<1x32xf32> to vector<8x32xf32>
    %134 = arith.mulf %132, %133 : vector<8x32xf32>
    %135 = vector.broadcast %116 : vector<1x32xf32> to vector<8x32xf32>
    %136 = arith.addf %134, %135 : vector<8x32xf32>
    %137 = arith.truncf %136 : vector<8x32xf32> to vector<8x32xbf16>
    %c0_68 = arith.constant 0 : index
    %c0_69 = arith.constant 0 : index
    %c0_70 = arith.constant 0 : index
    %138 = vector.load %arg6[%c0_68, %c0_69, %c0_70] : memref<1x8x32xbf16, #tpu.memory_space<vmem>>, vector<1x8x32xbf16>
    %139 = vector.shape_cast %138 : vector<1x8x32xbf16> to vector<8x32xbf16>
    %140 = vector.shape_cast %137 : vector<8x32xbf16> to vector<1x8x32xbf16>
    tpu.vector_store %arg6[%c0_68, %c0_69, %c0_70], %140 {strides = array<i32>} : memref<1x8x32xbf16, #tpu.memory_space<vmem>>, vector<1x8x32xbf16>,
    return
  }
  func.func @transform_0(%arg0: i32, %arg1: memref<2x8xi32, #tpu.memory_space<smem>>) -> (i32, i32) {
    %c0_i32 = arith.constant 0 : i32
    %c0_i32_0 = arith.constant 0 : i32
    %c0_i32_1 = arith.constant 0 : i32
    return %c0_i32, %c0_i32_0 : i32, i32
  }
  func.func @transform_1(%arg0: i32, %arg1: memref<2x8xi32, #tpu.memory_space<smem>>) -> (i32, i32) {
    %c0_i32 = arith.constant 0 : i32
    %c0_i32_0 = arith.constant 0 : i32
    %c0_i32_1 = arith.constant 0 : i32
    return %c0_i32, %c0_i32_0 : i32, i32
  }
  func.func @transform_2(%arg0: i32, %arg1: memref<2x8xi32, #tpu.memory_space<smem>>) -> (i32, i32) {
    %c0_i32 = arith.constant 0 : i32
    %c0_i32_0 = arith.constant 0 : i32
    %c0_i32_1 = arith.constant 0 : i32
    return %c0_i32, %c0_i32_0 : i32, i32
  }
  func.func @transform_4(%arg0: i32, %arg1: memref<2x8xi32, #tpu.memory_space<smem>>) -> (i32, i32, i32) {
    %c0_i32 = arith.constant 0 : i32
    %c0_i32_0 = arith.constant 0 : i32
    %c0_i32_1 = arith.constant 0 : i32
    return %arg0, %c0_i32, %c0_i32_0 : i32, i32, i32
  }
}

module attributes {stable_mosaic.version = 11 : i64} {
  func.func @_encoder_layer_kernel(%arg0: i32, %arg1: memref<1x8x32xbf16, #tpu.memory_space<vmem>>, %arg2: memref<1x1x8xf32, #tpu.memory_space<vmem>>, %arg3: memref<32x96xbf16, #tpu.memory_space<vmem>>, %arg4: memref<1x96xf32, #tpu.memory_space<vmem>>, %arg5: memref<32x32xbf16, #tpu.memory_space<vmem>>, %arg6: memref<1x32xf32, #tpu.memory_space<vmem>>, %arg7: memref<1x32xf32, #tpu.memory_space<vmem>>, %arg8: memref<1x32xf32, #tpu.memory_space<vmem>>, %arg9: memref<32x64xbf16, #tpu.memory_space<vmem>>, %arg10: memref<1x64xf32, #tpu.memory_space<vmem>>, %arg11: memref<64x32xbf16, #tpu.memory_space<vmem>>, %arg12: memref<1x32xf32, #tpu.memory_space<vmem>>, %arg13: memref<1x32xf32, #tpu.memory_space<vmem>>, %arg14: memref<1x32xf32, #tpu.memory_space<vmem>>, %arg15: memref<1x8x32xbf16, #tpu.memory_space<vmem>>, %arg16: memref<1x1x32xbf16, #tpu.memory_space<vmem>>) attributes {dimension_semantics = [#tpu.dimension_semantics<parallel>], iteration_bounds = array<i64: 2>, scalar_prefetch = 0 : i64, scratch_operands = 0 : i64, tpu.core_type = #tpu.core_type<tc>, window_params = [{transform_indices = @transform_0, window_bounds = array<i64: 1, 8, 32>}, {transform_indices = @transform_1, window_bounds = array<i64: 1, 1, 8>}, {pipeline_mode = #tpu.pipeline_mode<synchronous>, transform_indices = @transform_2, window_bounds = array<i64: 32, 96>}, {pipeline_mode = #tpu.pipeline_mode<synchronous>, transform_indices = @transform_3, window_bounds = array<i64: 1, 96>}, {pipeline_mode = #tpu.pipeline_mode<synchronous>, transform_indices = @transform_4, window_bounds = array<i64: 32, 32>}, {pipeline_mode = #tpu.pipeline_mode<synchronous>, transform_indices = @transform_5, window_bounds = array<i64: 1, 32>}, {pipeline_mode = #tpu.pipeline_mode<synchronous>, transform_indices = @transform_6, window_bounds = array<i64: 1, 32>}, {pipeline_mode = #tpu.pipeline_mode<synchronous>, transform_indices = @transform_7, window_bounds = array<i64: 1, 32>}, {pipeline_mode = #tpu.pipeline_mode<synchronous>, transform_indices = @transform_8, window_bounds = array<i64: 32, 64>}, {pipeline_mode = #tpu.pipeline_mode<synchronous>, transform_indices = @transform_9, window_bounds = array<i64: 1, 64>}, {pipeline_mode = #tpu.pipeline_mode<synchronous>, transform_indices = @transform_10, window_bounds = array<i64: 64, 32>}, {pipeline_mode = #tpu.pipeline_mode<synchronous>, transform_indices = @transform_11, window_bounds = array<i64: 1, 32>}, {pipeline_mode = #tpu.pipeline_mode<synchronous>, transform_indices = @transform_12, window_bounds = array<i64: 1, 32>}, {pipeline_mode = #tpu.pipeline_mode<synchronous>, transform_indices = @transform_13, window_bounds = array<i64: 1, 32>}, {transform_indices = @transform_14, window_bounds = array<i64: 1, 8, 32>}, {transform_indices = @transform_15, window_bounds = array<i64: 1, 1, 32>}]} {
    %c0 = arith.constant 0 : index
    %c0_0 = arith.constant 0 : index
    %c0_1 = arith.constant 0 : index
    %0 = vector.load %arg1[%c0, %c0_0, %c0_1] : memref<1x8x32xbf16, #tpu.memory_space<vmem>>, vector<1x8x32xbf16>
    %1 = vector.shape_cast %0 : vector<1x8x32xbf16> to vector<8x32xbf16>
    %2 = arith.extf %1 : vector<8x32xbf16> to vector<8x32xf32>
    %c0_2 = arith.constant 0 : index
    %c0_3 = arith.constant 0 : index
    %3 = vector.load %arg3[%c0_2, %c0_3] : memref<32x96xbf16, #tpu.memory_space<vmem>>, vector<32x96xbf16>
    %cst = arith.constant dense<0.000000e+00> : vector<8x96xf32>
    %4 = tpu.matmul %1, %3, %cst {dimension_numbers = #tpu.dot_dimension_numbers<[1], [0], [0], [1], [0, 0, 1, 1], [], []>} : vector<8x32xbf16>, vector<32x96xbf16>, vector<8x96xf32> -> vector<8x96xf32>
    %c0_4 = arith.constant 0 : index
    %c0_5 = arith.constant 0 : index
    %5 = vector.load %arg4[%c0_4, %c0_5] : memref<1x96xf32, #tpu.memory_space<vmem>>, vector<1x96xf32>
    %6 = vector.broadcast %5 : vector<1x96xf32> to vector<8x96xf32>
    %7 = arith.addf %4, %6 : vector<8x96xf32>
    %8 = vector.extract_strided_slice %7 {offsets = [0, 0], sizes = [8, 32], strides = [1, 1]} : vector<8x96xf32> to vector<8x32xf32>
    %9 = vector.shape_cast %8 : vector<8x32xf32> to vector<8x4x8xf32>
    %10 = tpu.transpose %9, [1, 0, 2] : vector<8x4x8xf32> -> vector<4x8x8xf32>
    %11 = arith.truncf %10 : vector<4x8x8xf32> to vector<4x8x8xbf16>
    %12 = vector.extract_strided_slice %7 {offsets = [0, 32], sizes = [8, 32], strides = [1, 1]} : vector<8x96xf32> to vector<8x32xf32>
    %13 = vector.shape_cast %12 : vector<8x32xf32> to vector<8x4x8xf32>
    %14 = tpu.transpose %13, [1, 0, 2] : vector<8x4x8xf32> -> vector<4x8x8xf32>
    %15 = arith.truncf %14 : vector<4x8x8xf32> to vector<4x8x8xbf16>
    %16 = vector.extract_strided_slice %7 {offsets = [0, 64], sizes = [8, 32], strides = [1, 1]} : vector<8x96xf32> to vector<8x32xf32>
    %17 = vector.shape_cast %16 : vector<8x32xf32> to vector<8x4x8xf32>
    %18 = tpu.transpose %17, [1, 0, 2] : vector<8x4x8xf32> -> vector<4x8x8xf32>
    %19 = arith.truncf %18 : vector<4x8x8xf32> to vector<4x8x8xbf16>
    %c0_6 = arith.constant 0 : index
    %c0_7 = arith.constant 0 : index
    %c0_8 = arith.constant 0 : index
    %20 = vector.load %arg2[%c0_6, %c0_7, %c0_8] : memref<1x1x8xf32, #tpu.memory_space<vmem>>, vector<1x1x8xf32>
    %21 = vector.shape_cast %20 : vector<1x1x8xf32> to vector<1x8xf32>
    %cst_9 = arith.constant 1.000000e+00 : f32
    %22 = vector.broadcast %cst_9 : f32 to vector<1x8xf32>
    %23 = arith.subf %22, %21 : vector<1x8xf32>
    %cst_10 = arith.constant -1.000000e+09 : f32
    %24 = vector.broadcast %cst_10 : f32 to vector<1x8xf32>
    %25 = arith.mulf %23, %24 : vector<1x8xf32>
    %26 = vector.shape_cast %25 : vector<1x8xf32> to vector<1x1x8xf32>
    "tpu.trace_start"() <{level = 10 : i32, message = "hqd,hkd->hqk"}> : () -> ()
    %cst_11 = arith.constant dense<0.000000e+00> : vector<4x8x8xf32>
    %27 = tpu.matmul %11, %15, %cst_11 {dimension_numbers = #tpu.dot_dimension_numbers<[2], [2], [1], [1], [0, 0, 0, 1, 1, 1], [0], [0]>} : vector<4x8x8xbf16>, vector<4x8x8xbf16>, vector<4x8x8xf32> -> vector<4x8x8xf32>
    "tpu.trace_stop"() : () -> ()
    %28 = vector.broadcast %26 : vector<1x1x8xf32> to vector<4x8x8xf32>
    %29 = arith.addf %27, %28 : vector<4x8x8xf32>
    %cst_12 = arith.constant dense<0xFF800000> : vector<4x8xf32>
    %30 = vector.multi_reduction <maximumf>, %29, %cst_12 [2] : vector<4x8x8xf32> to vector<4x8xf32>
    %31 = vector.shape_cast %30 : vector<4x8xf32> to vector<4x8x1xf32>
    %32 = vector.broadcast %31 : vector<4x8x1xf32> to vector<4x8x8xf32>
    %33 = arith.subf %29, %32 : vector<4x8x8xf32>
    %34 = math.exp %33 : vector<4x8x8xf32>
    %cst_13 = arith.constant dense<0.000000e+00> : vector<4x8xf32>
    %35 = vector.multi_reduction <add>, %34, %cst_13 [2] : vector<4x8x8xf32> to vector<4x8xf32>
    %36 = vector.shape_cast %35 : vector<4x8xf32> to vector<4x8x1xf32>
    %37 = tpu.reciprocal %36 {approx = true} : vector<4x8x1xf32> -> vector<4x8x1xf32>
    %38 = vector.broadcast %37 : vector<4x8x1xf32> to vector<4x8x8xf32>
    %39 = arith.mulf %34, %38 : vector<4x8x8xf32>
    %40 = arith.truncf %39 : vector<4x8x8xf32> to vector<4x8x8xbf16>
    "tpu.trace_start"() <{level = 10 : i32, message = "hqk,hkd->hqd"}> : () -> ()
    %cst_14 = arith.constant dense<0.000000e+00> : vector<4x8x8xf32>
    %41 = tpu.matmul %40, %19, %cst_14 {dimension_numbers = #tpu.dot_dimension_numbers<[2], [1], [1], [2], [0, 0, 0, 1, 1, 2], [0], [0]>} : vector<4x8x8xbf16>, vector<4x8x8xbf16>, vector<4x8x8xf32> -> vector<4x8x8xf32>
    "tpu.trace_stop"() : () -> ()
    %42 = tpu.transpose %41, [1, 0, 2] : vector<4x8x8xf32> -> vector<8x4x8xf32>
    %43 = vector.shape_cast %42 : vector<8x4x8xf32> to vector<8x32xf32>
    %44 = arith.truncf %43 : vector<8x32xf32> to vector<8x32xbf16>
    %c0_15 = arith.constant 0 : index
    %c0_16 = arith.constant 0 : index
    %45 = vector.load %arg5[%c0_15, %c0_16] : memref<32x32xbf16, #tpu.memory_space<vmem>>, vector<32x32xbf16>
    %cst_17 = arith.constant dense<0.000000e+00> : vector<8x32xf32>
    %46 = tpu.matmul %44, %45, %cst_17 {dimension_numbers = #tpu.dot_dimension_numbers<[1], [0], [0], [1], [0, 0, 1, 1], [], []>} : vector<8x32xbf16>, vector<32x32xbf16>, vector<8x32xf32> -> vector<8x32xf32>
    %c0_18 = arith.constant 0 : index
    %c0_19 = arith.constant 0 : index
    %47 = vector.load %arg6[%c0_18, %c0_19] : memref<1x32xf32, #tpu.memory_space<vmem>>, vector<1x32xf32>
    %48 = vector.broadcast %47 : vector<1x32xf32> to vector<8x32xf32>
    %49 = arith.addf %46, %48 : vector<8x32xf32>
    %50 = arith.addf %2, %49 : vector<8x32xf32>
    %c0_20 = arith.constant 0 : index
    %c0_21 = arith.constant 0 : index
    %51 = vector.load %arg7[%c0_20, %c0_21] : memref<1x32xf32, #tpu.memory_space<vmem>>, vector<1x32xf32>
    %c0_22 = arith.constant 0 : index
    %c0_23 = arith.constant 0 : index
    %52 = vector.load %arg8[%c0_22, %c0_23] : memref<1x32xf32, #tpu.memory_space<vmem>>, vector<1x32xf32>
    %cst_24 = arith.constant dense<0.000000e+00> : vector<8xf32>
    %53 = vector.multi_reduction <add>, %50, %cst_24 [1] : vector<8x32xf32> to vector<8xf32>
    %54 = vector.shape_cast %53 : vector<8xf32> to vector<8x1xf32>
    %cst_25 = arith.constant 3.200000e+01 : f32
    %55 = vector.broadcast %cst_25 : f32 to vector<8x1xf32>
    %56 = arith.divf %54, %55 : vector<8x1xf32>
    %57 = vector.broadcast %56 : vector<8x1xf32> to vector<8x32xf32>
    %58 = arith.subf %50, %57 : vector<8x32xf32>
    %59 = arith.mulf %58, %58 : vector<8x32xf32>
    %cst_26 = arith.constant dense<0.000000e+00> : vector<8xf32>
    %60 = vector.multi_reduction <add>, %59, %cst_26 [1] : vector<8x32xf32> to vector<8xf32>
    %61 = vector.shape_cast %60 : vector<8xf32> to vector<8x1xf32>
    %cst_27 = arith.constant 3.200000e+01 : f32
    %62 = vector.broadcast %cst_27 : f32 to vector<8x1xf32>
    %63 = arith.divf %61, %62 : vector<8x1xf32>
    %cst_28 = arith.constant 9.99999996E-13 : f32
    %64 = vector.broadcast %cst_28 : f32 to vector<8x1xf32>
    %65 = arith.addf %63, %64 : vector<8x1xf32>
    %66 = math.rsqrt %65 : vector<8x1xf32>
    %67 = vector.broadcast %66 : vector<8x1xf32> to vector<8x32xf32>
    %68 = arith.mulf %58, %67 : vector<8x32xf32>
    %69 = vector.broadcast %51 : vector<1x32xf32> to vector<8x32xf32>
    %70 = arith.mulf %68, %69 : vector<8x32xf32>
    %71 = vector.broadcast %52 : vector<1x32xf32> to vector<8x32xf32>
    %72 = arith.addf %70, %71 : vector<8x32xf32>
    %73 = arith.truncf %72 : vector<8x32xf32> to vector<8x32xbf16>
    %c0_29 = arith.constant 0 : index
    %c0_30 = arith.constant 0 : index
    %74 = vector.load %arg9[%c0_29, %c0_30] : memref<32x64xbf16, #tpu.memory_space<vmem>>, vector<32x64xbf16>
    %cst_31 = arith.constant dense<0.000000e+00> : vector<8x64xf32>
    %75 = tpu.matmul %73, %74, %cst_31 {dimension_numbers = #tpu.dot_dimension_numbers<[1], [0], [0], [1], [0, 0, 1, 1], [], []>} : vector<8x32xbf16>, vector<32x64xbf16>, vector<8x64xf32> -> vector<8x64xf32>
    %c0_32 = arith.constant 0 : index
    %c0_33 = arith.constant 0 : index
    %76 = vector.load %arg10[%c0_32, %c0_33] : memref<1x64xf32, #tpu.memory_space<vmem>>, vector<1x64xf32>
    %77 = vector.broadcast %76 : vector<1x64xf32> to vector<8x64xf32>
    %78 = arith.addf %75, %77 : vector<8x64xf32>
    %cst_34 = arith.constant 5.000000e-01 : f32
    %79 = vector.broadcast %cst_34 : f32 to vector<8x64xf32>
    %80 = arith.mulf %79, %78 : vector<8x64xf32>
    %cst_35 = arith.constant 4.471500e-02 : f32
    %81 = vector.broadcast %cst_35 : f32 to vector<8x64xf32>
    %82 = arith.mulf %81, %78 : vector<8x64xf32>
    %83 = arith.mulf %82, %78 : vector<8x64xf32>
    %84 = arith.mulf %83, %78 : vector<8x64xf32>
    %85 = arith.addf %78, %84 : vector<8x64xf32>
    %cst_36 = arith.constant 0.797884583 : f32
    %86 = vector.broadcast %cst_36 : f32 to vector<8x64xf32>
    %87 = arith.mulf %86, %85 : vector<8x64xf32>
    %88 = math.tanh %87 : vector<8x64xf32>
    %cst_37 = arith.constant 1.000000e+00 : f32
    %89 = vector.broadcast %cst_37 : f32 to vector<8x64xf32>
    %90 = arith.addf %89, %88 : vector<8x64xf32>
    %91 = arith.mulf %80, %90 : vector<8x64xf32>
    %92 = arith.truncf %91 : vector<8x64xf32> to vector<8x64xbf16>
    %c0_38 = arith.constant 0 : index
    %c0_39 = arith.constant 0 : index
    %93 = vector.load %arg11[%c0_38, %c0_39] : memref<64x32xbf16, #tpu.memory_space<vmem>>, vector<64x32xbf16>
    %cst_40 = arith.constant dense<0.000000e+00> : vector<8x32xf32>
    %94 = tpu.matmul %92, %93, %cst_40 {dimension_numbers = #tpu.dot_dimension_numbers<[1], [0], [0], [1], [0, 0, 1, 1], [], []>} : vector<8x64xbf16>, vector<64x32xbf16>, vector<8x32xf32> -> vector<8x32xf32>
    %c0_41 = arith.constant 0 : index
    %c0_42 = arith.constant 0 : index
    %95 = vector.load %arg12[%c0_41, %c0_42] : memref<1x32xf32, #tpu.memory_space<vmem>>, vector<1x32xf32>
    %96 = vector.broadcast %95 : vector<1x32xf32> to vector<8x32xf32>
    %97 = arith.addf %94, %96 : vector<8x32xf32>
    %98 = arith.addf %72, %97 : vector<8x32xf32>
    %c0_43 = arith.constant 0 : index
    %c0_44 = arith.constant 0 : index
    %99 = vector.load %arg13[%c0_43, %c0_44] : memref<1x32xf32, #tpu.memory_space<vmem>>, vector<1x32xf32>
    %c0_45 = arith.constant 0 : index
    %c0_46 = arith.constant 0 : index
    %100 = vector.load %arg14[%c0_45, %c0_46] : memref<1x32xf32, #tpu.memory_space<vmem>>, vector<1x32xf32>
    %cst_47 = arith.constant dense<0.000000e+00> : vector<8xf32>
    %101 = vector.multi_reduction <add>, %98, %cst_47 [1] : vector<8x32xf32> to vector<8xf32>
    %102 = vector.shape_cast %101 : vector<8xf32> to vector<8x1xf32>
    %cst_48 = arith.constant 3.200000e+01 : f32
    %103 = vector.broadcast %cst_48 : f32 to vector<8x1xf32>
    %104 = arith.divf %102, %103 : vector<8x1xf32>
    %105 = vector.broadcast %104 : vector<8x1xf32> to vector<8x32xf32>
    %106 = arith.subf %98, %105 : vector<8x32xf32>
    %107 = arith.mulf %106, %106 : vector<8x32xf32>
    %cst_49 = arith.constant dense<0.000000e+00> : vector<8xf32>
    %108 = vector.multi_reduction <add>, %107, %cst_49 [1] : vector<8x32xf32> to vector<8xf32>
    %109 = vector.shape_cast %108 : vector<8xf32> to vector<8x1xf32>
    %cst_50 = arith.constant 3.200000e+01 : f32
    %110 = vector.broadcast %cst_50 : f32 to vector<8x1xf32>
    %111 = arith.divf %109, %110 : vector<8x1xf32>
    %cst_51 = arith.constant 9.99999996E-13 : f32
    %112 = vector.broadcast %cst_51 : f32 to vector<8x1xf32>
    %113 = arith.addf %111, %112 : vector<8x1xf32>
    %114 = math.rsqrt %113 : vector<8x1xf32>
    %115 = vector.broadcast %114 : vector<8x1xf32> to vector<8x32xf32>
    %116 = arith.mulf %106, %115 : vector<8x32xf32>
    %117 = vector.broadcast %99 : vector<1x32xf32> to vector<8x32xf32>
    %118 = arith.mulf %116, %117 : vector<8x32xf32>
    %119 = vector.broadcast %100 : vector<1x32xf32> to vector<8x32xf32>
    %120 = arith.addf %118, %119 : vector<8x32xf32>
    %121 = arith.truncf %120 : vector<8x32xf32> to vector<8x32xbf16>
    %c0_52 = arith.constant 0 : index
    %c0_53 = arith.constant 0 : index
    %c0_54 = arith.constant 0 : index
    %122 = vector.load %arg15[%c0_52, %c0_53, %c0_54] : memref<1x8x32xbf16, #tpu.memory_space<vmem>>, vector<1x8x32xbf16>
    %123 = vector.shape_cast %122 : vector<1x8x32xbf16> to vector<8x32xbf16>
    %124 = vector.shape_cast %121 : vector<8x32xbf16> to vector<1x8x32xbf16>
    tpu.vector_store %arg15[%c0_52, %c0_53, %c0_54], %124 {strides = array<i32>} : memref<1x8x32xbf16, #tpu.memory_space<vmem>>, vector<1x8x32xbf16>,
    %125 = vector.extract_strided_slice %120 {offsets = [0, 0], sizes = [1, 32], strides = [1, 1]} : vector<8x32xf32> to vector<1x32xf32>
    %126 = arith.truncf %125 : vector<1x32xf32> to vector<1x32xbf16>
    %c0_55 = arith.constant 0 : index
    %c0_56 = arith.constant 0 : index
    %c0_57 = arith.constant 0 : index
    %127 = vector.load %arg16[%c0_55, %c0_56, %c0_57] : memref<1x1x32xbf16, #tpu.memory_space<vmem>>, vector<1x1x32xbf16>
    %128 = vector.shape_cast %127 : vector<1x1x32xbf16> to vector<1x32xbf16>
    %129 = vector.shape_cast %126 : vector<1x32xbf16> to vector<1x1x32xbf16>
    tpu.vector_store %arg16[%c0_55, %c0_56, %c0_57], %129 {strides = array<i32>} : memref<1x1x32xbf16, #tpu.memory_space<vmem>>, vector<1x1x32xbf16>,
    return
  }
  func.func @transform_0(%arg0: i32) -> (i32, i32, i32) {
    %c0_i32 = arith.constant 0 : i32
    %c0_i32_0 = arith.constant 0 : i32
    %c0_i32_1 = arith.constant 0 : i32
    return %arg0, %c0_i32, %c0_i32_0 : i32, i32, i32
  }
  func.func @transform_1(%arg0: i32) -> (i32, i32, i32) {
    %c0_i32 = arith.constant 0 : i32
    %c0_i32_0 = arith.constant 0 : i32
    %c0_i32_1 = arith.constant 0 : i32
    return %arg0, %c0_i32, %c0_i32_0 : i32, i32, i32
  }
  func.func @transform_2(%arg0: i32) -> (i32, i32) {
    %c0_i32 = arith.constant 0 : i32
    %c0_i32_0 = arith.constant 0 : i32
    %c0_i32_1 = arith.constant 0 : i32
    return %c0_i32, %c0_i32_0 : i32, i32
  }
  func.func @transform_3(%arg0: i32) -> (i32, i32) {
    %c0_i32 = arith.constant 0 : i32
    %c0_i32_0 = arith.constant 0 : i32
    %c0_i32_1 = arith.constant 0 : i32
    return %c0_i32, %c0_i32_0 : i32, i32
  }
  func.func @transform_4(%arg0: i32) -> (i32, i32) {
    %c0_i32 = arith.constant 0 : i32
    %c0_i32_0 = arith.constant 0 : i32
    %c0_i32_1 = arith.constant 0 : i32
    return %c0_i32, %c0_i32_0 : i32, i32
  }
  func.func @transform_5(%arg0: i32) -> (i32, i32) {
    %c0_i32 = arith.constant 0 : i32
    %c0_i32_0 = arith.constant 0 : i32
    %c0_i32_1 = arith.constant 0 : i32
    return %c0_i32, %c0_i32_0 : i32, i32
  }
  func.func @transform_6(%arg0: i32) -> (i32, i32) {
    %c0_i32 = arith.constant 0 : i32
    %c0_i32_0 = arith.constant 0 : i32
    %c0_i32_1 = arith.constant 0 : i32
    return %c0_i32, %c0_i32_0 : i32, i32
  }
  func.func @transform_7(%arg0: i32) -> (i32, i32) {
    %c0_i32 = arith.constant 0 : i32
    %c0_i32_0 = arith.constant 0 : i32
    %c0_i32_1 = arith.constant 0 : i32
    return %c0_i32, %c0_i32_0 : i32, i32
  }
  func.func @transform_8(%arg0: i32) -> (i32, i32) {
    %c0_i32 = arith.constant 0 : i32
    %c0_i32_0 = arith.constant 0 : i32
    %c0_i32_1 = arith.constant 0 : i32
    return %c0_i32, %c0_i32_0 : i32, i32
  }
  func.func @transform_9(%arg0: i32) -> (i32, i32) {
    %c0_i32 = arith.constant 0 : i32
    %c0_i32_0 = arith.constant 0 : i32
    %c0_i32_1 = arith.constant 0 : i32
    return %c0_i32, %c0_i32_0 : i32, i32
  }
  func.func @transform_10(%arg0: i32) -> (i32, i32) {
    %c0_i32 = arith.constant 0 : i32
    %c0_i32_0 = arith.constant 0 : i32
    %c0_i32_1 = arith.constant 0 : i32
    return %c0_i32, %c0_i32_0 : i32, i32
  }
  func.func @transform_11(%arg0: i32) -> (i32, i32) {
    %c0_i32 = arith.constant 0 : i32
    %c0_i32_0 = arith.constant 0 : i32
    %c0_i32_1 = arith.constant 0 : i32
    return %c0_i32, %c0_i32_0 : i32, i32
  }
  func.func @transform_12(%arg0: i32) -> (i32, i32) {
    %c0_i32 = arith.constant 0 : i32
    %c0_i32_0 = arith.constant 0 : i32
    %c0_i32_1 = arith.constant 0 : i32
    return %c0_i32, %c0_i32_0 : i32, i32
  }
  func.func @transform_13(%arg0: i32) -> (i32, i32) {
    %c0_i32 = arith.constant 0 : i32
    %c0_i32_0 = arith.constant 0 : i32
    %c0_i32_1 = arith.constant 0 : i32
    return %c0_i32, %c0_i32_0 : i32, i32
  }
  func.func @transform_14(%arg0: i32) -> (i32, i32, i32) {
    %c0_i32 = arith.constant 0 : i32
    %c0_i32_0 = arith.constant 0 : i32
    %c0_i32_1 = arith.constant 0 : i32
    return %arg0, %c0_i32, %c0_i32_0 : i32, i32, i32
  }
  func.func @transform_15(%arg0: i32) -> (i32, i32, i32) {
    %c0_i32 = arith.constant 0 : i32
    %c0_i32_0 = arith.constant 0 : i32
    %c0_i32_1 = arith.constant 0 : i32
    return %arg0, %c0_i32, %c0_i32_0 : i32, i32, i32
  }
}

module attributes {stable_mosaic.version = 11 : i64} {
  func.func @_encoder_layer_kernel(%arg0: i32, %arg1: memref<1x8x32xbf16, #tpu.memory_space<vmem>>, %arg2: memref<1x1x8xf32, #tpu.memory_space<vmem>>, %arg3: memref<32x96xbf16, #tpu.memory_space<vmem>>, %arg4: memref<1x96xf32, #tpu.memory_space<vmem>>, %arg5: memref<32x32xbf16, #tpu.memory_space<vmem>>, %arg6: memref<1x32xf32, #tpu.memory_space<vmem>>, %arg7: memref<1x32xf32, #tpu.memory_space<vmem>>, %arg8: memref<1x32xf32, #tpu.memory_space<vmem>>, %arg9: memref<32x64xbf16, #tpu.memory_space<vmem>>, %arg10: memref<1x64xf32, #tpu.memory_space<vmem>>, %arg11: memref<64x32xbf16, #tpu.memory_space<vmem>>, %arg12: memref<1x32xf32, #tpu.memory_space<vmem>>, %arg13: memref<1x32xf32, #tpu.memory_space<vmem>>, %arg14: memref<1x32xf32, #tpu.memory_space<vmem>>, %arg15: memref<1x8x32xbf16, #tpu.memory_space<vmem>>, %arg16: memref<1x1x32xbf16, #tpu.memory_space<vmem>>) attributes {dimension_semantics = [#tpu.dimension_semantics<parallel>], iteration_bounds = array<i64: 2>, scalar_prefetch = 0 : i64, scratch_operands = 0 : i64, tpu.core_type = #tpu.core_type<tc>, window_params = [{transform_indices = @transform_0, window_bounds = array<i64: 1, 8, 32>}, {transform_indices = @transform_1, window_bounds = array<i64: 1, 1, 8>}, {pipeline_mode = #tpu.pipeline_mode<synchronous>, transform_indices = @transform_2, window_bounds = array<i64: 32, 96>}, {pipeline_mode = #tpu.pipeline_mode<synchronous>, transform_indices = @transform_3, window_bounds = array<i64: 1, 96>}, {pipeline_mode = #tpu.pipeline_mode<synchronous>, transform_indices = @transform_4, window_bounds = array<i64: 32, 32>}, {pipeline_mode = #tpu.pipeline_mode<synchronous>, transform_indices = @transform_5, window_bounds = array<i64: 1, 32>}, {pipeline_mode = #tpu.pipeline_mode<synchronous>, transform_indices = @transform_6, window_bounds = array<i64: 1, 32>}, {pipeline_mode = #tpu.pipeline_mode<synchronous>, transform_indices = @transform_7, window_bounds = array<i64: 1, 32>}, {pipeline_mode = #tpu.pipeline_mode<synchronous>, transform_indices = @transform_8, window_bounds = array<i64: 32, 64>}, {pipeline_mode = #tpu.pipeline_mode<synchronous>, transform_indices = @transform_9, window_bounds = array<i64: 1, 64>}, {pipeline_mode = #tpu.pipeline_mode<synchronous>, transform_indices = @transform_10, window_bounds = array<i64: 64, 32>}, {pipeline_mode = #tpu.pipeline_mode<synchronous>, transform_indices = @transform_11, window_bounds = array<i64: 1, 32>}, {pipeline_mode = #tpu.pipeline_mode<synchronous>, transform_indices = @transform_12, window_bounds = array<i64: 1, 32>}, {pipeline_mode = #tpu.pipeline_mode<synchronous>, transform_indices = @transform_13, window_bounds = array<i64: 1, 32>}, {transform_indices = @transform_14, window_bounds = array<i64: 1, 8, 32>}, {transform_indices = @transform_15, window_bounds = array<i64: 1, 1, 32>}]} {
    %c0 = arith.constant 0 : index
    %c0_0 = arith.constant 0 : index
    %c0_1 = arith.constant 0 : index
    %0 = vector.load %arg1[%c0, %c0_0, %c0_1] : memref<1x8x32xbf16, #tpu.memory_space<vmem>>, vector<1x8x32xbf16>
    %1 = vector.shape_cast %0 : vector<1x8x32xbf16> to vector<8x32xbf16>
    %2 = arith.extf %1 : vector<8x32xbf16> to vector<8x32xf32>
    %c0_2 = arith.constant 0 : index
    %c0_3 = arith.constant 0 : index
    %3 = vector.load %arg3[%c0_2, %c0_3] : memref<32x96xbf16, #tpu.memory_space<vmem>>, vector<32x96xbf16>
    %cst = arith.constant dense<0.000000e+00> : vector<8x96xf32>
    %4 = tpu.matmul %1, %3, %cst {dimension_numbers = #tpu.dot_dimension_numbers<[1], [0], [0], [1], [0, 0, 1, 1], [], []>} : vector<8x32xbf16>, vector<32x96xbf16>, vector<8x96xf32> -> vector<8x96xf32>
    %c0_4 = arith.constant 0 : index
    %c0_5 = arith.constant 0 : index
    %5 = vector.load %arg4[%c0_4, %c0_5] : memref<1x96xf32, #tpu.memory_space<vmem>>, vector<1x96xf32>
    %6 = vector.broadcast %5 : vector<1x96xf32> to vector<8x96xf32>
    %7 = arith.addf %4, %6 : vector<8x96xf32>
    %8 = vector.extract_strided_slice %7 {offsets = [0, 0], sizes = [8, 32], strides = [1, 1]} : vector<8x96xf32> to vector<8x32xf32>
    %9 = vector.shape_cast %8 : vector<8x32xf32> to vector<8x4x8xf32>
    %10 = tpu.transpose %9, [1, 0, 2] : vector<8x4x8xf32> -> vector<4x8x8xf32>
    %11 = arith.truncf %10 : vector<4x8x8xf32> to vector<4x8x8xbf16>
    %12 = vector.extract_strided_slice %7 {offsets = [0, 32], sizes = [8, 32], strides = [1, 1]} : vector<8x96xf32> to vector<8x32xf32>
    %13 = vector.shape_cast %12 : vector<8x32xf32> to vector<8x4x8xf32>
    %14 = tpu.transpose %13, [1, 0, 2] : vector<8x4x8xf32> -> vector<4x8x8xf32>
    %15 = arith.truncf %14 : vector<4x8x8xf32> to vector<4x8x8xbf16>
    %16 = vector.extract_strided_slice %7 {offsets = [0, 64], sizes = [8, 32], strides = [1, 1]} : vector<8x96xf32> to vector<8x32xf32>
    %17 = vector.shape_cast %16 : vector<8x32xf32> to vector<8x4x8xf32>
    %18 = tpu.transpose %17, [1, 0, 2] : vector<8x4x8xf32> -> vector<4x8x8xf32>
    %19 = arith.truncf %18 : vector<4x8x8xf32> to vector<4x8x8xbf16>
    %c0_6 = arith.constant 0 : index
    %c0_7 = arith.constant 0 : index
    %c0_8 = arith.constant 0 : index
    %20 = vector.load %arg2[%c0_6, %c0_7, %c0_8] : memref<1x1x8xf32, #tpu.memory_space<vmem>>, vector<1x1x8xf32>
    %21 = vector.shape_cast %20 : vector<1x1x8xf32> to vector<1x8xf32>
    %cst_9 = arith.constant 1.000000e+00 : f32
    %22 = vector.broadcast %cst_9 : f32 to vector<1x8xf32>
    %23 = arith.subf %22, %21 : vector<1x8xf32>
    %cst_10 = arith.constant -1.000000e+09 : f32
    %24 = vector.broadcast %cst_10 : f32 to vector<1x8xf32>
    %25 = arith.mulf %23, %24 : vector<1x8xf32>
    %26 = vector.shape_cast %25 : vector<1x8xf32> to vector<1x1x8xf32>
    "tpu.trace_start"() <{level = 10 : i32, message = "hqd,hkd->hqk"}> : () -> ()
    %cst_11 = arith.constant dense<0.000000e+00> : vector<4x8x8xf32>
    %27 = tpu.matmul %11, %15, %cst_11 {dimension_numbers = #tpu.dot_dimension_numbers<[2], [2], [1], [1], [0, 0, 0, 1, 1, 1], [0], [0]>} : vector<4x8x8xbf16>, vector<4x8x8xbf16>, vector<4x8x8xf32> -> vector<4x8x8xf32>
    "tpu.trace_stop"() : () -> ()
    %28 = vector.broadcast %26 : vector<1x1x8xf32> to vector<4x8x8xf32>
    %29 = arith.addf %27, %28 : vector<4x8x8xf32>
    %cst_12 = arith.constant dense<0xFF800000> : vector<4x8xf32>
    %30 = vector.multi_reduction <maximumf>, %29, %cst_12 [2] : vector<4x8x8xf32> to vector<4x8xf32>
    %31 = vector.shape_cast %30 : vector<4x8xf32> to vector<4x8x1xf32>
    %32 = vector.broadcast %31 : vector<4x8x1xf32> to vector<4x8x8xf32>
    %33 = arith.subf %29, %32 : vector<4x8x8xf32>
    %34 = math.exp %33 : vector<4x8x8xf32>
    %cst_13 = arith.constant dense<0.000000e+00> : vector<4x8xf32>
    %35 = vector.multi_reduction <add>, %34, %cst_13 [2] : vector<4x8x8xf32> to vector<4x8xf32>
    %36 = vector.shape_cast %35 : vector<4x8xf32> to vector<4x8x1xf32>
    %37 = tpu.reciprocal %36 {approx = true} : vector<4x8x1xf32> -> vector<4x8x1xf32>
    %38 = vector.broadcast %37 : vector<4x8x1xf32> to vector<4x8x8xf32>
    %39 = arith.mulf %34, %38 : vector<4x8x8xf32>
    %40 = arith.truncf %39 : vector<4x8x8xf32> to vector<4x8x8xbf16>
    "tpu.trace_start"() <{level = 10 : i32, message = "hqk,hkd->hqd"}> : () -> ()
    %cst_14 = arith.constant dense<0.000000e+00> : vector<4x8x8xf32>
    %41 = tpu.matmul %40, %19, %cst_14 {dimension_numbers = #tpu.dot_dimension_numbers<[2], [1], [1], [2], [0, 0, 0, 1, 1, 2], [0], [0]>} : vector<4x8x8xbf16>, vector<4x8x8xbf16>, vector<4x8x8xf32> -> vector<4x8x8xf32>
    "tpu.trace_stop"() : () -> ()
    %42 = tpu.transpose %41, [1, 0, 2] : vector<4x8x8xf32> -> vector<8x4x8xf32>
    %43 = vector.shape_cast %42 : vector<8x4x8xf32> to vector<8x32xf32>
    %44 = arith.truncf %43 : vector<8x32xf32> to vector<8x32xbf16>
    %c0_15 = arith.constant 0 : index
    %c0_16 = arith.constant 0 : index
    %45 = vector.load %arg5[%c0_15, %c0_16] : memref<32x32xbf16, #tpu.memory_space<vmem>>, vector<32x32xbf16>
    %cst_17 = arith.constant dense<0.000000e+00> : vector<8x32xf32>
    %46 = tpu.matmul %44, %45, %cst_17 {dimension_numbers = #tpu.dot_dimension_numbers<[1], [0], [0], [1], [0, 0, 1, 1], [], []>} : vector<8x32xbf16>, vector<32x32xbf16>, vector<8x32xf32> -> vector<8x32xf32>
    %c0_18 = arith.constant 0 : index
    %c0_19 = arith.constant 0 : index
    %47 = vector.load %arg6[%c0_18, %c0_19] : memref<1x32xf32, #tpu.memory_space<vmem>>, vector<1x32xf32>
    %48 = vector.broadcast %47 : vector<1x32xf32> to vector<8x32xf32>
    %49 = arith.addf %46, %48 : vector<8x32xf32>
    %50 = arith.addf %2, %49 : vector<8x32xf32>
    %c0_20 = arith.constant 0 : index
    %c0_21 = arith.constant 0 : index
    %51 = vector.load %arg7[%c0_20, %c0_21] : memref<1x32xf32, #tpu.memory_space<vmem>>, vector<1x32xf32>
    %c0_22 = arith.constant 0 : index
    %c0_23 = arith.constant 0 : index
    %52 = vector.load %arg8[%c0_22, %c0_23] : memref<1x32xf32, #tpu.memory_space<vmem>>, vector<1x32xf32>
    %cst_24 = arith.constant dense<0.000000e+00> : vector<8xf32>
    %53 = vector.multi_reduction <add>, %50, %cst_24 [1] : vector<8x32xf32> to vector<8xf32>
    %54 = vector.shape_cast %53 : vector<8xf32> to vector<8x1xf32>
    %cst_25 = arith.constant 3.200000e+01 : f32
    %55 = vector.broadcast %cst_25 : f32 to vector<8x1xf32>
    %56 = arith.divf %54, %55 : vector<8x1xf32>
    %57 = vector.broadcast %56 : vector<8x1xf32> to vector<8x32xf32>
    %58 = arith.subf %50, %57 : vector<8x32xf32>
    %59 = arith.mulf %58, %58 : vector<8x32xf32>
    %cst_26 = arith.constant dense<0.000000e+00> : vector<8xf32>
    %60 = vector.multi_reduction <add>, %59, %cst_26 [1] : vector<8x32xf32> to vector<8xf32>
    %61 = vector.shape_cast %60 : vector<8xf32> to vector<8x1xf32>
    %cst_27 = arith.constant 3.200000e+01 : f32
    %62 = vector.broadcast %cst_27 : f32 to vector<8x1xf32>
    %63 = arith.divf %61, %62 : vector<8x1xf32>
    %cst_28 = arith.constant 9.99999996E-13 : f32
    %64 = vector.broadcast %cst_28 : f32 to vector<8x1xf32>
    %65 = arith.addf %63, %64 : vector<8x1xf32>
    %66 = math.rsqrt %65 : vector<8x1xf32>
    %67 = vector.broadcast %66 : vector<8x1xf32> to vector<8x32xf32>
    %68 = arith.mulf %58, %67 : vector<8x32xf32>
    %69 = vector.broadcast %51 : vector<1x32xf32> to vector<8x32xf32>
    %70 = arith.mulf %68, %69 : vector<8x32xf32>
    %71 = vector.broadcast %52 : vector<1x32xf32> to vector<8x32xf32>
    %72 = arith.addf %70, %71 : vector<8x32xf32>
    %73 = arith.truncf %72 : vector<8x32xf32> to vector<8x32xbf16>
    %c0_29 = arith.constant 0 : index
    %c0_30 = arith.constant 0 : index
    %74 = vector.load %arg9[%c0_29, %c0_30] : memref<32x64xbf16, #tpu.memory_space<vmem>>, vector<32x64xbf16>
    %cst_31 = arith.constant dense<0.000000e+00> : vector<8x64xf32>
    %75 = tpu.matmul %73, %74, %cst_31 {dimension_numbers = #tpu.dot_dimension_numbers<[1], [0], [0], [1], [0, 0, 1, 1], [], []>} : vector<8x32xbf16>, vector<32x64xbf16>, vector<8x64xf32> -> vector<8x64xf32>
    %c0_32 = arith.constant 0 : index
    %c0_33 = arith.constant 0 : index
    %76 = vector.load %arg10[%c0_32, %c0_33] : memref<1x64xf32, #tpu.memory_space<vmem>>, vector<1x64xf32>
    %77 = vector.broadcast %76 : vector<1x64xf32> to vector<8x64xf32>
    %78 = arith.addf %75, %77 : vector<8x64xf32>
    %cst_34 = arith.constant 5.000000e-01 : f32
    %79 = vector.broadcast %cst_34 : f32 to vector<8x64xf32>
    %80 = arith.mulf %79, %78 : vector<8x64xf32>
    %cst_35 = arith.constant 4.471500e-02 : f32
    %81 = vector.broadcast %cst_35 : f32 to vector<8x64xf32>
    %82 = arith.mulf %81, %78 : vector<8x64xf32>
    %83 = arith.mulf %82, %78 : vector<8x64xf32>
    %84 = arith.mulf %83, %78 : vector<8x64xf32>
    %85 = arith.addf %78, %84 : vector<8x64xf32>
    %cst_36 = arith.constant 0.797884583 : f32
    %86 = vector.broadcast %cst_36 : f32 to vector<8x64xf32>
    %87 = arith.mulf %86, %85 : vector<8x64xf32>
    %88 = math.tanh %87 : vector<8x64xf32>
    %cst_37 = arith.constant 1.000000e+00 : f32
    %89 = vector.broadcast %cst_37 : f32 to vector<8x64xf32>
    %90 = arith.addf %89, %88 : vector<8x64xf32>
    %91 = arith.mulf %80, %90 : vector<8x64xf32>
    %92 = arith.truncf %91 : vector<8x64xf32> to vector<8x64xbf16>
    %c0_38 = arith.constant 0 : index
    %c0_39 = arith.constant 0 : index
    %93 = vector.load %arg11[%c0_38, %c0_39] : memref<64x32xbf16, #tpu.memory_space<vmem>>, vector<64x32xbf16>
    %cst_40 = arith.constant dense<0.000000e+00> : vector<8x32xf32>
    %94 = tpu.matmul %92, %93, %cst_40 {dimension_numbers = #tpu.dot_dimension_numbers<[1], [0], [0], [1], [0, 0, 1, 1], [], []>} : vector<8x64xbf16>, vector<64x32xbf16>, vector<8x32xf32> -> vector<8x32xf32>
    %c0_41 = arith.constant 0 : index
    %c0_42 = arith.constant 0 : index
    %95 = vector.load %arg12[%c0_41, %c0_42] : memref<1x32xf32, #tpu.memory_space<vmem>>, vector<1x32xf32>
    %96 = vector.broadcast %95 : vector<1x32xf32> to vector<8x32xf32>
    %97 = arith.addf %94, %96 : vector<8x32xf32>
    %98 = arith.addf %72, %97 : vector<8x32xf32>
    %c0_43 = arith.constant 0 : index
    %c0_44 = arith.constant 0 : index
    %99 = vector.load %arg13[%c0_43, %c0_44] : memref<1x32xf32, #tpu.memory_space<vmem>>, vector<1x32xf32>
    %c0_45 = arith.constant 0 : index
    %c0_46 = arith.constant 0 : index
    %100 = vector.load %arg14[%c0_45, %c0_46] : memref<1x32xf32, #tpu.memory_space<vmem>>, vector<1x32xf32>
    %cst_47 = arith.constant dense<0.000000e+00> : vector<8xf32>
    %101 = vector.multi_reduction <add>, %98, %cst_47 [1] : vector<8x32xf32> to vector<8xf32>
    %102 = vector.shape_cast %101 : vector<8xf32> to vector<8x1xf32>
    %cst_48 = arith.constant 3.200000e+01 : f32
    %103 = vector.broadcast %cst_48 : f32 to vector<8x1xf32>
    %104 = arith.divf %102, %103 : vector<8x1xf32>
    %105 = vector.broadcast %104 : vector<8x1xf32> to vector<8x32xf32>
    %106 = arith.subf %98, %105 : vector<8x32xf32>
    %107 = arith.mulf %106, %106 : vector<8x32xf32>
    %cst_49 = arith.constant dense<0.000000e+00> : vector<8xf32>
    %108 = vector.multi_reduction <add>, %107, %cst_49 [1] : vector<8x32xf32> to vector<8xf32>
    %109 = vector.shape_cast %108 : vector<8xf32> to vector<8x1xf32>
    %cst_50 = arith.constant 3.200000e+01 : f32
    %110 = vector.broadcast %cst_50 : f32 to vector<8x1xf32>
    %111 = arith.divf %109, %110 : vector<8x1xf32>
    %cst_51 = arith.constant 9.99999996E-13 : f32
    %112 = vector.broadcast %cst_51 : f32 to vector<8x1xf32>
    %113 = arith.addf %111, %112 : vector<8x1xf32>
    %114 = math.rsqrt %113 : vector<8x1xf32>
    %115 = vector.broadcast %114 : vector<8x1xf32> to vector<8x32xf32>
    %116 = arith.mulf %106, %115 : vector<8x32xf32>
    %117 = vector.broadcast %99 : vector<1x32xf32> to vector<8x32xf32>
    %118 = arith.mulf %116, %117 : vector<8x32xf32>
    %119 = vector.broadcast %100 : vector<1x32xf32> to vector<8x32xf32>
    %120 = arith.addf %118, %119 : vector<8x32xf32>
    %121 = arith.truncf %120 : vector<8x32xf32> to vector<8x32xbf16>
    %c0_52 = arith.constant 0 : index
    %c0_53 = arith.constant 0 : index
    %c0_54 = arith.constant 0 : index
    %122 = vector.load %arg15[%c0_52, %c0_53, %c0_54] : memref<1x8x32xbf16, #tpu.memory_space<vmem>>, vector<1x8x32xbf16>
    %123 = vector.shape_cast %122 : vector<1x8x32xbf16> to vector<8x32xbf16>
    %124 = vector.shape_cast %121 : vector<8x32xbf16> to vector<1x8x32xbf16>
    tpu.vector_store %arg15[%c0_52, %c0_53, %c0_54], %124 {strides = array<i32>} : memref<1x8x32xbf16, #tpu.memory_space<vmem>>, vector<1x8x32xbf16>,
    %125 = vector.extract_strided_slice %120 {offsets = [0, 0], sizes = [1, 32], strides = [1, 1]} : vector<8x32xf32> to vector<1x32xf32>
    %126 = arith.truncf %125 : vector<1x32xf32> to vector<1x32xbf16>
    %c0_55 = arith.constant 0 : index
    %c0_56 = arith.constant 0 : index
    %c0_57 = arith.constant 0 : index
    %127 = vector.load %arg16[%c0_55, %c0_56, %c0_57] : memref<1x1x32xbf16, #tpu.memory_space<vmem>>, vector<1x1x32xbf16>
    %128 = vector.shape_cast %127 : vector<1x1x32xbf16> to vector<1x32xbf16>
    %129 = vector.shape_cast %126 : vector<1x32xbf16> to vector<1x1x32xbf16>
    tpu.vector_store %arg16[%c0_55, %c0_56, %c0_57], %129 {strides = array<i32>} : memref<1x1x32xbf16, #tpu.memory_space<vmem>>, vector<1x1x32xbf16>,
    return
  }
  func.func @transform_0(%arg0: i32) -> (i32, i32, i32) {
    %c0_i32 = arith.constant 0 : i32
    %c0_i32_0 = arith.constant 0 : i32
    %c0_i32_1 = arith.constant 0 : i32
    return %arg0, %c0_i32, %c0_i32_0 : i32, i32, i32
  }
  func.func @transform_1(%arg0: i32) -> (i32, i32, i32) {
    %c0_i32 = arith.constant 0 : i32
    %c0_i32_0 = arith.constant 0 : i32
    %c0_i32_1 = arith.constant 0 : i32
    return %arg0, %c0_i32, %c0_i32_0 : i32, i32, i32
  }
  func.func @transform_2(%arg0: i32) -> (i32, i32) {
    %c0_i32 = arith.constant 0 : i32
    %c0_i32_0 = arith.constant 0 : i32
    %c0_i32_1 = arith.constant 0 : i32
    return %c0_i32, %c0_i32_0 : i32, i32
  }
  func.func @transform_3(%arg0: i32) -> (i32, i32) {
    %c0_i32 = arith.constant 0 : i32
    %c0_i32_0 = arith.constant 0 : i32
    %c0_i32_1 = arith.constant 0 : i32
    return %c0_i32, %c0_i32_0 : i32, i32
  }
  func.func @transform_4(%arg0: i32) -> (i32, i32) {
    %c0_i32 = arith.constant 0 : i32
    %c0_i32_0 = arith.constant 0 : i32
    %c0_i32_1 = arith.constant 0 : i32
    return %c0_i32, %c0_i32_0 : i32, i32
  }
  func.func @transform_5(%arg0: i32) -> (i32, i32) {
    %c0_i32 = arith.constant 0 : i32
    %c0_i32_0 = arith.constant 0 : i32
    %c0_i32_1 = arith.constant 0 : i32
    return %c0_i32, %c0_i32_0 : i32, i32
  }
  func.func @transform_6(%arg0: i32) -> (i32, i32) {
    %c0_i32 = arith.constant 0 : i32
    %c0_i32_0 = arith.constant 0 : i32
    %c0_i32_1 = arith.constant 0 : i32
    return %c0_i32, %c0_i32_0 : i32, i32
  }
  func.func @transform_7(%arg0: i32) -> (i32, i32) {
    %c0_i32 = arith.constant 0 : i32
    %c0_i32_0 = arith.constant 0 : i32
    %c0_i32_1 = arith.constant 0 : i32
    return %c0_i32, %c0_i32_0 : i32, i32
  }
  func.func @transform_8(%arg0: i32) -> (i32, i32) {
    %c0_i32 = arith.constant 0 : i32
    %c0_i32_0 = arith.constant 0 : i32
    %c0_i32_1 = arith.constant 0 : i32
    return %c0_i32, %c0_i32_0 : i32, i32
  }
  func.func @transform_9(%arg0: i32) -> (i32, i32) {
    %c0_i32 = arith.constant 0 : i32
    %c0_i32_0 = arith.constant 0 : i32
    %c0_i32_1 = arith.constant 0 : i32
    return %c0_i32, %c0_i32_0 : i32, i32
  }
  func.func @transform_10(%arg0: i32) -> (i32, i32) {
    %c0_i32 = arith.constant 0 : i32
    %c0_i32_0 = arith.constant 0 : i32
    %c0_i32_1 = arith.constant 0 : i32
    return %c0_i32, %c0_i32_0 : i32, i32
  }
  func.func @transform_11(%arg0: i32) -> (i32, i32) {
    %c0_i32 = arith.constant 0 : i32
    %c0_i32_0 = arith.constant 0 : i32
    %c0_i32_1 = arith.constant 0 : i32
    return %c0_i32, %c0_i32_0 : i32, i32
  }
  func.func @transform_12(%arg0: i32) -> (i32, i32) {
    %c0_i32 = arith.constant 0 : i32
    %c0_i32_0 = arith.constant 0 : i32
    %c0_i32_1 = arith.constant 0 : i32
    return %c0_i32, %c0_i32_0 : i32, i32
  }
  func.func @transform_13(%arg0: i32) -> (i32, i32) {
    %c0_i32 = arith.constant 0 : i32
    %c0_i32_0 = arith.constant 0 : i32
    %c0_i32_1 = arith.constant 0 : i32
    return %c0_i32, %c0_i32_0 : i32, i32
  }
  func.func @transform_14(%arg0: i32) -> (i32, i32, i32) {
    %c0_i32 = arith.constant 0 : i32
    %c0_i32_0 = arith.constant 0 : i32
    %c0_i32_1 = arith.constant 0 : i32
    return %arg0, %c0_i32, %c0_i32_0 : i32, i32, i32
  }
  func.func @transform_15(%arg0: i32) -> (i32, i32, i32) {
    %c0_i32 = arith.constant 0 : i32
    %c0_i32_0 = arith.constant 0 : i32
    %c0_i32_1 = arith.constant 0 : i32
    return %arg0, %c0_i32, %c0_i32_0 : i32, i32, i32
  }
}

module attributes {stable_mosaic.version = 11 : i64} {
  func.func @_heads_xent_kernel(%arg0: i32, %arg1: memref<2x32xbf16, #tpu.memory_space<vmem>>, %arg2: memref<32x128xbf16, #tpu.memory_space<vmem>>, %arg3: memref<1x128xf32, #tpu.memory_space<vmem>>, %arg4: memref<2x2xi32, #tpu.memory_space<vmem>>, %arg5: memref<2x128xf32, #tpu.memory_space<vmem>>, %arg6: memref<1x1xf32, #tpu.memory_space<vmem>>) attributes {dimension_semantics = [#tpu.dimension_semantics<arbitrary>], iteration_bounds = array<i64: 1>, scalar_prefetch = 0 : i64, scratch_operands = 0 : i64, tpu.core_type = #tpu.core_type<tc>, window_params = [{pipeline_mode = #tpu.pipeline_mode<synchronous>, transform_indices = @transform_0, window_bounds = array<i64: 2, 32>}, {pipeline_mode = #tpu.pipeline_mode<synchronous>, transform_indices = @transform_1, window_bounds = array<i64: 32, 128>}, {pipeline_mode = #tpu.pipeline_mode<synchronous>, transform_indices = @transform_2, window_bounds = array<i64: 1, 128>}, {pipeline_mode = #tpu.pipeline_mode<synchronous>, transform_indices = @transform_3, window_bounds = array<i64: 2, 2>}, {pipeline_mode = #tpu.pipeline_mode<synchronous>, transform_indices = @transform_4, window_bounds = array<i64: 2, 128>}, {pipeline_mode = #tpu.pipeline_mode<synchronous>, transform_indices = @transform_5, window_bounds = array<i64: 1, 1>}]} {
    %c0 = arith.constant 0 : index
    %c0_0 = arith.constant 0 : index
    %0 = vector.load %arg1[%c0, %c0_0] : memref<2x32xbf16, #tpu.memory_space<vmem>>, vector<2x32xbf16>
    %c0_1 = arith.constant 0 : index
    %c0_2 = arith.constant 0 : index
    %1 = vector.load %arg2[%c0_1, %c0_2] : memref<32x128xbf16, #tpu.memory_space<vmem>>, vector<32x128xbf16>
    %cst = arith.constant dense<0.000000e+00> : vector<2x128xf32>
    %2 = tpu.matmul %0, %1, %cst {dimension_numbers = #tpu.dot_dimension_numbers<[1], [0], [0], [1], [0, 0, 1, 1], [], []>} : vector<2x32xbf16>, vector<32x128xbf16>, vector<2x128xf32> -> vector<2x128xf32>
    %c0_3 = arith.constant 0 : index
    %c0_4 = arith.constant 0 : index
    %3 = vector.load %arg3[%c0_3, %c0_4] : memref<1x128xf32, #tpu.memory_space<vmem>>, vector<1x128xf32>
    %4 = vector.broadcast %3 : vector<1x128xf32> to vector<2x128xf32>
    %5 = arith.addf %2, %4 : vector<2x128xf32>
    %c0_5 = arith.constant 0 : index
    %c0_6 = arith.constant 0 : index
    %6 = vector.load %arg5[%c0_5, %c0_6] : memref<2x128xf32, #tpu.memory_space<vmem>>, vector<2x128xf32>
    tpu.vector_store %arg5[%c0_5, %c0_6], %5 {strides = array<i32>} : memref<2x128xf32, #tpu.memory_space<vmem>>, vector<2x128xf32>,
    %7 = tpu.iota {dimensions = array<i32: 1>} : vector<2x128xi32>
    %cst_7 = arith.constant 0.000000e+00 : f32
    %8 = vector.broadcast %cst_7 : f32 to vector<2x1xf32>
    %c0_i32 = arith.constant 0 : i32
    %9 = vector.broadcast %c0_i32 : i32 to vector<2x128xi32>
    %10 = arith.cmpi sge, %7, %9 : vector<2x128xi32>
    %c3_i32 = arith.constant 3 : i32
    %11 = vector.broadcast %c3_i32 : i32 to vector<2x128xi32>
    %12 = arith.cmpi slt, %7, %11 : vector<2x128xi32>
    %13 = arith.andi %10, %12 : vector<2x128xi1>
    %cst_8 = arith.constant -1.000000e+30 : f32
    %14 = vector.broadcast %cst_8 : f32 to vector<2x128xf32>
    %15 = arith.select %13, %5, %14 : vector<2x128xi1>, vector<2x128xf32>
    %cst_9 = arith.constant dense<0xFF800000> : vector<2xf32>
    %16 = vector.multi_reduction <maximumf>, %15, %cst_9 [1] : vector<2x128xf32> to vector<2xf32>
    %17 = vector.shape_cast %16 : vector<2xf32> to vector<2x1xf32>
    %18 = vector.broadcast %17 : vector<2x1xf32> to vector<2x128xf32>
    %19 = arith.subf %15, %18 : vector<2x128xf32>
    %20 = math.exp %19 : vector<2x128xf32>
    %cst_10 = arith.constant dense<0.000000e+00> : vector<2xf32>
    %21 = vector.multi_reduction <add>, %20, %cst_10 [1] : vector<2x128xf32> to vector<2xf32>
    %22 = vector.shape_cast %21 : vector<2xf32> to vector<2x1xf32>
    %23 = math.log %22 : vector<2x1xf32>
    %24 = arith.addf %23, %17 : vector<2x1xf32>
    %c0_11 = arith.constant 0 : index
    %c0_12 = arith.constant 0 : index
    %25 = vector.load %arg4[%c0_11, %c0_12] : memref<2x2xi32, #tpu.memory_space<vmem>>, vector<2x1xi32>
    %c0_i32_13 = arith.constant 0 : i32
    %26 = vector.broadcast %c0_i32_13 : i32 to vector<2x1xi32>
    %27 = arith.addi %26, %25 : vector<2x1xi32>
    %28 = vector.broadcast %27 : vector<2x1xi32> to vector<2x128xi32>
    %29 = arith.cmpi eq, %7, %28 : vector<2x128xi32>
    %cst_14 = arith.constant 0.000000e+00 : f32
    %30 = vector.broadcast %cst_14 : f32 to vector<2x128xf32>
    %31 = arith.select %29, %5, %30 : vector<2x128xi1>, vector<2x128xf32>
    %cst_15 = arith.constant dense<0.000000e+00> : vector<2xf32>
    %32 = vector.multi_reduction <add>, %31, %cst_15 [1] : vector<2x128xf32> to vector<2xf32>
    %33 = vector.shape_cast %32 : vector<2xf32> to vector<2x1xf32>
    %34 = arith.subf %24, %33 : vector<2x1xf32>
    %35 = arith.addf %8, %34 : vector<2x1xf32>
    %c3_i32_16 = arith.constant 3 : i32
    %36 = vector.broadcast %c3_i32_16 : i32 to vector<2x128xi32>
    %37 = arith.cmpi sge, %7, %36 : vector<2x128xi32>
    %c8_i32 = arith.constant 8 : i32
    %38 = vector.broadcast %c8_i32 : i32 to vector<2x128xi32>
    %39 = arith.cmpi slt, %7, %38 : vector<2x128xi32>
    %40 = arith.andi %37, %39 : vector<2x128xi1>
    %cst_17 = arith.constant -1.000000e+30 : f32
    %41 = vector.broadcast %cst_17 : f32 to vector<2x128xf32>
    %42 = arith.select %40, %5, %41 : vector<2x128xi1>, vector<2x128xf32>
    %cst_18 = arith.constant dense<0xFF800000> : vector<2xf32>
    %43 = vector.multi_reduction <maximumf>, %42, %cst_18 [1] : vector<2x128xf32> to vector<2xf32>
    %44 = vector.shape_cast %43 : vector<2xf32> to vector<2x1xf32>
    %45 = vector.broadcast %44 : vector<2x1xf32> to vector<2x128xf32>
    %46 = arith.subf %42, %45 : vector<2x128xf32>
    %47 = math.exp %46 : vector<2x128xf32>
    %cst_19 = arith.constant dense<0.000000e+00> : vector<2xf32>
    %48 = vector.multi_reduction <add>, %47, %cst_19 [1] : vector<2x128xf32> to vector<2xf32>
    %49 = vector.shape_cast %48 : vector<2xf32> to vector<2x1xf32>
    %50 = math.log %49 : vector<2x1xf32>
    %51 = arith.addf %50, %44 : vector<2x1xf32>
    %c0_20 = arith.constant 0 : index
    %c1 = arith.constant 1 : index
    %52 = vector.load %arg4[%c0_20, %c1] : memref<2x2xi32, #tpu.memory_space<vmem>>, vector<2x1xi32>
    %c3_i32_21 = arith.constant 3 : i32
    %53 = vector.broadcast %c3_i32_21 : i32 to vector<2x1xi32>
    %54 = arith.addi %53, %52 : vector<2x1xi32>
    %55 = vector.broadcast %54 : vector<2x1xi32> to vector<2x128xi32>
    %56 = arith.cmpi eq, %7, %55 : vector<2x128xi32>
    %cst_22 = arith.constant 0.000000e+00 : f32
    %57 = vector.broadcast %cst_22 : f32 to vector<2x128xf32>
    %58 = arith.select %56, %5, %57 : vector<2x128xi1>, vector<2x128xf32>
    %cst_23 = arith.constant dense<0.000000e+00> : vector<2xf32>
    %59 = vector.multi_reduction <add>, %58, %cst_23 [1] : vector<2x128xf32> to vector<2xf32>
    %60 = vector.shape_cast %59 : vector<2xf32> to vector<2x1xf32>
    %61 = arith.subf %51, %60 : vector<2x1xf32>
    %62 = arith.addf %35, %61 : vector<2x1xf32>
    %cst_24 = arith.constant dense<0.000000e+00> : vector<1xf32>
    %63 = vector.multi_reduction <add>, %62, %cst_24 [0] : vector<2x1xf32> to vector<1xf32>
    %64 = vector.shape_cast %63 : vector<1xf32> to vector<1x1xf32>
    %cst_25 = arith.constant 5.000000e-01 : f32
    %65 = vector.broadcast %cst_25 : f32 to vector<1x1xf32>
    %66 = arith.mulf %64, %65 : vector<1x1xf32>
    %c0_26 = arith.constant 0 : index
    %c0_27 = arith.constant 0 : index
    %67 = vector.load %arg6[%c0_26, %c0_27] : memref<1x1xf32, #tpu.memory_space<vmem>>, vector<1x1xf32>
    tpu.vector_store %arg6[%c0_26, %c0_27], %66 {strides = array<i32>} : memref<1x1xf32, #tpu.memory_space<vmem>>, vector<1x1xf32>,
    return
  }
  func.func @transform_0(%arg0: i32) -> (i32, i32) {
    %c0_i32 = arith.constant 0 : i32
    %c0_i32_0 = arith.constant 0 : i32
    %c0_i32_1 = arith.constant 0 : i32
    return %c0_i32, %c0_i32_0 : i32, i32
  }
  func.func @transform_1(%arg0: i32) -> (i32, i32) {
    %c0_i32 = arith.constant 0 : i32
    %c0_i32_0 = arith.constant 0 : i32
    %c0_i32_1 = arith.constant 0 : i32
    return %c0_i32, %c0_i32_0 : i32, i32
  }
  func.func @transform_2(%arg0: i32) -> (i32, i32) {
    %c0_i32 = arith.constant 0 : i32
    %c0_i32_0 = arith.constant 0 : i32
    %c0_i32_1 = arith.constant 0 : i32
    return %c0_i32, %c0_i32_0 : i32, i32
  }
  func.func @transform_3(%arg0: i32) -> (i32, i32) {
    %c0_i32 = arith.constant 0 : i32
    %c0_i32_0 = arith.constant 0 : i32
    %c0_i32_1 = arith.constant 0 : i32
    return %c0_i32, %c0_i32_0 : i32, i32
  }
  func.func @transform_4(%arg0: i32) -> (i32, i32) {
    %c0_i32 = arith.constant 0 : i32
    %c0_i32_0 = arith.constant 0 : i32
    %c0_i32_1 = arith.constant 0 : i32
    return %c0_i32, %c0_i32_0 : i32, i32
  }
  func.func @transform_5(%arg0: i32) -> (i32, i32) {
    %c0_i32 = arith.constant 0 : i32
    %c0_i32_0 = arith.constant 0 : i32
    %c0_i32_1 = arith.constant 0 : i32
    return %c0_i32, %c0_i32_0 : i32, i32
  }
}

</mosaic_0001>

<llo_original>
// kernel: _lambda_.4
$region0: #{_lambda_.4}
  #allocation0 [shape = 'u32[]', space=smem, size = 0x4, offset = 0x4, fixed_abs, tag = 'smem constant byte address 0x4 - core index']
  #allocation1 [shape = 'u32[144,128]{1,0:T(1,128)}', space=vmem, size = 0x12000, scoped, tag = 'internal scratch']
  #allocation2 [shape = 'f32[8,32]{1,0:T(8,128)}', space=vmem, size = 0x1000, scoped, tag = 'scratch operand']
  #allocation3 [shape = 's32[8]{0}', space=sflag, size = 0x20, scoped, tag = 'scratch operand']
  #allocation4 [shape = 's32[1]{0}', space=sflag, size = 0x4, scoped, tag = 'scoped memory for _lambda_.4']
  #allocation5 [shape = 'u8[1024]{0}', space=smem, size = 0x400, scoped, tag = 'prefetched SMEM operand 0']
  #allocation6 [shape = 's32[]', space=sflag, size = 0x4, offset = 0, fixed_abs, tag = 'sflag constant byte address 0x0 - dummy sync flag']
  #allocation7 [shape = 's32[]', space=sflag, size = 0x4, offset = 0, fixed_abs, tag = 'sflag constant byte address 0x0 - dummy sync flag']
  #allocation8 [shape = 's32[]', space=sflag, size = 0x4, offset = 0, fixed_abs, tag = 'sflag constant byte address 0x0 - dummy sync flag']
  #allocation9 [shape = 's32[]', space=sflag, size = 0x4, offset = 0, fixed_abs, tag = 'sflag constant byte address 0x0 - dummy sync flag']
  #allocation10 [shape = 's32[]', space=sflag, size = 0x4, offset = 0, fixed_abs, tag = 'sflag constant byte address 0x0 - dummy sync flag']
  #allocation11 [shape = 's32[]', space=sflag, size = 0x4, offset = 0, fixed_abs, tag = 'sflag constant byte address 0x0 - dummy sync flag']
  #allocation12 [shape = 's32[]', space=sflag, size = 0x4, offset = 0, fixed_abs, tag = 'sflag constant byte address 0x0 - dummy sync flag']
  #allocation13 [shape = 's32[]', space=sflag, size = 0x4, offset = 0, fixed_abs, tag = 'sflag constant byte address 0x0 - dummy sync flag']
  %s0 = inlined_call_operand.vmem [shape: s32[2,8], index: 0, kind: input, shape index: {}]
  %s1 = inlined_call_operand.vmem [shape: f32[8,32], index: 1, kind: input, shape index: {}]
  %s2 = inlined_call_operand.vmem [shape: f32[1,32], index: 2, kind: input, shape index: {}]
  %s3 = inlined_call_operand.vmem [shape: f32[1,32], index: 3, kind: input, shape index: {}]
  %s4 = inlined_call_operand.vmem [shape: f32[50,32], index: 4, kind: input, shape index: {}]
  %s5 = inlined_call_operand.vmem [shape: bf16[2,8,32], index: 5, kind: output, shape index: {}]
  %s6 = sld [smem:[#allocation0]]
  $region285: #{_lambda_.4} parent=0
    _
  %s8 = ssub.s32 1, %s6
  %s9 = scalar_select 0, %s8, %s6
  %s10 = sshll.u32 %s0, 4
  %s11 = int_to_ptr.vmem [resolvable:$true] %s10
  %13 = dma.vmem_to_smem %s11, 32, [#allocation5], [#allocation4]
  %14 = dma.done [#allocation4], 32
  %15 = sfence
  loop: start=0, step=1, limit=4
  $region2: #{_lambda_.4} parent=0 // loop_pre_header
    _
  $region3: #{_lambda_.4} parent=0 // loop_header
    %s17 = sphi 0, %s21
    %p18 = scmp.ge.s32.totalorder %s17, 4
    %s25 = sphi 0, %s25
    %s27 = sphi 0, %s25
    %s28 = sphi 0, %s27
    %s42 = sphi 0, %s28
    %s46 = sphi 0, %s46
    %s48 = sphi 0, %s46
    %s49 = sphi 0, %s48
    %s63 = sphi 0, %s49
    %s67 = sphi 0, %s67
    %s69 = sphi 0, %s67
    %s70 = sphi 0, %s69
    %s84 = sphi 0, %s70
    %s90 = sphi 0, %s92
    %s93 = sphi 0, %s90
    %s94 = sphi 0, %s93
    %s110 = sphi 0, %s94
  $region4: #{_lambda_.4} parent=0 // loop_header_branch
    %20 = sbr.rel (%p18) target = $region8
  $region5: #{_lambda_.4} parent=0 // loop_body
    %s22 = ssub.s32 %s17, 1
    %s23 = ssub.s32 %s17, 2
    %s24 = sadd.s32 %s17, 1
    %s26 = sadd.s32 %s25, 1
    %p29 = scmp.eq.s32.totalorder %s17, 1
    %p30 = scmp.ne.s32.totalorder %s25, %s27
    %p31 = scmp.eq.s32.totalorder %s17, 0
    %p32 = por %p30, %p31
    %p33 = scmp.ne.s32.totalorder %s25, %s27
    %p34 = scmp.eq.s32.totalorder %s22, 1
    %p35 = por %p33, %p34
    %p36 = scmp.ne.s32.totalorder %s27, %s28
    %p37 = scmp.eq.s32.totalorder %s22, 0
    %p38 = por %p36, %p37
    %p39 = scmp.ne.s32.totalorder %s27, %s28
    %p40 = scmp.eq.s32.totalorder %s23, 1
    %p41 = por %p39, %p40
    %p43 = scmp.ne.s32.totalorder %s28, %s42
    %p44 = scmp.eq.s32.totalorder %s23, 0
    %p45 = por %p43, %p44
    %s47 = sadd.s32 %s46, 1
    %p50 = scmp.eq.s32.totalorder %s17, 1
    %p51 = scmp.ne.s32.totalorder %s46, %s48
    %p52 = scmp.eq.s32.totalorder %s17, 0
    %p53 = por %p51, %p52
    %p54 = scmp.ne.s32.totalorder %s46, %s48
    %p55 = scmp.eq.s32.totalorder %s22, 1
    %p56 = por %p54, %p55
    %p57 = scmp.ne.s32.totalorder %s48, %s49
    %p58 = scmp.eq.s32.totalorder %s22, 0
    %p59 = por %p57, %p58
    %p60 = scmp.ne.s32.totalorder %s48, %s49
    %p61 = scmp.eq.s32.totalorder %s23, 1
    %p62 = por %p60, %p61
    %p64 = scmp.ne.s32.totalorder %s49, %s63
    %p65 = scmp.eq.s32.totalorder %s23, 0
    %p66 = por %p64, %p65
    %s68 = sadd.s32 %s67, 1
    %p71 = scmp.eq.s32.totalorder %s17, 1
    %p72 = scmp.ne.s32.totalorder %s67, %s69
    %p73 = scmp.eq.s32.totalorder %s17, 0
    %p74 = por %p72, %p73
    %p75 = scmp.ne.s32.totalorder %s67, %s69
    %p76 = scmp.eq.s32.totalorder %s22, 1
    %p77 = por %p75, %p76
    %p78 = scmp.ne.s32.totalorder %s69, %s70
    %p79 = scmp.eq.s32.totalorder %s22, 0
    %p80 = por %p78, %p79
    %p81 = scmp.ne.s32.totalorder %s69, %s70
    %p82 = scmp.eq.s32.totalorder %s23, 1
    %p83 = por %p81, %p82
    %p85 = scmp.ne.s32.totalorder %s70, %s84
    %p86 = scmp.eq.s32.totalorder %s23, 0
    %p87 = por %p85, %p86
    %s88 = ssub.s32 %s17, %s24
    %p89 = scmp.eq.s32.totalorder %s88, 0
    %s91 = sadd.s32 %s90, 1
    %s92 = scalar_select %p89, %s90, %s91
    %p95 = pneg %p89
    %p96 = scmp.eq.s32.totalorder %s17, 1
    %p97 = por %p95, %p96
    %p98 = scmp.ne.s32.totalorder %s90, %s93
    %p99 = scmp.eq.s32.totalorder %s17, 0
    %p100 = por %p98, %p99
    %p101 = scmp.ne.s32.totalorder %s90, %s93
    %p102 = scmp.eq.s32.totalorder %s22, 1
    %p103 = por %p101, %p102
    %p104 = scmp.ne.s32.totalorder %s93, %s94
    %p105 = scmp.eq.s32.totalorder %s22, 0
    %p106 = por %p104, %p105
    %p107 = scmp.ne.s32.totalorder %s93, %s94
    %p108 = scmp.eq.s32.totalorder %s23, 1
    %p109 = por %p107, %p108
    %p111 = scmp.ne.s32.totalorder %s94, %s110
    %p112 = scmp.eq.s32.totalorder %s23, 0
    %p113 = por %p111, %p112
    %p114 = scmp.le.s32.totalorder 1, %s17
    %p115 = scmp.lt.s32.totalorder %s17, 3
    %p116 = pnand %p114, %p115
    %p117 = pneg %p116
    // Predicated region
    $region9: #{_lambda_.4} parent=5 // pred_check
      _
    $region10: #{_lambda_.4} parent=5 // pred_check_branch
      %119 = sbr.rel (%p116) target = $region12
    $region11: #{_lambda_.4} parent=5 // pred_region
      %s120 = ssub.s32 %s17, 1
      // Predicated region
      $region13: #{_lambda_.4} parent=11 // pred_check
        %p121 = pneg %p38
      $region14: #{_lambda_.4} parent=11 // pred_check_branch
        %123 = sbr.rel (%p121) target = $region16
      $region15: #{_lambda_.4} parent=11 // pred_region
        _
      $region16: #{_lambda_.4} parent=11 // pred_fallthru
        _
      // Predicated region
      $region17: #{_lambda_.4} parent=11 // pred_check
        %p124 = pneg %p59
      $region18: #{_lambda_.4} parent=11 // pred_check_branch
        %126 = sbr.rel (%p124) target = $region20
      $region19: #{_lambda_.4} parent=11 // pred_region
        _
      $region20: #{_lambda_.4} parent=11 // pred_fallthru
        _
      // Predicated region
      $region21: #{_lambda_.4} parent=11 // pred_check
        %p127 = pneg %p80
      $region22: #{_lambda_.4} parent=11 // pred_check_branch
        %129 = sbr.rel (%p127) target = $region24
      $region23: #{_lambda_.4} parent=11 // pred_region
        _
      $region24: #{_lambda_.4} parent=11 // pred_fallthru
        _
    $region12: #{_lambda_.4} parent=5 // pred_fallthru
      _
    %p130 = scmp.lt.s32.totalorder %s17, 2
    // Predicated region
    $region25: #{_lambda_.4} parent=5 // pred_check
      %p131 = pneg %p130
    $region26: #{_lambda_.4} parent=5 // pred_check_branch
      %133 = sbr.rel (%p131) target = $region28
    $region27: #{_lambda_.4} parent=5 // pred_region
      _
    $region28: #{_lambda_.4} parent=5 // pred_fallthru
      _
    %p134 = scmp.le.s32.totalorder 1, %s17
    %p135 = scmp.lt.s32.totalorder %s17, 3
    %p136 = pnand %p134, %p135
    %p137 = pneg %p136
    // Predicated region
    $region29: #{_lambda_.4} parent=5 // pred_check
      _
    $region30: #{_lambda_.4} parent=5 // pred_check_branch
      %139 = sbr.rel (%p136) target = $region32
    $region31: #{_lambda_.4} parent=5 // pred_region
      %s140 = ssub.s32 %s17, 1
      %p141 = pneg %p38
      %p142 = pneg %p35
      %p143 = pneg %p59
      %p144 = pneg %p56
      %p145 = pneg %p80
      %p146 = pneg %p77
      %p147 = pneg %p106
      %p148 = pneg %p103
      %p149 = scmp.lt.s32.totalorder %s22, 1
      %s150 = scalar_select %p149, %s22, 1
      %s151 = smul.addr %s150, 4
      %s152 = scalar_lea.vmem %s5, %s151
      %p153 = scmp.lt.s32.totalorder %s22, 1
      %s154 = scalar_select %p153, %s22, 1
      %s155 = smul.addr %s154, 4
      %s156 = scalar_lea.vmem %s5, %s155
      %s157 = smul.u32 %s22, 128
      %s158 = sld [smem:[#allocation5 + %s157]]
      %s159 = scalar_lea.vmem %s4, %s158
      %p161 = scmp.lt.u32.totalorder 1, 8
      %p162 = pneg %p161
      // Predicated region
      $region33: #{_lambda_.4} parent=31 // pred_check
        _
      $region34: #{_lambda_.4} parent=31 // pred_check_branch
        %164 = sbr.rel (%p161) target = $region36
      $region35: #{_lambda_.4} parent=31 // pred_region
        %s179 = sand.u32 1, 7
        %p180 = scmp.eq.s32.totalorder %s179, 0
        %p181 = pneg %p180
        // Predicated region
        $region48: #{_lambda_.4} parent=35 // pred_check
          _
        $region49: #{_lambda_.4} parent=35 // pred_check_branch
          %183 = sbr.rel (%p180) target = $region51
        $region50: #{_lambda_.4} parent=35 // pred_region
          %s184 = sand.u32 1, 7
          %s185 = ssub.s32 1, %s184
          %s186 = scalar_lea.vmem %s159, %s185
          %s187 = ssub.s32 1, %s184
          %s188 = scalar_lea.vmem [#allocation2], %s187
          %s189 = sshllo.u32 0, %s184
          loop: start=0, step=1, limit=1
          $region52: #{_lambda_.4} parent=50 // loop_pre_header
            _
          $region53: #{_lambda_.4} parent=50 // loop_header
            %s191 = sphi 0, %s195
            %p192 = scmp.ge.s32.totalorder %s191, 1
            %s196 = sphi %s186, %s186
            %s197 = sphi %s188, %s188
          $region54: #{_lambda_.4} parent=50 // loop_header_branch
            %194 = sbr.rel (%p192) target = $region58
          $region55: #{_lambda_.4} parent=50 // loop_body
            %v198 = vld [vmem:[%s196] sm:%s189]
            %199 = vst [vmem:[%s197] sm:%s189] %v198
          $region56: #{_lambda_.4} parent=50 // loop_footer
            %s195 = sadd.s32 1, %s191
          $region57: #{_lambda_.4} parent=50 // loop_footer_branch
            %190 = sbr.rel target = $region53
          $region58: #{_lambda_.4} parent=50 // loop_exit
            _
        $region51: #{_lambda_.4} parent=35 // pred_fallthru
          _
      $region36: #{_lambda_.4} parent=31 // pred_fallthru
        _
      // Predicated region
      $region37: #{_lambda_.4} parent=31 // pred_check
        %p165 = pneg %p161
      $region38: #{_lambda_.4} parent=31 // pred_check_branch
        %167 = sbr.rel (%p165) target = $region40
      $region39: #{_lambda_.4} parent=31 // pred_region
        %s168 = sshllo.u32 0, 1
        loop: start=0, step=1, limit=1
        $region41: #{_lambda_.4} parent=39 // loop_pre_header
          _
        $region42: #{_lambda_.4} parent=39 // loop_header
          %s170 = sphi 0, %s174
          %p171 = scmp.ge.s32.totalorder %s170, 1
          %s175 = sphi %s159, %s159
          %s176 = sphi [#allocation2], [#allocation2]
        $region43: #{_lambda_.4} parent=39 // loop_header_branch
          %173 = sbr.rel (%p171) target = $region47
        $region44: #{_lambda_.4} parent=39 // loop_body
          %v177 = vld [vmem:[%s175] sm:%s168]
          %178 = vst [vmem:[%s176] sm:%s168] %v177
        $region45: #{_lambda_.4} parent=39 // loop_footer
          %s174 = sadd.s32 1, %s170
        $region46: #{_lambda_.4} parent=39 // loop_footer_branch
          %169 = sbr.rel target = $region42
        $region47: #{_lambda_.4} parent=39 // loop_exit
          _
      $region40: #{_lambda_.4} parent=31 // pred_fallthru
        _
      // Predicated region
      $region59: #{_lambda_.4} parent=31 // pred_check
        _
      $region60: #{_lambda_.4} parent=31 // pred_check_branch
        %202 = sbr.rel (0) target = $region62
      $region61: #{_lambda_.4} parent=31 // pred_region
        %203 = vsyncadd [#allocation3], 16
      $region62: #{_lambda_.4} parent=31 // pred_fallthru
        _
      %s204 = sadd.s32 %s157, 1
      %s205 = sld [smem:[#allocation5 + %s204]]
      %s206 = scalar_lea.vmem %s4, %s205
      %s207 = scalar_lea.vmem [#allocation2], 1
      %s208 = scalar_lea.sflag [#allocation3], 1
      %p210 = scmp.lt.u32.totalorder 1, 8
      %p211 = pneg %p210
      // Predicated region
      $region63: #{_lambda_.4} parent=31 // pred_check
        _
      $region64: #{_lambda_.4} parent=31 // pred_check_branch
        %213 = sbr.rel (%p210) target = $region66
      $region65: #{_lambda_.4} parent=31 // pred_region
        %s228 = sand.u32 1, 7
        %p229 = scmp.eq.s32.totalorder %s228, 0
        %p230 = pneg %p229
        // Predicated region
        $region78: #{_lambda_.4} parent=65 // pred_check
          _
        $region79: #{_lambda_.4} parent=65 // pred_check_branch
          %232 = sbr.rel (%p229) target = $region81
        $region80: #{_lambda_.4} parent=65 // pred_region
          %s233 = sand.u32 1, 7
          %s234 = ssub.s32 1, %s233
          %s235 = scalar_lea.vmem %s206, %s234
          %s236 = ssub.s32 1, %s233
          %s237 = scalar_lea.vmem %s207, %s236 [#allocation2]
          %s238 = sshllo.u32 0, %s233
          loop: start=0, step=1, limit=1
          $region82: #{_lambda_.4} parent=80 // loop_pre_header
            _
          $region83: #{_lambda_.4} parent=80 // loop_header
            %s240 = sphi 0, %s244
            %p241 = scmp.ge.s32.totalorder %s240, 1
            %s245 = sphi %s235, %s235
            %s246 = sphi %s237, %s237
          $region84: #{_lambda_.4} parent=80 // loop_header_branch
            %243 = sbr.rel (%p241) target = $region88
          $region85: #{_lambda_.4} parent=80 // loop_body
            %v247 = vld [vmem:[%s245] sm:%s238]
            %248 = vst [vmem:[%s246] sm:%s238] %v247
          $region86: #{_lambda_.4} parent=80 // loop_footer
            %s244 = sadd.s32 1, %s240
          $region87: #{_lambda_.4} parent=80 // loop_footer_branch
            %239 = sbr.rel target = $region83
          $region88: #{_lambda_.4} parent=80 // loop_exit
            _
        $region81: #{_lambda_.4} parent=65 // pred_fallthru
          _
      $region66: #{_lambda_.4} parent=31 // pred_fallthru
        _
      // Predicated region
      $region67: #{_lambda_.4} parent=31 // pred_check
        %p214 = pneg %p210
      $region68: #{_lambda_.4} parent=31 // pred_check_branch
        %216 = sbr.rel (%p214) target = $region70
      $region69: #{_lambda_.4} parent=31 // pred_region
        %s217 = sshllo.u32 0, 1
        loop: start=0, step=1, limit=1
        $region71: #{_lambda_.4} parent=69 // loop_pre_header
          _
        $region72: #{_lambda_.4} parent=69 // loop_header
          %s219 = sphi 0, %s223
          %p220 = scmp.ge.s32.totalorder %s219, 1
          %s224 = sphi %s206, %s206
          %s225 = sphi %s207, %s207
        $region73: #{_lambda_.4} parent=69 // loop_header_branch
          %222 = sbr.rel (%p220) target = $region77
        $region74: #{_lambda_.4} parent=69 // loop_body
          %v226 = vld [vmem:[%s224] sm:%s217]
          %227 = vst [vmem:[%s225] sm:%s217] %v226
        $region75: #{_lambda_.4} parent=69 // loop_footer
          %s223 = sadd.s32 1, %s219
        $region76: #{_lambda_.4} parent=69 // loop_footer_branch
          %218 = sbr.rel target = $region72
        $region77: #{_lambda_.4} parent=69 // loop_exit
          _
      $region70: #{_lambda_.4} parent=31 // pred_fallthru
        _
      // Predicated region
      $region89: #{_lambda_.4} parent=31 // pred_check
        _
      $region90: #{_lambda_.4} parent=31 // pred_check_branch
        %251 = sbr.rel (0) target = $region92
      $region91: #{_lambda_.4} parent=31 // pred_region
        %252 = vsyncadd %s208, 16
      $region92: #{_lambda_.4} parent=31 // pred_fallthru
        _
      %s253 = sadd.s32 %s157, 2
      %s254 = sld [smem:[#allocation5 + %s253]]
      %s255 = scalar_lea.vmem %s4, %s254
      %s256 = scalar_lea.vmem [#allocation2], 2
      %s257 = scalar_lea.sflag [#allocation3], 2
      %p259 = scmp.lt.u32.totalorder 1, 8
      %p260 = pneg %p259
      // Predicated region
      $region93: #{_lambda_.4} parent=31 // pred_check
        _
      $region94: #{_lambda_.4} parent=31 // pred_check_branch
        %262 = sbr.rel (%p259) target = $region96
      $region95: #{_lambda_.4} parent=31 // pred_region
        %s277 = sand.u32 1, 7
        %p278 = scmp.eq.s32.totalorder %s277, 0
        %p279 = pneg %p278
        // Predicated region
        $region108: #{_lambda_.4} parent=95 // pred_check
          _
        $region109: #{_lambda_.4} parent=95 // pred_check_branch
          %281 = sbr.rel (%p278) target = $region111
        $region110: #{_lambda_.4} parent=95 // pred_region
          %s282 = sand.u32 1, 7
          %s283 = ssub.s32 1, %s282
          %s284 = scalar_lea.vmem %s255, %s283
          %s285 = ssub.s32 1, %s282
          %s286 = scalar_lea.vmem %s256, %s285 [#allocation2]
          %s287 = sshllo.u32 0, %s282
          loop: start=0, step=1, limit=1
          $region112: #{_lambda_.4} parent=110 // loop_pre_header
            _
          $region113: #{_lambda_.4} parent=110 // loop_header
            %s289 = sphi 0, %s293
            %p290 = scmp.ge.s32.totalorder %s289, 1
            %s294 = sphi %s284, %s284
            %s295 = sphi %s286, %s286
          $region114: #{_lambda_.4} parent=110 // loop_header_branch
            %292 = sbr.rel (%p290) target = $region118
          $region115: #{_lambda_.4} parent=110 // loop_body
            %v296 = vld [vmem:[%s294] sm:%s287]
            %297 = vst [vmem:[%s295] sm:%s287] %v296
          $region116: #{_lambda_.4} parent=110 // loop_footer
            %s293 = sadd.s32 1, %s289
          $region117: #{_lambda_.4} parent=110 // loop_footer_branch
            %288 = sbr.rel target = $region113
          $region118: #{_lambda_.4} parent=110 // loop_exit
            _
        $region111: #{_lambda_.4} parent=95 // pred_fallthru
          _
      $region96: #{_lambda_.4} parent=31 // pred_fallthru
        _
      // Predicated region
      $region97: #{_lambda_.4} parent=31 // pred_check
        %p263 = pneg %p259
      $region98: #{_lambda_.4} parent=31 // pred_check_branch
        %265 = sbr.rel (%p263) target = $region100
      $region99: #{_lambda_.4} parent=31 // pred_region
        %s266 = sshllo.u32 0, 1
        loop: start=0, step=1, limit=1
        $region101: #{_lambda_.4} parent=99 // loop_pre_header
          _
        $region102: #{_lambda_.4} parent=99 // loop_header
          %s268 = sphi 0, %s272
          %p269 = scmp.ge.s32.totalorder %s268, 1
          %s273 = sphi %s255, %s255
          %s274 = sphi %s256, %s256
        $region103: #{_lambda_.4} parent=99 // loop_header_branch
          %271 = sbr.rel (%p269) target = $region107
        $region104: #{_lambda_.4} parent=99 // loop_body
          %v275 = vld [vmem:[%s273] sm:%s266]
          %276 = vst [vmem:[%s274] sm:%s266] %v275
        $region105: #{_lambda_.4} parent=99 // loop_footer
          %s272 = sadd.s32 1, %s268
        $region106: #{_lambda_.4} parent=99 // loop_footer_branch
          %267 = sbr.rel target = $region102
        $region107: #{_lambda_.4} parent=99 // loop_exit
          _
      $region100: #{_lambda_.4} parent=31 // pred_fallthru
        _
      // Predicated region
      $region119: #{_lambda_.4} parent=31 // pred_check
        _
      $region120: #{_lambda_.4} parent=31 // pred_check_branch
        %300 = sbr.rel (0) target = $region122
      $region121: #{_lambda_.4} parent=31 // pred_region
        %301 = vsyncadd %s257, 16
      $region122: #{_lambda_.4} parent=31 // pred_fallthru
        _
      %s302 = sadd.s32 %s157, 3
      %s303 = sld [smem:[#allocation5 + %s302]]
      %s304 = scalar_lea.vmem %s4, %s303
      %s305 = scalar_lea.vmem [#allocation2], 3
      %s306 = scalar_lea.sflag [#allocation3], 3
      %p308 = scmp.lt.u32.totalorder 1, 8
      %p309 = pneg %p308
      // Predicated region
      $region123: #{_lambda_.4} parent=31 // pred_check
        _
      $region124: #{_lambda_.4} parent=31 // pred_check_branch
        %311 = sbr.rel (%p308) target = $region126
      $region125: #{_lambda_.4} parent=31 // pred_region
        %s326 = sand.u32 1, 7
        %p327 = scmp.eq.s32.totalorder %s326, 0
        %p328 = pneg %p327
        // Predicated region
        $region138: #{_lambda_.4} parent=125 // pred_check
          _
        $region139: #{_lambda_.4} parent=125 // pred_check_branch
          %330 = sbr.rel (%p327) target = $region141
        $region140: #{_lambda_.4} parent=125 // pred_region
          %s331 = sand.u32 1, 7
          %s332 = ssub.s32 1, %s331
          %s333 = scalar_lea.vmem %s304, %s332
          %s334 = ssub.s32 1, %s331
          %s335 = scalar_lea.vmem %s305, %s334 [#allocation2]
          %s336 = sshllo.u32 0, %s331
          loop: start=0, step=1, limit=1
          $region142: #{_lambda_.4} parent=140 // loop_pre_header
            _
          $region143: #{_lambda_.4} parent=140 // loop_header
            %s338 = sphi 0, %s342
            %p339 = scmp.ge.s32.totalorder %s338, 1
            %s343 = sphi %s333, %s333
            %s344 = sphi %s335, %s335
          $region144: #{_lambda_.4} parent=140 // loop_header_branch
            %341 = sbr.rel (%p339) target = $region148
          $region145: #{_lambda_.4} parent=140 // loop_body
            %v345 = vld [vmem:[%s343] sm:%s336]
            %346 = vst [vmem:[%s344] sm:%s336] %v345
          $region146: #{_lambda_.4} parent=140 // loop_footer
            %s342 = sadd.s32 1, %s338
          $region147: #{_lambda_.4} parent=140 // loop_footer_branch
            %337 = sbr.rel target = $region143
          $region148: #{_lambda_.4} parent=140 // loop_exit
            _
        $region141: #{_lambda_.4} parent=125 // pred_fallthru
          _
      $region126: #{_lambda_.4} parent=31 // pred_fallthru
        _
      // Predicated region
      $region127: #{_lambda_.4} parent=31 // pred_check
        %p312 = pneg %p308
      $region128: #{_lambda_.4} parent=31 // pred_check_branch
        %314 = sbr.rel (%p312) target = $region130
      $region129: #{_lambda_.4} parent=31 // pred_region
        %s315 = sshllo.u32 0, 1
        loop: start=0, step=1, limit=1
        $region131: #{_lambda_.4} parent=129 // loop_pre_header
          _
        $region132: #{_lambda_.4} parent=129 // loop_header
          %s317 = sphi 0, %s321
          %p318 = scmp.ge.s32.totalorder %s317, 1
          %s322 = sphi %s304, %s304
          %s323 = sphi %s305, %s305
        $region133: #{_lambda_.4} parent=129 // loop_header_branch
          %320 = sbr.rel (%p318) target = $region137
        $region134: #{_lambda_.4} parent=129 // loop_body
          %v324 = vld [vmem:[%s322] sm:%s315]
          %325 = vst [vmem:[%s323] sm:%s315] %v324
        $region135: #{_lambda_.4} parent=129 // loop_footer
          %s321 = sadd.s32 1, %s317
        $region136: #{_lambda_.4} parent=129 // loop_footer_branch
          %316 = sbr.rel target = $region132
        $region137: #{_lambda_.4} parent=129 // loop_exit
          _
      $region130: #{_lambda_.4} parent=31 // pred_fallthru
        _
      // Predicated region
      $region149: #{_lambda_.4} parent=31 // pred_check
        _
      $region150: #{_lambda_.4} parent=31 // pred_check_branch
        %349 = sbr.rel (0) target = $region152
      $region151: #{_lambda_.4} parent=31 // pred_region
        %350 = vsyncadd %s306, 16
      $region152: #{_lambda_.4} parent=31 // pred_fallthru
        _
      %s351 = sadd.s32 %s157, 4
      %s352 = sld [smem:[#allocation5 + %s351]]
      %s353 = scalar_lea.vmem %s4, %s352
      %s354 = scalar_lea.vmem [#allocation2], 4
      %s355 = scalar_lea.sflag [#allocation3], 4
      %p357 = scmp.lt.u32.totalorder 1, 8
      %p358 = pneg %p357
      // Predicated region
      $region153: #{_lambda_.4} parent=31 // pred_check
        _
      $region154: #{_lambda_.4} parent=31 // pred_check_branch
        %360 = sbr.rel (%p357) target = $region156
      $region155: #{_lambda_.4} parent=31 // pred_region
        %s375 = sand.u32 1, 7
        %p376 = scmp.eq.s32.totalorder %s375, 0
        %p377 = pneg %p376
        // Predicated region
        $region168: #{_lambda_.4} parent=155 // pred_check
          _
        $region169: #{_lambda_.4} parent=155 // pred_check_branch
          %379 = sbr.rel (%p376) target = $region171
        $region170: #{_lambda_.4} parent=155 // pred_region
          %s380 = sand.u32 1, 7
          %s381 = ssub.s32 1, %s380
          %s382 = scalar_lea.vmem %s353, %s381
          %s383 = ssub.s32 1, %s380
          %s384 = scalar_lea.vmem %s354, %s383 [#allocation2]
          %s385 = sshllo.u32 0, %s380
          loop: start=0, step=1, limit=1
          $region172: #{_lambda_.4} parent=170 // loop_pre_header
            _
          $region173: #{_lambda_.4} parent=170 // loop_header
            %s387 = sphi 0, %s391
            %p388 = scmp.ge.s32.totalorder %s387, 1
            %s392 = sphi %s382, %s382
            %s393 = sphi %s384, %s384
          $region174: #{_lambda_.4} parent=170 // loop_header_branch
            %390 = sbr.rel (%p388) target = $region178
          $region175: #{_lambda_.4} parent=170 // loop_body
            %v394 = vld [vmem:[%s392] sm:%s385]
            %395 = vst [vmem:[%s393] sm:%s385] %v394
          $region176: #{_lambda_.4} parent=170 // loop_footer
            %s391 = sadd.s32 1, %s387
          $region177: #{_lambda_.4} parent=170 // loop_footer_branch
            %386 = sbr.rel target = $region173
          $region178: #{_lambda_.4} parent=170 // loop_exit
            _
        $region171: #{_lambda_.4} parent=155 // pred_fallthru
          _
      $region156: #{_lambda_.4} parent=31 // pred_fallthru
        _
      // Predicated region
      $region157: #{_lambda_.4} parent=31 // pred_check
        %p361 = pneg %p357
      $region158: #{_lambda_.4} parent=31 // pred_check_branch
        %363 = sbr.rel (%p361) target = $region160
      $region159: #{_lambda_.4} parent=31 // pred_region
        %s364 = sshllo.u32 0, 1
        loop: start=0, step=1, limit=1
        $region161: #{_lambda_.4} parent=159 // loop_pre_header
          _
        $region162: #{_lambda_.4} parent=159 // loop_header
          %s366 = sphi 0, %s370
          %p367 = scmp.ge.s32.totalorder %s366, 1
          %s371 = sphi %s353, %s353
          %s372 = sphi %s354, %s354
        $region163: #{_lambda_.4} parent=159 // loop_header_branch
          %369 = sbr.rel (%p367) target = $region167
        $region164: #{_lambda_.4} parent=159 // loop_body
          %v373 = vld [vmem:[%s371] sm:%s364]
          %374 = vst [vmem:[%s372] sm:%s364] %v373
        $region165: #{_lambda_.4} parent=159 // loop_footer
          %s370 = sadd.s32 1, %s366
        $region166: #{_lambda_.4} parent=159 // loop_footer_branch
          %365 = sbr.rel target = $region162
        $region167: #{_lambda_.4} parent=159 // loop_exit
          _
      $region160: #{_lambda_.4} parent=31 // pred_fallthru
        _
      // Predicated region
      $region179: #{_lambda_.4} parent=31 // pred_check
        _
      $region180: #{_lambda_.4} parent=31 // pred_check_branch
        %398 = sbr.rel (0) target = $region182
      $region181: #{_lambda_.4} parent=31 // pred_region
        %399 = vsyncadd %s355, 16
      $region182: #{_lambda_.4} parent=31 // pred_fallthru
        _
      %s400 = sadd.s32 %s157, 5
      %s401 = sld [smem:[#allocation5 + %s400]]
      %s402 = scalar_lea.vmem %s4, %s401
      %s403 = scalar_lea.vmem [#allocation2], 5
      %s404 = scalar_lea.sflag [#allocation3], 5
      %p406 = scmp.lt.u32.totalorder 1, 8
      %p407 = pneg %p406
      // Predicated region
      $region183: #{_lambda_.4} parent=31 // pred_check
        _
      $region184: #{_lambda_.4} parent=31 // pred_check_branch
        %409 = sbr.rel (%p406) target = $region186
      $region185: #{_lambda_.4} parent=31 // pred_region
        %s424 = sand.u32 1, 7
        %p425 = scmp.eq.s32.totalorder %s424, 0
        %p426 = pneg %p425
        // Predicated region
        $region198: #{_lambda_.4} parent=185 // pred_check
          _
        $region199: #{_lambda_.4} parent=185 // pred_check_branch
          %428 = sbr.rel (%p425) target = $region201
        $region200: #{_lambda_.4} parent=185 // pred_region
          %s429 = sand.u32 1, 7
          %s430 = ssub.s32 1, %s429
          %s431 = scalar_lea.vmem %s402, %s430
          %s432 = ssub.s32 1, %s429
          %s433 = scalar_lea.vmem %s403, %s432 [#allocation2]
          %s434 = sshllo.u32 0, %s429
          loop: start=0, step=1, limit=1
          $region202: #{_lambda_.4} parent=200 // loop_pre_header
            _
          $region203: #{_lambda_.4} parent=200 // loop_header
            %s436 = sphi 0, %s440
            %p437 = scmp.ge.s32.totalorder %s436, 1
            %s441 = sphi %s431, %s431
            %s442 = sphi %s433, %s433
          $region204: #{_lambda_.4} parent=200 // loop_header_branch
            %439 = sbr.rel (%p437) target = $region208
          $region205: #{_lambda_.4} parent=200 // loop_body
            %v443 = vld [vmem:[%s441] sm:%s434]
            %444 = vst [vmem:[%s442] sm:%s434] %v443
          $region206: #{_lambda_.4} parent=200 // loop_footer
            %s440 = sadd.s32 1, %s436
          $region207: #{_lambda_.4} parent=200 // loop_footer_branch
            %435 = sbr.rel target = $region203
          $region208: #{_lambda_.4} parent=200 // loop_exit
            _
        $region201: #{_lambda_.4} parent=185 // pred_fallthru
          _
      $region186: #{_lambda_.4} parent=31 // pred_fallthru
        _
      // Predicated region
      $region187: #{_lambda_.4} parent=31 // pred_check
        %p410 = pneg %p406
      $region188: #{_lambda_.4} parent=31 // pred_check_branch
        %412 = sbr.rel (%p410) target = $region190
      $region189: #{_lambda_.4} parent=31 // pred_region
        %s413 = sshllo.u32 0, 1
        loop: start=0, step=1, limit=1
        $region191: #{_lambda_.4} parent=189 // loop_pre_header
          _
        $region192: #{_lambda_.4} parent=189 // loop_header
          %s415 = sphi 0, %s419
          %p416 = scmp.ge.s32.totalorder %s415, 1
          %s420 = sphi %s402, %s402
          %s421 = sphi %s403, %s403
        $region193: #{_lambda_.4} parent=189 // loop_header_branch
          %418 = sbr.rel (%p416) target = $region197
        $region194: #{_lambda_.4} parent=189 // loop_body
          %v422 = vld [vmem:[%s420] sm:%s413]
          %423 = vst [vmem:[%s421] sm:%s413] %v422
        $region195: #{_lambda_.4} parent=189 // loop_footer
          %s419 = sadd.s32 1, %s415
        $region196: #{_lambda_.4} parent=189 // loop_footer_branch
          %414 = sbr.rel target = $region192
        $region197: #{_lambda_.4} parent=189 // loop_exit
          _
      $region190: #{_lambda_.4} parent=31 // pred_fallthru
        _
      // Predicated region
      $region209: #{_lambda_.4} parent=31 // pred_check
        _
      $region210: #{_lambda_.4} parent=31 // pred_check_branch
        %447 = sbr.rel (0) target = $region212
      $region211: #{_lambda_.4} parent=31 // pred_region
        %448 = vsyncadd %s404, 16
      $region212: #{_lambda_.4} parent=31 // pred_fallthru
        _
      %s449 = sadd.s32 %s157, 6
      %s450 = sld [smem:[#allocation5 + %s449]]
      %s451 = scalar_lea.vmem %s4, %s450
      %s452 = scalar_lea.vmem [#allocation2], 6
      %s453 = scalar_lea.sflag [#allocation3], 6
      %p455 = scmp.lt.u32.totalorder 1, 8
      %p456 = pneg %p455
      // Predicated region
      $region213: #{_lambda_.4} parent=31 // pred_check
        _
      $region214: #{_lambda_.4} parent=31 // pred_check_branch
        %458 = sbr.rel (%p455) target = $region216
      $region215: #{_lambda_.4} parent=31 // pred_region
        %s473 = sand.u32 1, 7
        %p474 = scmp.eq.s32.totalorder %s473, 0
        %p475 = pneg %p474
        // Predicated region
        $region228: #{_lambda_.4} parent=215 // pred_check
          _
        $region229: #{_lambda_.4} parent=215 // pred_check_branch
          %477 = sbr.rel (%p474) target = $region231
        $region230: #{_lambda_.4} parent=215 // pred_region
          %s478 = sand.u32 1, 7
          %s479 = ssub.s32 1, %s478
          %s480 = scalar_lea.vmem %s451, %s479
          %s481 = ssub.s32 1, %s478
          %s482 = scalar_lea.vmem %s452, %s481 [#allocation2]
          %s483 = sshllo.u32 0, %s478
          loop: start=0, step=1, limit=1
          $region232: #{_lambda_.4} parent=230 // loop_pre_header
            _
          $region233: #{_lambda_.4} parent=230 // loop_header
            %s485 = sphi 0, %s489
            %p486 = scmp.ge.s32.totalorder %s485, 1
            %s490 = sphi %s480, %s480
            %s491 = sphi %s482, %s482
          $region234: #{_lambda_.4} parent=230 // loop_header_branch
            %488 = sbr.rel (%p486) target = $region238
          $region235: #{_lambda_.4} parent=230 // loop_body
            %v492 = vld [vmem:[%s490] sm:%s483]
            %493 = vst [vmem:[%s491] sm:%s483] %v492
          $region236: #{_lambda_.4} parent=230 // loop_footer
            %s489 = sadd.s32 1, %s485
          $region237: #{_lambda_.4} parent=230 // loop_footer_branch
            %484 = sbr.rel target = $region233
          $region238: #{_lambda_.4} parent=230 // loop_exit
            _
        $region231: #{_lambda_.4} parent=215 // pred_fallthru
          _
      $region216: #{_lambda_.4} parent=31 // pred_fallthru
        _
      // Predicated region
      $region217: #{_lambda_.4} parent=31 // pred_check
        %p459 = pneg %p455
      $region218: #{_lambda_.4} parent=31 // pred_check_branch
        %461 = sbr.rel (%p459) target = $region220
      $region219: #{_lambda_.4} parent=31 // pred_region
        %s462 = sshllo.u32 0, 1
        loop: start=0, step=1, limit=1
        $region221: #{_lambda_.4} parent=219 // loop_pre_header
          _
        $region222: #{_lambda_.4} parent=219 // loop_header
          %s464 = sphi 0, %s468
          %p465 = scmp.ge.s32.totalorder %s464, 1
          %s469 = sphi %s451, %s451
          %s470 = sphi %s452, %s452
        $region223: #{_lambda_.4} parent=219 // loop_header_branch
          %467 = sbr.rel (%p465) target = $region227
        $region224: #{_lambda_.4} parent=219 // loop_body
          %v471 = vld [vmem:[%s469] sm:%s462]
          %472 = vst [vmem:[%s470] sm:%s462] %v471
        $region225: #{_lambda_.4} parent=219 // loop_footer
          %s468 = sadd.s32 1, %s464
        $region226: #{_lambda_.4} parent=219 // loop_footer_branch
          %463 = sbr.rel target = $region222
        $region227: #{_lambda_.4} parent=219 // loop_exit
          _
      $region220: #{_lambda_.4} parent=31 // pred_fallthru
        _
      // Predicated region
      $region239: #{_lambda_.4} parent=31 // pred_check
        _
      $region240: #{_lambda_.4} parent=31 // pred_check_branch
        %496 = sbr.rel (0) target = $region242
      $region241: #{_lambda_.4} parent=31 // pred_region
        %497 = vsyncadd %s453, 16
      $region242: #{_lambda_.4} parent=31 // pred_fallthru
        _
      %s498 = sadd.s32 %s157, 7
      %s499 = sld [smem:[#allocation5 + %s498]]
      %s500 = scalar_lea.vmem %s4, %s499
      %s501 = scalar_lea.vmem [#allocation2], 7
      %s502 = scalar_lea.sflag [#allocation3], 7
      %p504 = scmp.lt.u32.totalorder 1, 8
      %p505 = pneg %p504
      // Predicated region
      $region243: #{_lambda_.4} parent=31 // pred_check
        _
      $region244: #{_lambda_.4} parent=31 // pred_check_branch
        %507 = sbr.rel (%p504) target = $region246
      $region245: #{_lambda_.4} parent=31 // pred_region
        %s522 = sand.u32 1, 7
        %p523 = scmp.eq.s32.totalorder %s522, 0
        %p524 = pneg %p523
        // Predicated region
        $region258: #{_lambda_.4} parent=245 // pred_check
          _
        $region259: #{_lambda_.4} parent=245 // pred_check_branch
          %526 = sbr.rel (%p523) target = $region261
        $region260: #{_lambda_.4} parent=245 // pred_region
          %s527 = sand.u32 1, 7
          %s528 = ssub.s32 1, %s527
          %s529 = scalar_lea.vmem %s500, %s528
          %s530 = ssub.s32 1, %s527
          %s531 = scalar_lea.vmem %s501, %s530 [#allocation2]
          %s532 = sshllo.u32 0, %s527
          loop: start=0, step=1, limit=1
          $region262: #{_lambda_.4} parent=260 // loop_pre_header
            _
          $region263: #{_lambda_.4} parent=260 // loop_header
            %s534 = sphi 0, %s538
            %p535 = scmp.ge.s32.totalorder %s534, 1
            %s539 = sphi %s529, %s529
            %s540 = sphi %s531, %s531
          $region264: #{_lambda_.4} parent=260 // loop_header_branch
            %537 = sbr.rel (%p535) target = $region268
          $region265: #{_lambda_.4} parent=260 // loop_body
            %v541 = vld [vmem:[%s539] sm:%s532]
            %542 = vst [vmem:[%s540] sm:%s532] %v541
          $region266: #{_lambda_.4} parent=260 // loop_footer
            %s538 = sadd.s32 1, %s534
          $region267: #{_lambda_.4} parent=260 // loop_footer_branch
            %533 = sbr.rel target = $region263
          $region268: #{_lambda_.4} parent=260 // loop_exit
            _
        $region261: #{_lambda_.4} parent=245 // pred_fallthru
          _
      $region246: #{_lambda_.4} parent=31 // pred_fallthru
        _
      // Predicated region
      $region247: #{_lambda_.4} parent=31 // pred_check
        %p508 = pneg %p504
      $region248: #{_lambda_.4} parent=31 // pred_check_branch
        %510 = sbr.rel (%p508) target = $region250
      $region249: #{_lambda_.4} parent=31 // pred_region
        %s511 = sshllo.u32 0, 1
        loop: start=0, step=1, limit=1
        $region251: #{_lambda_.4} parent=249 // loop_pre_header
          _
        $region252: #{_lambda_.4} parent=249 // loop_header
          %s513 = sphi 0, %s517
          %p514 = scmp.ge.s32.totalorder %s513, 1
          %s518 = sphi %s500, %s500
          %s519 = sphi %s501, %s501
        $region253: #{_lambda_.4} parent=249 // loop_header_branch
          %516 = sbr.rel (%p514) target = $region257
        $region254: #{_lambda_.4} parent=249 // loop_body
          %v520 = vld [vmem:[%s518] sm:%s511]
          %521 = vst [vmem:[%s519] sm:%s511] %v520
        $region255: #{_lambda_.4} parent=249 // loop_footer
          %s517 = sadd.s32 1, %s513
        $region256: #{_lambda_.4} parent=249 // loop_footer_branch
          %512 = sbr.rel target = $region252
        $region257: #{_lambda_.4} parent=249 // loop_exit
          _
      $region250: #{_lambda_.4} parent=31 // pred_fallthru
        _
      // Predicated region
      $region269: #{_lambda_.4} parent=31 // pred_check
        _
      $region270: #{_lambda_.4} parent=31 // pred_check_branch
        %545 = sbr.rel (0) target = $region272
      $region271: #{_lambda_.4} parent=31 // pred_region
        %546 = vsyncadd %s502, 16
      $region272: #{_lambda_.4} parent=31 // pred_fallthru
        _
      %548 = dma.done [#allocation3], 16
      %550 = dma.done %s208, 16
      %552 = dma.done %s257, 16
      %554 = dma.done %s306, 16
      %556 = dma.done %s355, 16
      %558 = dma.done %s404, 16
      %560 = dma.done %s453, 16
      %562 = dma.done %s502, 16
      %v563 = vld [vmem:[#allocation2] sm:$0xff]
      %v564 = vld [vmem:[%s1] sm:$0xff]
      %v565 = vadd.f32 %v563, %v564
      %v566 = vld [vmem:[%s2] sm:$0x1]
      %v567 = vld [vmem:[%s3] sm:$0x1]
      %vm568 = vcmask 261120
      %v569 = vsel %vm568, %v565, 0.0
      %570 = vadd.xlane.f32.xlu0 %v569
      %v571 = vpop.xlane.xlu0 %570
      %v572 = vrcp.pop 32.0
      %v573 = vmul.f32 %v571, %v572
      %v574 = vsub.f32 %v565, %v573
      %v575 = vmul.f32 %v574, %v574
      %v576 = vsel %vm568, %v575, 0.0
      %577 = vadd.xlane.f32.xlu0 %v576
      %v578 = vpop.xlane.xlu0 %577
      %v579 = vmul.f32 %v578, %v572
      %v580 = vadd.f32 %v579, 1e-12
      %v581 = vrsqrt.pop %v580
      %v582 = vmul.f32 %v574, %v581
      %v584 = vlaneseq
      %v585 = vshrl.u32 %v584, 7
      %v586 = vsub.s32 0, %v585
      %v587 = vrot.slane %v566, %v586
      %v589 = vmul.f32 %v582, %v587
      %v591 = vlaneseq
      %v592 = vshrl.u32 %v591, 7
      %v593 = vsub.s32 0, %v592
      %v594 = vrot.slane %v567, %v593
      %v596 = vadd.f32 %v589, %v594
      %v597 = vpack.c.bf16 %v596, %v596
      %vm598 = vcmask 257024
      %599 = vst.msk [vmem:[%s156] sm:$0xf] %vm598, %v597
      %p600 = scmp.lt.s32.totalorder %s22, 1
      %s601 = scalar_select %p600, %s22, 1
      %s602 = smul.addr %s601, 4
      %s603 = scalar_lea.vmem %s5, %s602
      // Predicated region
      $region273: #{_lambda_.4} parent=31 // pred_check
        %p604 = pneg %p103
      $region274: #{_lambda_.4} parent=31 // pred_check_branch
        %606 = sbr.rel (%p604) target = $region276
      $region275: #{_lambda_.4} parent=31 // pred_region
        _
      $region276: #{_lambda_.4} parent=31 // pred_fallthru
        _
    $region32: #{_lambda_.4} parent=5 // pred_fallthru
      _
    %p607 = scmp.le.s32.totalorder 2, %s17
    // Predicated region
    $region277: #{_lambda_.4} parent=5 // pred_check
      %p608 = pneg %p607
    $region278: #{_lambda_.4} parent=5 // pred_check_branch
      %610 = sbr.rel (%p608) target = $region280
    $region279: #{_lambda_.4} parent=5 // pred_region
      %s611 = ssub.s32 %s17, 2
      // Predicated region
      $region281: #{_lambda_.4} parent=279 // pred_check
        %p612 = pneg %p109
      $region282: #{_lambda_.4} parent=279 // pred_check_branch
        %614 = sbr.rel (%p612) target = $region284
      $region283: #{_lambda_.4} parent=279 // pred_region
        %p615 = scmp.lt.s32.totalorder %s23, 1
        %s616 = scalar_select %p615, %s23, 1
        %s617 = smul.addr %s616, 4
        %s618 = scalar_lea.vmem %s5, %s617
      $region284: #{_lambda_.4} parent=279 // pred_fallthru
        _
    $region280: #{_lambda_.4} parent=5 // pred_fallthru
      _
  $region6: #{_lambda_.4} parent=0 // loop_footer
    %s21 = sadd.s32 1, %s17
  $region7: #{_lambda_.4} parent=0 // loop_footer_branch
    %16 = sbr.rel target = $region3
  $region8: #{_lambda_.4} parent=0 // loop_exit
    _
  %619 = vsyncmov [#allocation3]
  %s620 = vpop.sfrf %619
  %p621 = scmp.eq.s32.totalorder %s620, 0
  %p622 = pneg %p621
  %624 = shalt.err (%p622)
  %s625 = scalar_lea.sflag [#allocation3], 1
  %626 = vsyncmov %s625
  %s627 = vpop.sfrf %626
  %p628 = scmp.eq.s32.totalorder %s627, 0
  %p629 = pneg %p628
  %631 = shalt.err (%p629)
  %s632 = scalar_lea.sflag [#allocation3], 2
  %633 = vsyncmov %s632
  %s634 = vpop.sfrf %633
  %p635 = scmp.eq.s32.totalorder %s634, 0
  %p636 = pneg %p635
  %638 = shalt.err (%p636)
  %s639 = scalar_lea.sflag [#allocation3], 3
  %640 = vsyncmov %s639
  %s641 = vpop.sfrf %640
  %p642 = scmp.eq.s32.totalorder %s641, 0
  %p643 = pneg %p642
  %645 = shalt.err (%p643)
  %s646 = scalar_lea.sflag [#allocation3], 4
  %647 = vsyncmov %s646
  %s648 = vpop.sfrf %647
  %p649 = scmp.eq.s32.totalorder %s648, 0
  %p650 = pneg %p649
  %652 = shalt.err (%p650)
  %s653 = scalar_lea.sflag [#allocation3], 5
  %654 = vsyncmov %s653
  %s655 = vpop.sfrf %654
  %p656 = scmp.eq.s32.totalorder %s655, 0
  %p657 = pneg %p656
  %659 = shalt.err (%p657)
  %s660 = scalar_lea.sflag [#allocation3], 6
  %661 = vsyncmov %s660
  %s662 = vpop.sfrf %661
  %p663 = scmp.eq.s32.totalorder %s662, 0
  %p664 = pneg %p663
  %666 = shalt.err (%p664)
  %s667 = scalar_lea.sflag [#allocation3], 7
  %668 = vsyncmov %s667
  %s669 = vpop.sfrf %668
  %p670 = scmp.eq.s32.totalorder %s669, 0
  %p671 = pneg %p670
  %673 = shalt.err (%p671)

// kernel: _lambda_.7
$region0: #{_lambda_.7}
  #allocation0 [shape = 'u32[]', space=smem, size = 0x4, offset = 0x4, fixed_abs, tag = 'smem constant byte address 0x4 - core index']
  #allocation1 [shape = 'u32[144,128]{1,0:T(1,128)}', space=vmem, size = 0x12000, scoped, tag = 'internal scratch']
  %s0 = inlined_call_operand.vmem [shape: bf16[2,32], index: 0, kind: input, shape index: {}]
  %s1 = inlined_call_operand.vmem [shape: bf16[32,128], index: 1, kind: input, shape index: {}]
  %s2 = inlined_call_operand.vmem [shape: f32[1,128], index: 2, kind: input, shape index: {}]
  %s3 = inlined_call_operand.vmem [shape: s32[2,2], index: 3, kind: input, shape index: {}]
  %s4 = inlined_call_operand.vmem [shape: f32[2,128], index: 4, kind: output, shape index: {0}]
  %s5 = inlined_call_operand.hbm [shape: f32[1,1], index: 5, kind: output, shape index: {1}]
  %6 = xla_tuple %s4, %s5
  %s7 = sld [smem:[#allocation0]]
  $region34: #{_lambda_.7} parent=0
    _
  %s9 = ssub.s32 1, %s7
  %s10 = scalar_select 0, %s9, %s7
  $region1: #{_lambda_.7} parent=0
    #allocation2 [shape = 'u8[512]{0}', space=vmem, size = 0x400, scoped, tag = 'output window, operand 1, single buffered']
    #allocation3 [shape = 's32[1]{0}', space=sflag, size = 0x4, scoped, tag = 'scoped memory for _lambda_.7']
    %11 = vsyncpa [#allocation3], 0
    // Predicated region
    $region2: #{_lambda_.7} parent=1 // pred_check
      _
    $region3: #{_lambda_.7} parent=1 // pred_check_branch
      %13 = sbr.rel (0) target = $region5
    $region4: #{_lambda_.7} parent=1 // pred_region
      _
    $region5: #{_lambda_.7} parent=1 // pred_fallthru
      _
    // Predicated region
    $region6: #{_lambda_.7} parent=1 // pred_check
      _
    $region7: #{_lambda_.7} parent=1 // pred_check_branch
      %15 = sbr.rel (0) target = $region9
    $region8: #{_lambda_.7} parent=1 // pred_region
      _
    $region9: #{_lambda_.7} parent=1 // pred_fallthru
      _
    // Predicated region
    $region10: #{_lambda_.7} parent=1 // pred_check
      _
    $region11: #{_lambda_.7} parent=1 // pred_check_branch
      %17 = sbr.rel (0) target = $region13
    $region12: #{_lambda_.7} parent=1 // pred_region
      _
    $region13: #{_lambda_.7} parent=1 // pred_fallthru
      _
    // Predicated region
    $region14: #{_lambda_.7} parent=1 // pred_check
      _
    $region15: #{_lambda_.7} parent=1 // pred_check_branch
      %19 = sbr.rel (0) target = $region17
    $region16: #{_lambda_.7} parent=1 // pred_region
      _
    $region17: #{_lambda_.7} parent=1 // pred_fallthru
      _
    %v21 = vld [vmem:[%s0] sm:$0x1]
    %v22 = vld [vmem:[%s1] sm:$0xf]
    %v23 = vld [vmem:[%s1 + $0x4] sm:$0xf]
    %v24 = vld [vmem:[%s1 + $0x8] sm:$0xf]
    %v25 = vld [vmem:[%s1 + $0xc] sm:$0xf]
    %v26 = vld [vmem:[%s2] sm:$0x1]
    %v28 = vlaneseq
    %v29 = vshrl.u32 %v28, 7
    %v30 = vsub.s32 0, %v29
    %v31 = vrot.slane %v26, %v30
    %v37 = vunpack.c.l.b16 %v22
    %v38 = vunpack.c.l.b16 %v23
    %v39 = vunpack.c.l.b16 %v24
    %v40 = vunpack.c.l.b16 %v25
    %v41 = vpack.c.b16 %v38, %v37
    %v42 = vpack.c.b16 %v40, %v39
    %vm45 = vcmask 261120
    %v47 = vsel %vm45, %v21, 0
    %49 = vmatprep.subr.bf16.mxu0 0
    %50 = vmatpush1.bf16.msra.mxu0 %v41
    %51 = vmatprep.subr.bf16.mxu0 0
    %52 = vmatpush1.bf16.msra.mxu0 %v42
    %53 = vmatprep.subr.bf16.mxu0 0
    %54 = vmatpush1.bf16.msra.mxu0 0
    %55 = vmatprep.subr.bf16.mxu0 0
    %56 = vmatpush1.bf16.msra.mxu0 0
    %57 = vmatprep.subr.bf16.mxu0 0
    %58 = vmatpush1.bf16.msra.mxu0 0
    %59 = vmatprep.subr.bf16.mxu0 0
    %60 = vmatpush1.bf16.msra.mxu0 0
    %61 = vmatprep.subr.bf16.mxu0 0
    %62 = vmatpush1.bf16.msra.mxu0 0
    %63 = vmatprep.subr.bf16.mxu0 0
    %64 = vmatpush1.bf16.msra.mxu0 0
    %65 = vmatprep.subr.bf16.mxu0 0
    %66 = vmatpush1.bf16.msra.mxu0 0
    %67 = vmatprep.subr.bf16.mxu0 0
    %68 = vmatpush1.bf16.msra.mxu0 0
    %69 = vmatprep.subr.bf16.mxu0 0
    %70 = vmatpush1.bf16.msra.mxu0 0
    %71 = vmatprep.subr.bf16.mxu0 0
    %72 = vmatpush1.bf16.msra.mxu0 0
    %73 = vmatprep.subr.bf16.mxu0 0
    %74 = vmatpush1.bf16.msra.mxu0 0
    %75 = vmatprep.subr.bf16.mxu0 0
    %76 = vmatpush1.bf16.msra.mxu0 0
    %77 = vmatprep.subr.bf16.mxu0 0
    %78 = vmatpush1.bf16.msra.mxu0 0
    %79 = vmatprep.subr.bf16.mxu0 0
    %80 = vmatpush1.bf16.msra.mxu0 0
    %81 = vmatprep.mubr.bf16.mxu0 0
    %82 = vmatmul.mubr.bf16.gmra.mrb[0].mxu0 %v47
    %v83 = vpop.f32.mrb[0].mxu0
    %v84 = vadd.f32 %v31, %v83
    %v85 = vpop.f32.mrb[0].mxu0
    %v86 = vpop.f32.mrb[0].mxu0
    %v87 = vpop.f32.mrb[0].mxu0
    %88 = vdwg.mxu0
    %89 = vst [vmem:[%s4] sm:$0x3] %v84
    %v90 = vlaneseq
    %v91 = vand.u32 %v90, 127
    %vm92 = vcmp.ge.s32.totalorder %v91, 0
    %vm93 = vcmp.lt.s32.totalorder %v91, 3
    %vm94 = vmand %vm92, %vm93
    %v95 = vsel %vm94, %v84, -1e+30
    %vm96 = vcmask 1041408
    %v97 = vsel %vm96, %v95, -inf
    %98 = vmax.xlane.f32.xlu0 %v97
    %v99 = vpop.xlane.xlu0 %98
    %v100 = vsub.f32 %v95, %v99
    %v101 = vmul.f32 %v100, 1.442695
    %v102 = vpow.pop %v101
    %v103 = vsel %vm96, %v102, 0.0
    %104 = vadd.xlane.f32.xlu0 %v103
    %v105 = vpop.xlane.xlu0 %104
    %v106 = vlog2.pop %v105
    %v107 = vmul.f32 %v106, 0.6931472
    %v108 = vadd.f32 %v107, %v99
    %v109 = vld [vmem:[%s3] sm:$0x3]
    %110 = vset.pattern.permute.xlu0 0
    %111 = vperm.xlu0 %110, %v109
    %v112 = vpop.permute.xlu0 %111
    %vm113 = vcmp.eq.s32.totalorder %v91, %v112
    %v114 = vsel %vm113, %v84, 0.0
    %v115 = vsel %vm96, %v114, 0.0
    %116 = vadd.xlane.f32.xlu0 %v115
    %v117 = vpop.xlane.xlu0 %116
    %v118 = vsub.f32 %v108, %v117
    %v119 = vadd.f32 %v118, 0.0
    %vm120 = vcmp.ge.s32.totalorder %v91, 3
    %vm121 = vcmp.lt.s32.totalorder %v91, 8
    %vm122 = vmand %vm120, %vm121
    %v123 = vsel %vm122, %v84, -1e+30
    %v124 = vsel %vm96, %v123, -inf
    %125 = vmax.xlane.f32.xlu0 %v124
    %v126 = vpop.xlane.xlu0 %125
    %v127 = vsub.f32 %v123, %v126
    %v128 = vmul.f32 %v127, 1.442695
    %v129 = vpow.pop %v128
    %v130 = vsel %vm96, %v129, 0.0
    %131 = vadd.xlane.f32.xlu0 %v130
    %v132 = vpop.xlane.xlu0 %131
    %v133 = vlog2.pop %v132
    %v134 = vmul.f32 %v133, 0.6931472
    %v135 = vadd.f32 %v134, %v126
    %v136 = vadd.s32 %v109, 3
    %137 = vset.pattern.permute.xlu0 1
    %138 = vperm.xlu0 %137, %v136
    %v139 = vpop.permute.xlu0 %138
    %vm140 = vcmp.eq.s32.totalorder %v91, %v139
    %v141 = vsel %vm140, %v84, 0.0
    %v142 = vsel %vm96, %v141, 0.0
    %143 = vadd.xlane.f32.xlu0 %v142
    %v144 = vpop.xlane.xlu0 %143
    %v145 = vsub.f32 %v135, %v144
    %v146 = vadd.f32 %v119, %v145
    %v147 = vsel %vm96, %v146, 0.0
    %v148 = vrot.slane %v147, 4
    %v149 = vadd.f32 %v147, %v148
    %v150 = vrot.slane %v149, 2
    %v151 = vadd.f32 %v149, %v150
    %v152 = vrot.slane %v151, 1
    %v153 = vadd.f32 %v151, %v152
    %v154 = vmul.f32 %v153, 0.5
    %vm155 = vcmask 0
    %156 = vst.msk [vmem:[#allocation2] sm:$0x1] %vm155, %v154
    // Predicated region
    $region18: #{_lambda_.7} parent=1 // pred_check
      _
    $region19: #{_lambda_.7} parent=1 // pred_check_branch
      %158 = sbr.rel (0) target = $region21
    $region20: #{_lambda_.7} parent=1 // pred_region
      _
    $region21: #{_lambda_.7} parent=1 // pred_fallthru
      _
    // Predicated region
    $region22: #{_lambda_.7} parent=1 // pred_check
      _
    $region23: #{_lambda_.7} parent=1 // pred_check_branch
      %160 = sbr.rel (0) target = $region25
    $region24: #{_lambda_.7} parent=1 // pred_region
      %s162 = ssub.s32 16, 16
      %163 = vsyncadd [#allocation3], %s162
      %s165 = sshll.u32 [#allocation2], 4
      %s166 = int_to_ptr.vmem [resolvable:$true] %s165
      %168 = dma.vmem_to_hbm [thread:$0]  %s166, 16, %s5, [#allocation3]
    $region25: #{_lambda_.7} parent=1 // pred_fallthru
      _
    // Predicated region
    $region26: #{_lambda_.7} parent=1 // pred_check
      _
    $region27: #{_lambda_.7} parent=1 // pred_check_branch
      %170 = sbr.rel (0) target = $region29
    $region28: #{_lambda_.7} parent=1 // pred_region
      _
    $region29: #{_lambda_.7} parent=1 // pred_fallthru
      _
    // Predicated region
    $region30: #{_lambda_.7} parent=1 // pred_check
      _
    $region31: #{_lambda_.7} parent=1 // pred_check_branch
      %172 = sbr.rel (0) target = $region33
    $region32: #{_lambda_.7} parent=1 // pred_region
      %173 = dma.done [#allocation3], 16
    $region33: #{_lambda_.7} parent=1 // pred_fallthru
      _
    %174 = vsyncpa [#allocation3], 1

// kernel: _lambda_.5
$region0: #{_lambda_.5}
  #allocation0 [shape = 'u32[]', space=smem, size = 0x4, offset = 0x4, fixed_abs, tag = 'smem constant byte address 0x4 - core index']
  #allocation1 [shape = 'u32[144,128]{1,0:T(1,128)}', space=vmem, size = 0x12000, scoped, tag = 'internal scratch']
  %s0 = inlined_call_operand.vmem [shape: bf16[2,8,32], index: 0, kind: input, shape index: {}]
  %s1 = inlined_call_operand.vmem [shape: f32[2,1,8], index: 1, kind: input, shape index: {}]
  %s2 = inlined_call_operand.vmem [shape: bf16[32,96], index: 2, kind: input, shape index: {}]
  %s3 = inlined_call_operand.vmem [shape: f32[1,96], index: 3, kind: input, shape index: {}]
  %s4 = inlined_call_operand.vmem [shape: bf16[32,32], index: 4, kind: input, shape index: {}]
  %s5 = inlined_call_operand.vmem [shape: f32[1,32], index: 5, kind: input, shape index: {}]
  %s6 = inlined_call_operand.vmem [shape: f32[1,32], index: 6, kind: input, shape index: {}]
  %s7 = inlined_call_operand.vmem [shape: f32[1,32], index: 7, kind: input, shape index: {}]
  %s8 = inlined_call_operand.vmem [shape: bf16[32,64], index: 8, kind: input, shape index: {}]
  %s9 = inlined_call_operand.vmem [shape: f32[1,64], index: 9, kind: input, shape index: {}]
  %s10 = inlined_call_operand.vmem [shape: bf16[64,32], index: 10, kind: input, shape index: {}]
  %s11 = inlined_call_operand.vmem [shape: f32[1,32], index: 11, kind: input, shape index: {}]
  %s12 = inlined_call_operand.vmem [shape: f32[1,32], index: 12, kind: input, shape index: {}]
  %s13 = inlined_call_operand.vmem [shape: f32[1,32], index: 13, kind: input, shape index: {}]
  %s14 = inlined_call_operand.vmem [shape: bf16[2,8,32], index: 14, kind: output, shape index: {0}]
  %s15 = inlined_call_operand.hbm [shape: bf16[2,1,32], index: 15, kind: output, shape index: {1}]
  %16 = xla_tuple %s14, %s15
  %s17 = sld [smem:[#allocation0]]
  $region97: #{_lambda_.5} parent=0
    _
  %s19 = ssub.s32 1, %s17
  %s20 = scalar_select 0, %s19, %s17
  $region1: #{_lambda_.5} parent=0
    #allocation2 [shape = 'u8[1024]{0}', space=vmem, size = 0x400, scoped, tag = 'output window, operand 1']
    #allocation3 [shape = 's32[2]{0}', space=sflag, size = 0x8, scoped, tag = 'scoped memory for _lambda_.5']
    %21 = vsyncpa [#allocation3], 0
    %s22 = scalar_lea.sflag [#allocation3], 1
    %23 = vsyncpa %s22, 0
    loop: start=0, step=1, limit=4
    $region2: #{_lambda_.5} parent=1 // loop_pre_header
      _
    $region3: #{_lambda_.5} parent=1 // loop_header
      %s25 = sphi 0, %s29
      %p26 = scmp.ge.s32.totalorder %s25, 4
      %s35 = sphi 0, %s37
      %s38 = sphi 0, %s35
      %s39 = sphi 0, %s38
      %s55 = sphi 0, %s39
      %s61 = sphi 0, %s63
      %s64 = sphi 0, %s61
      %s65 = sphi 0, %s64
      %s81 = sphi 0, %s65
      %s85 = sphi 0, %s85
      %s87 = sphi 0, %s85
      %s88 = sphi 0, %s87
      %s102 = sphi 0, %s88
      %s106 = sphi 0, %s106
      %s108 = sphi 0, %s106
      %s109 = sphi 0, %s108
      %s123 = sphi 0, %s109
      %s127 = sphi 0, %s127
      %s129 = sphi 0, %s127
      %s130 = sphi 0, %s129
      %s144 = sphi 0, %s130
      %s148 = sphi 0, %s148
      %s150 = sphi 0, %s148
      %s151 = sphi 0, %s150
      %s165 = sphi 0, %s151
      %s169 = sphi 0, %s169
      %s171 = sphi 0, %s169
      %s172 = sphi 0, %s171
      %s186 = sphi 0, %s172
      %s190 = sphi 0, %s190
      %s192 = sphi 0, %s190
      %s193 = sphi 0, %s192
      %s207 = sphi 0, %s193
      %s211 = sphi 0, %s211
      %s213 = sphi 0, %s211
      %s214 = sphi 0, %s213
      %s228 = sphi 0, %s214
      %s232 = sphi 0, %s232
      %s234 = sphi 0, %s232
      %s235 = sphi 0, %s234
      %s249 = sphi 0, %s235
      %s253 = sphi 0, %s253
      %s255 = sphi 0, %s253
      %s256 = sphi 0, %s255
      %s270 = sphi 0, %s256
      %s274 = sphi 0, %s274
      %s276 = sphi 0, %s274
      %s277 = sphi 0, %s276
      %s291 = sphi 0, %s277
      %s295 = sphi 0, %s295
      %s297 = sphi 0, %s295
      %s298 = sphi 0, %s297
      %s312 = sphi 0, %s298
      %s316 = sphi 0, %s316
      %s318 = sphi 0, %s316
      %s319 = sphi 0, %s318
      %s333 = sphi 0, %s319
      %s339 = sphi 0, %s341
      %s342 = sphi 0, %s339
      %s343 = sphi 0, %s342
      %s359 = sphi 0, %s343
      %s365 = sphi 0, %s367
      %s368 = sphi 0, %s365
      %s369 = sphi 0, %s368
      %s385 = sphi 0, %s369
    $region4: #{_lambda_.5} parent=1 // loop_header_branch
      %28 = sbr.rel (%p26) target = $region8
    $region5: #{_lambda_.5} parent=1 // loop_body
      %s30 = ssub.s32 %s25, 1
      %s31 = ssub.s32 %s25, 2
      %s32 = sadd.s32 %s25, 1
      %s33 = ssub.s32 %s25, %s32
      %p34 = scmp.eq.s32.totalorder %s33, 0
      %s36 = sadd.s32 %s35, 1
      %s37 = scalar_select %p34, %s35, %s36
      %p40 = pneg %p34
      %p41 = scmp.eq.s32.totalorder %s25, 1
      %p42 = por %p40, %p41
      %p43 = scmp.ne.s32.totalorder %s35, %s38
      %p44 = scmp.eq.s32.totalorder %s25, 0
      %p45 = por %p43, %p44
      %p46 = scmp.ne.s32.totalorder %s35, %s38
      %p47 = scmp.eq.s32.totalorder %s30, 1
      %p48 = por %p46, %p47
      %p49 = scmp.ne.s32.totalorder %s38, %s39
      %p50 = scmp.eq.s32.totalorder %s30, 0
      %p51 = por %p49, %p50
      %p52 = scmp.ne.s32.totalorder %s38, %s39
      %p53 = scmp.eq.s32.totalorder %s31, 1
      %p54 = por %p52, %p53
      %p56 = scmp.ne.s32.totalorder %s39, %s55
      %p57 = scmp.eq.s32.totalorder %s31, 0
      %p58 = por %p56, %p57
      %s59 = ssub.s32 %s25, %s32
      %p60 = scmp.eq.s32.totalorder %s59, 0
      %s62 = sadd.s32 %s61, 1
      %s63 = scalar_select %p60, %s61, %s62
      %p66 = pneg %p60
      %p67 = scmp.eq.s32.totalorder %s25, 1
      %p68 = por %p66, %p67
      %p69 = scmp.ne.s32.totalorder %s61, %s64
      %p70 = scmp.eq.s32.totalorder %s25, 0
      %p71 = por %p69, %p70
      %p72 = scmp.ne.s32.totalorder %s61, %s64
      %p73 = scmp.eq.s32.totalorder %s30, 1
      %p74 = por %p72, %p73
      %p75 = scmp.ne.s32.totalorder %s64, %s65
      %p76 = scmp.eq.s32.totalorder %s30, 0
      %p77 = por %p75, %p76
      %p78 = scmp.ne.s32.totalorder %s64, %s65
      %p79 = scmp.eq.s32.totalorder %s31, 1
      %p80 = por %p78, %p79
      %p82 = scmp.ne.s32.totalorder %s65, %s81
      %p83 = scmp.eq.s32.totalorder %s31, 0
      %p84 = por %p82, %p83
      %s86 = sadd.s32 %s85, 1
      %p89 = scmp.eq.s32.totalorder %s25, 1
      %p90 = scmp.ne.s32.totalorder %s85, %s87
      %p91 = scmp.eq.s32.totalorder %s25, 0
      %p92 = por %p90, %p91
      %p93 = scmp.ne.s32.totalorder %s85, %s87
      %p94 = scmp.eq.s32.totalorder %s30, 1
      %p95 = por %p93, %p94
      %p96 = scmp.ne.s32.totalorder %s87, %s88
      %p97 = scmp.eq.s32.totalorder %s30, 0
      %p98 = por %p96, %p97
      %p99 = scmp.ne.s32.totalorder %s87, %s88
      %p100 = scmp.eq.s32.totalorder %s31, 1
      %p101 = por %p99, %p100
      %p103 = scmp.ne.s32.totalorder %s88, %s102
      %p104 = scmp.eq.s32.totalorder %s31, 0
      %p105 = por %p103, %p104
      %s107 = sadd.s32 %s106, 1
      %p110 = scmp.eq.s32.totalorder %s25, 1
      %p111 = scmp.ne.s32.totalorder %s106, %s108
      %p112 = scmp.eq.s32.totalorder %s25, 0
      %p113 = por %p111, %p112
      %p114 = scmp.ne.s32.totalorder %s106, %s108
      %p115 = scmp.eq.s32.totalorder %s30, 1
      %p116 = por %p114, %p115
      %p117 = scmp.ne.s32.totalorder %s108, %s109
      %p118 = scmp.eq.s32.totalorder %s30, 0
      %p119 = por %p117, %p118
      %p120 = scmp.ne.s32.totalorder %s108, %s109
      %p121 = scmp.eq.s32.totalorder %s31, 1
      %p122 = por %p120, %p121
      %p124 = scmp.ne.s32.totalorder %s109, %s123
      %p125 = scmp.eq.s32.totalorder %s31, 0
      %p126 = por %p124, %p125
      %s128 = sadd.s32 %s127, 1
      %p131 = scmp.eq.s32.totalorder %s25, 1
      %p132 = scmp.ne.s32.totalorder %s127, %s129
      %p133 = scmp.eq.s32.totalorder %s25, 0
      %p134 = por %p132, %p133
      %p135 = scmp.ne.s32.totalorder %s127, %s129
      %p136 = scmp.eq.s32.totalorder %s30, 1
      %p137 = por %p135, %p136
      %p138 = scmp.ne.s32.totalorder %s129, %s130
      %p139 = scmp.eq.s32.totalorder %s30, 0
      %p140 = por %p138, %p139
      %p141 = scmp.ne.s32.totalorder %s129, %s130
      %p142 = scmp.eq.s32.totalorder %s31, 1
      %p143 = por %p141, %p142
      %p145 = scmp.ne.s32.totalorder %s130, %s144
      %p146 = scmp.eq.s32.totalorder %s31, 0
      %p147 = por %p145, %p146
      %s149 = sadd.s32 %s148, 1
      %p152 = scmp.eq.s32.totalorder %s25, 1
      %p153 = scmp.ne.s32.totalorder %s148, %s150
      %p154 = scmp.eq.s32.totalorder %s25, 0
      %p155 = por %p153, %p154
      %p156 = scmp.ne.s32.totalorder %s148, %s150
      %p157 = scmp.eq.s32.totalorder %s30, 1
      %p158 = por %p156, %p157
      %p159 = scmp.ne.s32.totalorder %s150, %s151
      %p160 = scmp.eq.s32.totalorder %s30, 0
      %p161 = por %p159, %p160
      %p162 = scmp.ne.s32.totalorder %s150, %s151
      %p163 = scmp.eq.s32.totalorder %s31, 1
      %p164 = por %p162, %p163
      %p166 = scmp.ne.s32.totalorder %s151, %s165
      %p167 = scmp.eq.s32.totalorder %s31, 0
      %p168 = por %p166, %p167
      %s170 = sadd.s32 %s169, 1
      %p173 = scmp.eq.s32.totalorder %s25, 1
      %p174 = scmp.ne.s32.totalorder %s169, %s171
      %p175 = scmp.eq.s32.totalorder %s25, 0
      %p176 = por %p174, %p175
      %p177 = scmp.ne.s32.totalorder %s169, %s171
      %p178 = scmp.eq.s32.totalorder %s30, 1
      %p179 = por %p177, %p178
      %p180 = scmp.ne.s32.totalorder %s171, %s172
      %p181 = scmp.eq.s32.totalorder %s30, 0
      %p182 = por %p180, %p181
      %p183 = scmp.ne.s32.totalorder %s171, %s172
      %p184 = scmp.eq.s32.totalorder %s31, 1
      %p185 = por %p183, %p184
      %p187 = scmp.ne.s32.totalorder %s172, %s186
      %p188 = scmp.eq.s32.totalorder %s31, 0
      %p189 = por %p187, %p188
      %s191 = sadd.s32 %s190, 1
      %p194 = scmp.eq.s32.totalorder %s25, 1
      %p195 = scmp.ne.s32.totalorder %s190, %s192
      %p196 = scmp.eq.s32.totalorder %s25, 0
      %p197 = por %p195, %p196
      %p198 = scmp.ne.s32.totalorder %s190, %s192
      %p199 = scmp.eq.s32.totalorder %s30, 1
      %p200 = por %p198, %p199
      %p201 = scmp.ne.s32.totalorder %s192, %s193
      %p202 = scmp.eq.s32.totalorder %s30, 0
      %p203 = por %p201, %p202
      %p204 = scmp.ne.s32.totalorder %s192, %s193
      %p205 = scmp.eq.s32.totalorder %s31, 1
      %p206 = por %p204, %p205
      %p208 = scmp.ne.s32.totalorder %s193, %s207
      %p209 = scmp.eq.s32.totalorder %s31, 0
      %p210 = por %p208, %p209
      %s212 = sadd.s32 %s211, 1
      %p215 = scmp.eq.s32.totalorder %s25, 1
      %p216 = scmp.ne.s32.totalorder %s211, %s213
      %p217 = scmp.eq.s32.totalorder %s25, 0
      %p218 = por %p216, %p217
      %p219 = scmp.ne.s32.totalorder %s211, %s213
      %p220 = scmp.eq.s32.totalorder %s30, 1
      %p221 = por %p219, %p220
      %p222 = scmp.ne.s32.totalorder %s213, %s214
      %p223 = scmp.eq.s32.totalorder %s30, 0
      %p224 = por %p222, %p223
      %p225 = scmp.ne.s32.totalorder %s213, %s214
      %p226 = scmp.eq.s32.totalorder %s31, 1
      %p227 = por %p225, %p226
      %p229 = scmp.ne.s32.totalorder %s214, %s228
      %p230 = scmp.eq.s32.totalorder %s31, 0
      %p231 = por %p229, %p230
      %s233 = sadd.s32 %s232, 1
      %p236 = scmp.eq.s32.totalorder %s25, 1
      %p237 = scmp.ne.s32.totalorder %s232, %s234
      %p238 = scmp.eq.s32.totalorder %s25, 0
      %p239 = por %p237, %p238
      %p240 = scmp.ne.s32.totalorder %s232, %s234
      %p241 = scmp.eq.s32.totalorder %s30, 1
      %p242 = por %p240, %p241
      %p243 = scmp.ne.s32.totalorder %s234, %s235
      %p244 = scmp.eq.s32.totalorder %s30, 0
      %p245 = por %p243, %p244
      %p246 = scmp.ne.s32.totalorder %s234, %s235
      %p247 = scmp.eq.s32.totalorder %s31, 1
      %p248 = por %p246, %p247
      %p250 = scmp.ne.s32.totalorder %s235, %s249
      %p251 = scmp.eq.s32.totalorder %s31, 0
      %p252 = por %p250, %p251
      %s254 = sadd.s32 %s253, 1
      %p257 = scmp.eq.s32.totalorder %s25, 1
      %p258 = scmp.ne.s32.totalorder %s253, %s255
      %p259 = scmp.eq.s32.totalorder %s25, 0
      %p260 = por %p258, %p259
      %p261 = scmp.ne.s32.totalorder %s253, %s255
      %p262 = scmp.eq.s32.totalorder %s30, 1
      %p263 = por %p261, %p262
      %p264 = scmp.ne.s32.totalorder %s255, %s256
      %p265 = scmp.eq.s32.totalorder %s30, 0
      %p266 = por %p264, %p265
      %p267 = scmp.ne.s32.totalorder %s255, %s256
      %p268 = scmp.eq.s32.totalorder %s31, 1
      %p269 = por %p267, %p268
      %p271 = scmp.ne.s32.totalorder %s256, %s270
      %p272 = scmp.eq.s32.totalorder %s31, 0
      %p273 = por %p271, %p272
      %s275 = sadd.s32 %s274, 1
      %p278 = scmp.eq.s32.totalorder %s25, 1
      %p279 = scmp.ne.s32.totalorder %s274, %s276
      %p280 = scmp.eq.s32.totalorder %s25, 0
      %p281 = por %p279, %p280
      %p282 = scmp.ne.s32.totalorder %s274, %s276
      %p283 = scmp.eq.s32.totalorder %s30, 1
      %p284 = por %p282, %p283
      %p285 = scmp.ne.s32.totalorder %s276, %s277
      %p286 = scmp.eq.s32.totalorder %s30, 0
      %p287 = por %p285, %p286
      %p288 = scmp.ne.s32.totalorder %s276, %s277
      %p289 = scmp.eq.s32.totalorder %s31, 1
      %p290 = por %p288, %p289
      %p292 = scmp.ne.s32.totalorder %s277, %s291
      %p293 = scmp.eq.s32.totalorder %s31, 0
      %p294 = por %p292, %p293
      %s296 = sadd.s32 %s295, 1
      %p299 = scmp.eq.s32.totalorder %s25, 1
      %p300 = scmp.ne.s32.totalorder %s295, %s297
      %p301 = scmp.eq.s32.totalorder %s25, 0
      %p302 = por %p300, %p301
      %p303 = scmp.ne.s32.totalorder %s295, %s297
      %p304 = scmp.eq.s32.totalorder %s30, 1
      %p305 = por %p303, %p304
      %p306 = scmp.ne.s32.totalorder %s297, %s298
      %p307 = scmp.eq.s32.totalorder %s30, 0
      %p308 = por %p306, %p307
      %p309 = scmp.ne.s32.totalorder %s297, %s298
      %p310 = scmp.eq.s32.totalorder %s31, 1
      %p311 = por %p309, %p310
      %p313 = scmp.ne.s32.totalorder %s298, %s312
      %p314 = scmp.eq.s32.totalorder %s31, 0
      %p315 = por %p313, %p314
      %s317 = sadd.s32 %s316, 1
      %p320 = scmp.eq.s32.totalorder %s25, 1
      %p321 = scmp.ne.s32.totalorder %s316, %s318
      %p322 = scmp.eq.s32.totalorder %s25, 0
      %p323 = por %p321, %p322
      %p324 = scmp.ne.s32.totalorder %s316, %s318
      %p325 = scmp.eq.s32.totalorder %s30, 1
      %p326 = por %p324, %p325
      %p327 = scmp.ne.s32.totalorder %s318, %s319
      %p328 = scmp.eq.s32.totalorder %s30, 0
      %p329 = por %p327, %p328
      %p330 = scmp.ne.s32.totalorder %s318, %s319
      %p331 = scmp.eq.s32.totalorder %s31, 1
      %p332 = por %p330, %p331
      %p334 = scmp.ne.s32.totalorder %s319, %s333
      %p335 = scmp.eq.s32.totalorder %s31, 0
      %p336 = por %p334, %p335
      %s337 = ssub.s32 %s25, %s32
      %p338 = scmp.eq.s32.totalorder %s337, 0
      %s340 = sadd.s32 %s339, 1
      %s341 = scalar_select %p338, %s339, %s340
      %p344 = pneg %p338
      %p345 = scmp.eq.s32.totalorder %s25, 1
      %p346 = por %p344, %p345
      %p347 = scmp.ne.s32.totalorder %s339, %s342
      %p348 = scmp.eq.s32.totalorder %s25, 0
      %p349 = por %p347, %p348
      %p350 = scmp.ne.s32.totalorder %s339, %s342
      %p351 = scmp.eq.s32.totalorder %s30, 1
      %p352 = por %p350, %p351
      %p353 = scmp.ne.s32.totalorder %s342, %s343
      %p354 = scmp.eq.s32.totalorder %s30, 0
      %p355 = por %p353, %p354
      %p356 = scmp.ne.s32.totalorder %s342, %s343
      %p357 = scmp.eq.s32.totalorder %s31, 1
      %p358 = por %p356, %p357
      %p360 = scmp.ne.s32.totalorder %s343, %s359
      %p361 = scmp.eq.s32.totalorder %s31, 0
      %p362 = por %p360, %p361
      %s363 = ssub.s32 %s25, %s32
      %p364 = scmp.eq.s32.totalorder %s363, 0
      %s366 = sadd.s32 %s365, 1
      %s367 = scalar_select %p364, %s365, %s366
      %p370 = pneg %p364
      %p371 = scmp.eq.s32.totalorder %s25, 1
      %p372 = por %p370, %p371
      %p373 = scmp.ne.s32.totalorder %s365, %s368
      %p374 = scmp.eq.s32.totalorder %s25, 0
      %p375 = por %p373, %p374
      %p376 = scmp.ne.s32.totalorder %s365, %s368
      %p377 = scmp.eq.s32.totalorder %s30, 1
      %p378 = por %p376, %p377
      %p379 = scmp.ne.s32.totalorder %s368, %s369
      %p380 = scmp.eq.s32.totalorder %s30, 0
      %p381 = por %p379, %p380
      %p382 = scmp.ne.s32.totalorder %s368, %s369
      %p383 = scmp.eq.s32.totalorder %s31, 1
      %p384 = por %p382, %p383
      %p386 = scmp.ne.s32.totalorder %s369, %s385
      %p387 = scmp.eq.s32.totalorder %s31, 0
      %p388 = por %p386, %p387
      %p389 = scmp.le.s32.totalorder 1, %s25
      %p390 = scmp.lt.s32.totalorder %s25, 3
      %p391 = pnand %p389, %p390
      %p392 = pneg %p391
      // Predicated region
      $region9: #{_lambda_.5} parent=5 // pred_check
        _
      $region10: #{_lambda_.5} parent=5 // pred_check_branch
        %394 = sbr.rel (%p391) target = $region12
      $region11: #{_lambda_.5} parent=5 // pred_region
        %s395 = ssub.s32 %s25, 1
        // Predicated region
        $region13: #{_lambda_.5} parent=11 // pred_check
          %p396 = pneg %p98
        $region14: #{_lambda_.5} parent=11 // pred_check_branch
          %398 = sbr.rel (%p396) target = $region16
        $region15: #{_lambda_.5} parent=11 // pred_region
          _
        $region16: #{_lambda_.5} parent=11 // pred_fallthru
          _
        // Predicated region
        $region17: #{_lambda_.5} parent=11 // pred_check
          %p399 = pneg %p119
        $region18: #{_lambda_.5} parent=11 // pred_check_branch
          %401 = sbr.rel (%p399) target = $region20
        $region19: #{_lambda_.5} parent=11 // pred_region
          _
        $region20: #{_lambda_.5} parent=11 // pred_fallthru
          _
        // Predicated region
        $region21: #{_lambda_.5} parent=11 // pred_check
          %p402 = pneg %p140
        $region22: #{_lambda_.5} parent=11 // pred_check_branch
          %404 = sbr.rel (%p402) target = $region24
        $region23: #{_lambda_.5} parent=11 // pred_region
          _
        $region24: #{_lambda_.5} parent=11 // pred_fallthru
          _
        // Predicated region
        $region25: #{_lambda_.5} parent=11 // pred_check
          %p405 = pneg %p161
        $region26: #{_lambda_.5} parent=11 // pred_check_branch
          %407 = sbr.rel (%p405) target = $region28
        $region27: #{_lambda_.5} parent=11 // pred_region
          _
        $region28: #{_lambda_.5} parent=11 // pred_fallthru
          _
        // Predicated region
        $region29: #{_lambda_.5} parent=11 // pred_check
          %p408 = pneg %p182
        $region30: #{_lambda_.5} parent=11 // pred_check_branch
          %410 = sbr.rel (%p408) target = $region32
        $region31: #{_lambda_.5} parent=11 // pred_region
          _
        $region32: #{_lambda_.5} parent=11 // pred_fallthru
          _
        // Predicated region
        $region33: #{_lambda_.5} parent=11 // pred_check
          %p411 = pneg %p203
        $region34: #{_lambda_.5} parent=11 // pred_check_branch
          %413 = sbr.rel (%p411) target = $region36
        $region35: #{_lambda_.5} parent=11 // pred_region
          _
        $region36: #{_lambda_.5} parent=11 // pred_fallthru
          _
        // Predicated region
        $region37: #{_lambda_.5} parent=11 // pred_check
          %p414 = pneg %p224
        $region38: #{_lambda_.5} parent=11 // pred_check_branch
          %416 = sbr.rel (%p414) target = $region40
        $region39: #{_lambda_.5} parent=11 // pred_region
          _
        $region40: #{_lambda_.5} parent=11 // pred_fallthru
          _
        // Predicated region
        $region41: #{_lambda_.5} parent=11 // pred_check
          %p417 = pneg %p245
        $region42: #{_lambda_.5} parent=11 // pred_check_branch
          %419 = sbr.rel (%p417) target = $region44
        $region43: #{_lambda_.5} parent=11 // pred_region
          _
        $region44: #{_lambda_.5} parent=11 // pred_fallthru
          _
        // Predicated region
        $region45: #{_lambda_.5} parent=11 // pred_check
          %p420 = pneg %p266
        $region46: #{_lambda_.5} parent=11 // pred_check_branch
          %422 = sbr.rel (%p420) target = $region48
        $region47: #{_lambda_.5} parent=11 // pred_region
          _
        $region48: #{_lambda_.5} parent=11 // pred_fallthru
          _
        // Predicated region
        $region49: #{_lambda_.5} parent=11 // pred_check
          %p423 = pneg %p287
        $region50: #{_lambda_.5} parent=11 // pred_check_branch
          %425 = sbr.rel (%p423) target = $region52
        $region51: #{_lambda_.5} parent=11 // pred_region
          _
        $region52: #{_lambda_.5} parent=11 // pred_fallthru
          _
        // Predicated region
        $region53: #{_lambda_.5} parent=11 // pred_check
          %p426 = pneg %p308
        $region54: #{_lambda_.5} parent=11 // pred_check_branch
          %428 = sbr.rel (%p426) target = $region56
        $region55: #{_lambda_.5} parent=11 // pred_region
          _
        $region56: #{_lambda_.5} parent=11 // pred_fallthru
          _
        // Predicated region
        $region57: #{_lambda_.5} parent=11 // pred_check
          %p429 = pneg %p329
        $region58: #{_lambda_.5} parent=11 // pred_check_branch
          %431 = sbr.rel (%p429) target = $region60
        $region59: #{_lambda_.5} parent=11 // pred_region
          _
        $region60: #{_lambda_.5} parent=11 // pred_fallthru
          _
      $region12: #{_lambda_.5} parent=5 // pred_fallthru
        _
      %p432 = scmp.lt.s32.totalorder %s25, 2
      // Predicated region
      $region61: #{_lambda_.5} parent=5 // pred_check
        %p433 = pneg %p432
      $region62: #{_lambda_.5} parent=5 // pred_check_branch
        %435 = sbr.rel (%p433) target = $region64
      $region63: #{_lambda_.5} parent=5 // pred_region
        // Predicated region
        $region65: #{_lambda_.5} parent=63 // pred_check
          %p436 = pneg %p45
        $region66: #{_lambda_.5} parent=63 // pred_check_branch
          %438 = sbr.rel (%p436) target = $region68
        $region67: #{_lambda_.5} parent=63 // pred_region
          %p439 = scmp.lt.s32.totalorder %s25, 1
          %s440 = scalar_select %p439, %s25, 1
          %s441 = smul.addr %s440, 4
          %s442 = scalar_lea.vmem %s0, %s441
        $region68: #{_lambda_.5} parent=63 // pred_fallthru
          _
        // Predicated region
        $region69: #{_lambda_.5} parent=63 // pred_check
          %p443 = pneg %p71
        $region70: #{_lambda_.5} parent=63 // pred_check_branch
          %445 = sbr.rel (%p443) target = $region72
        $region71: #{_lambda_.5} parent=63 // pred_region
          %p446 = scmp.lt.s32.totalorder %s25, 1
          %s447 = scalar_select %p446, %s25, 1
          %s448 = scalar_lea.vmem %s1, %s447
        $region72: #{_lambda_.5} parent=63 // pred_fallthru
          _
      $region64: #{_lambda_.5} parent=5 // pred_fallthru
        _
      %p449 = scmp.le.s32.totalorder 1, %s25
      %p450 = scmp.lt.s32.totalorder %s25, 3
      %p451 = pnand %p449, %p450
      %p452 = pneg %p451
      // Predicated region
      $region73: #{_lambda_.5} parent=5 // pred_check
        _
      $region74: #{_lambda_.5} parent=5 // pred_check_branch
        %454 = sbr.rel (%p451) target = $region76
      $region75: #{_lambda_.5} parent=5 // pred_region
        %s455 = ssub.s32 %s25, 1
        %p456 = scmp.lt.s32.totalorder %s30, 1
        %s457 = scalar_select %p456, %s30, 1
        %s458 = smul.addr %s457, 4
        %s459 = scalar_lea.vmem %s0, %s458
        %p460 = pneg %p51
        %p461 = pneg %p48
        %p462 = scmp.lt.s32.totalorder %s30, 1
        %s463 = scalar_select %p462, %s30, 1
        %s464 = scalar_lea.vmem %s1, %s463
        %p465 = pneg %p77
        %p466 = pneg %p74
        %p467 = pneg %p98
        %p468 = pneg %p95
        %p469 = pneg %p119
        %p470 = pneg %p116
        %p471 = pneg %p140
        %p472 = pneg %p137
        %p473 = pneg %p161
        %p474 = pneg %p158
        %p475 = pneg %p182
        %p476 = pneg %p179
        %p477 = pneg %p203
        %p478 = pneg %p200
        %p479 = pneg %p224
        %p480 = pneg %p221
        %p481 = pneg %p245
        %p482 = pneg %p242
        %p483 = pneg %p266
        %p484 = pneg %p263
        %p485 = pneg %p287
        %p486 = pneg %p284
        %p487 = pneg %p308
        %p488 = pneg %p305
        %p489 = pneg %p329
        %p490 = pneg %p326
        %p491 = pneg %p355
        %p492 = pneg %p352
        %p493 = scmp.lt.s32.totalorder %s30, 1
        %s494 = scalar_select %p493, %s30, 1
        %s495 = smul.addr %s494, 4
        %s496 = scalar_lea.vmem %s14, %s495
        %p497 = pneg %p381
        %p498 = pneg %p378
        %s499 = sand.u32 %s368, 1
        %s500 = scalar_lea.sflag [#allocation3], %s499
        %s501 = sand.u32 %s368, 1
        %s502 = scalar_lea.vmem [#allocation2], %s501
        %p503 = scmp.lt.s32.totalorder %s30, 1
        %s504 = scalar_select %p503, %s30, 1
        %s505 = smul.addr %s504, 4
        %s506 = scalar_lea.vmem %s0, %s505
        %p507 = scmp.lt.s32.totalorder %s30, 1
        %s508 = scalar_select %p507, %s30, 1
        %s509 = scalar_lea.vmem %s1, %s508
        %p510 = scmp.lt.s32.totalorder %s30, 1
        %s511 = scalar_select %p510, %s30, 1
        %s512 = smul.addr %s511, 4
        %s513 = scalar_lea.vmem %s14, %s512
        %v515 = vld [vmem:[%s506] sm:$0xf]
        %v516 = vunpack.c.l.bf16 %v515
        %v517 = vld [vmem:[%s2] sm:$0xf]
        %v518 = vld [vmem:[%s2 + $0x4] sm:$0xf]
        %v519 = vld [vmem:[%s2 + $0x8] sm:$0xf]
        %v520 = vld [vmem:[%s2 + $0xc] sm:$0xf]
        %v521 = vld [vmem:[%s3] sm:$0x1]
        %v523 = vlaneseq
        %v524 = vshrl.u32 %v523, 7
        %v525 = vsub.s32 0, %v524
        %v526 = vrot.slane %v521, %v525
        %v532 = vunpack.c.l.b16 %v517
        %v533 = vunpack.c.l.b16 %v518
        %v534 = vunpack.c.l.b16 %v519
        %v535 = vunpack.c.l.b16 %v520
        %v536 = vpack.c.b16 %v533, %v532
        %v537 = vpack.c.b16 %v535, %v534
        %vm540 = vcmask 261120
        %v542 = vsel %vm540, %v515, 0
        %544 = vmatprep.subr.bf16.mxu0 0
        %545 = vmatpush1.bf16.msra.mxu0 %v536
        %546 = vmatprep.subr.bf16.mxu0 0
        %547 = vmatpush1.bf16.msra.mxu0 %v537
        %548 = vmatprep.subr.bf16.mxu0 0
        %549 = vmatpush1.bf16.msra.mxu0 0
        %550 = vmatprep.subr.bf16.mxu0 0
        %551 = vmatpush1.bf16.msra.mxu0 0
        %552 = vmatprep.subr.bf16.mxu0 0
        %553 = vmatpush1.bf16.msra.mxu0 0
        %554 = vmatprep.subr.bf16.mxu0 0
        %555 = vmatpush1.bf16.msra.mxu0 0
        %556 = vmatprep.subr.bf16.mxu0 0
        %557 = vmatpush1.bf16.msra.mxu0 0
        %558 = vmatprep.subr.bf16.mxu0 0
        %559 = vmatpush1.bf16.msra.mxu0 0
        %560 = vmatprep.subr.bf16.mxu0 0
        %561 = vmatpush1.bf16.msra.mxu0 0
        %562 = vmatprep.subr.bf16.mxu0 0
        %563 = vmatpush1.bf16.msra.mxu0 0
        %564 = vmatprep.subr.bf16.mxu0 0
        %565 = vmatpush1.bf16.msra.mxu0 0
        %566 = vmatprep.subr.bf16.mxu0 0
        %567 = vmatpush1.bf16.msra.mxu0 0
        %568 = vmatprep.subr.bf16.mxu0 0
        %569 = vmatpush1.bf16.msra.mxu0 0
        %570 = vmatprep.subr.bf16.mxu0 0
        %571 = vmatpush1.bf16.msra.mxu0 0
        %572 = vmatprep.subr.bf16.mxu0 0
        %573 = vmatpush1.bf16.msra.mxu0 0
        %574 = vmatprep.subr.bf16.mxu0 0
        %575 = vmatpush1.bf16.msra.mxu0 0
        %576 = vmatprep.mubr.bf16.mxu0 0
        %577 = vmatmul.mubr.bf16.gmra.mrb[0].mxu0 %v542
        %v578 = vpop.f32.mrb[0].mxu0
        %v579 = vadd.f32 %v526, %v578
        %v580 = vpop.f32.mrb[0].mxu0
        %v581 = vpop.f32.mrb[0].mxu0
        %v582 = vpop.f32.mrb[0].mxu0
        %583 = vdwg.mxu0
        %585 = vrot.lane.b32.xlu0 %v579, 120
        %v586 = vpop.permute.xlu0 %585
        %588 = vrot.lane.b32.xlu0 %v579, 112
        %v589 = vpop.permute.xlu0 %588
        %591 = vrot.lane.b32.xlu0 %v579, 104
        %v592 = vpop.permute.xlu0 %591
        %v594 = vcombine.low %v579, %v589
        %v595 = vcombine.high %v579, %v589
        %v597 = vunpack.c.l.s4 1983009808
        %v598 = vunpack.c.0.s8 %v597
        %v599 = vlaneseq
        %v600 = vshrl.u32 %v599, 7
        %v601 = vsub.s32 %v598, %v600
        %v602 = vrot.slane %v594, %v601
        %v604 = vunpack.c.l.s4 1983009808
        %v605 = vunpack.c.0.s8 %v604
        %v606 = vlaneseq
        %v607 = vshrl.u32 %v606, 7
        %v608 = vsub.s32 %v605, %v607
        %v609 = vrot.slane %v595, %v608
        %v610 = vcombine.low %v586, %v592
        %v611 = vcombine.high %v586, %v592
        %v613 = vunpack.c.l.s4 1983009808
        %v614 = vunpack.c.0.s8 %v613
        %v615 = vlaneseq
        %v616 = vshrl.u32 %v615, 7
        %v617 = vsub.s32 %v614, %v616
        %v618 = vrot.slane %v610, %v617
        %v620 = vunpack.c.l.s4 1983009808
        %v621 = vunpack.c.0.s8 %v620
        %v622 = vlaneseq
        %v623 = vshrl.u32 %v622, 7
        %v624 = vsub.s32 %v621, %v623
        %v625 = vrot.slane %v611, %v624
        %v626 = vcombine.low %v602, %v618
        %v627 = vcombine.high %v602, %v618
        %v629 = vunpack.c.l.s4 1934713408
        %v630 = vunpack.c.0.s8 %v629
        %v631 = vlaneseq
        %v632 = vshrl.u32 %v631, 7
        %v633 = vsub.s32 %v630, %v632
        %v634 = vrot.slane %v626, %v633
        %v636 = vunpack.c.l.s4 1934713408
        %v637 = vunpack.c.0.s8 %v636
        %v638 = vlaneseq
        %v639 = vshrl.u32 %v638, 7
        %v640 = vsub.s32 %v637, %v639
        %v641 = vrot.slane %v627, %v640
        %v642 = vcombine.low %v609, %v625
        %v643 = vcombine.high %v609, %v625
        %v645 = vunpack.c.l.s4 1934713408
        %v646 = vunpack.c.0.s8 %v645
        %v647 = vlaneseq
        %v648 = vshrl.u32 %v647, 7
        %v649 = vsub.s32 %v646, %v648
        %v650 = vrot.slane %v642, %v649
        %v652 = vunpack.c.l.s4 1934713408
        %v653 = vunpack.c.0.s8 %v652
        %v654 = vlaneseq
        %v655 = vshrl.u32 %v654, 7
        %v656 = vsub.s32 %v653, %v655
        %v657 = vrot.slane %v643, %v656
        %v658 = vcombine.high %v634, 0.0
        %v659 = vcombine.high %v641, 0.0
        %v660 = vcombine.high %v650, 0.0
        %v661 = vcombine.high %v657, 0.0
        %v662 = vcombine.low %v634, %v641
        %v664 = vunpack.c.l.s4 1983009808
        %v665 = vunpack.c.0.s8 %v664
        %v666 = vlaneseq
        %v667 = vshrl.u32 %v666, 7
        %v668 = vsub.s32 %v665, %v667
        %v669 = vrot.slane %v662, %v668
        %v670 = vcombine.low %v658, %v659
        %v672 = vunpack.c.l.s4 1983009808
        %v673 = vunpack.c.0.s8 %v672
        %v674 = vlaneseq
        %v675 = vshrl.u32 %v674, 7
        %v676 = vsub.s32 %v673, %v675
        %v677 = vrot.slane %v670, %v676
        %v678 = vcombine.low %v650, %v657
        %v680 = vunpack.c.l.s4 1983009808
        %v681 = vunpack.c.0.s8 %v680
        %v682 = vlaneseq
        %v683 = vshrl.u32 %v682, 7
        %v684 = vsub.s32 %v681, %v683
        %v685 = vrot.slane %v678, %v684
        %v686 = vcombine.low %v660, %v661
        %v688 = vunpack.c.l.s4 1983009808
        %v689 = vunpack.c.0.s8 %v688
        %v690 = vlaneseq
        %v691 = vshrl.u32 %v690, 7
        %v692 = vsub.s32 %v689, %v691
        %v693 = vrot.slane %v686, %v692
        %v694 = vcombine.low %v669, %v677
        %v695 = vcombine.high %v669, %v677
        %v697 = vunpack.c.l.s4 1934713408
        %v698 = vunpack.c.0.s8 %v697
        %v699 = vlaneseq
        %v700 = vshrl.u32 %v699, 7
        %v701 = vsub.s32 %v698, %v700
        %v702 = vrot.slane %v694, %v701
        %v704 = vunpack.c.l.s4 1934713408
        %v705 = vunpack.c.0.s8 %v704
        %v706 = vlaneseq
        %v707 = vshrl.u32 %v706, 7
        %v708 = vsub.s32 %v705, %v707
        %v709 = vrot.slane %v695, %v708
        %v710 = vcombine.low %v685, %v693
        %v711 = vcombine.high %v685, %v693
        %v713 = vunpack.c.l.s4 1934713408
        %v714 = vunpack.c.0.s8 %v713
        %v715 = vlaneseq
        %v716 = vshrl.u32 %v715, 7
        %v717 = vsub.s32 %v714, %v716
        %v718 = vrot.slane %v710, %v717
        %v720 = vunpack.c.l.s4 1934713408
        %v721 = vunpack.c.0.s8 %v720
        %v722 = vlaneseq
        %v723 = vshrl.u32 %v722, 7
        %v724 = vsub.s32 %v721, %v723
        %v725 = vrot.slane %v711, %v724
        %v726 = vcombine.low %v702, %v718
        %v727 = vcombine.high %v702, %v718
        %v728 = vcombine.low %v709, %v725
        %v729 = vcombine.high %v709, %v725
        %v730 = vpack.c.bf16 %v726, %v726
        %v731 = vpack.c.bf16 %v727, %v727
        %v732 = vpack.c.bf16 %v728, %v728
        %v733 = vpack.c.bf16 %v729, %v729
        %734 = vrot.lane.b32.xlu0 %v579, 96
        %v735 = vpop.permute.xlu0 %734
        %736 = vrot.lane.b32.xlu0 %v586, 96
        %v737 = vpop.permute.xlu0 %736
        %738 = vrot.lane.b32.xlu0 %v589, 96
        %v739 = vpop.permute.xlu0 %738
        %740 = vrot.lane.b32.xlu0 %v592, 96
        %v741 = vpop.permute.xlu0 %740
        %v746 = vcombine.low %v735, %v739
        %v747 = vcombine.high %v735, %v739
        %v749 = vunpack.c.l.s4 1983009808
        %v750 = vunpack.c.0.s8 %v749
        %v751 = vlaneseq
        %v752 = vshrl.u32 %v751, 7
        %v753 = vsub.s32 %v750, %v752
        %v754 = vrot.slane %v746, %v753
        %v756 = vunpack.c.l.s4 1983009808
        %v757 = vunpack.c.0.s8 %v756
        %v758 = vlaneseq
        %v759 = vshrl.u32 %v758, 7
        %v760 = vsub.s32 %v757, %v759
        %v761 = vrot.slane %v747, %v760
        %v762 = vcombine.low %v737, %v741
        %v763 = vcombine.high %v737, %v741
        %v765 = vunpack.c.l.s4 1983009808
        %v766 = vunpack.c.0.s8 %v765
        %v767 = vlaneseq
        %v768 = vshrl.u32 %v767, 7
        %v769 = vsub.s32 %v766, %v768
        %v770 = vrot.slane %v762, %v769
        %v772 = vunpack.c.l.s4 1983009808
        %v773 = vunpack.c.0.s8 %v772
        %v774 = vlaneseq
        %v775 = vshrl.u32 %v774, 7
        %v776 = vsub.s32 %v773, %v775
        %v777 = vrot.slane %v763, %v776
        %v778 = vcombine.low %v754, %v770
        %v779 = vcombine.high %v754, %v770
        %v781 = vunpack.c.l.s4 1934713408
        %v782 = vunpack.c.0.s8 %v781
        %v783 = vlaneseq
        %v784 = vshrl.u32 %v783, 7
        %v785 = vsub.s32 %v782, %v784
        %v786 = vrot.slane %v778, %v785
        %v788 = vunpack.c.l.s4 1934713408
        %v789 = vunpack.c.0.s8 %v788
        %v790 = vlaneseq
        %v791 = vshrl.u32 %v790, 7
        %v792 = vsub.s32 %v789, %v791
        %v793 = vrot.slane %v779, %v792
        %v794 = vcombine.low %v761, %v777
        %v795 = vcombine.high %v761, %v777
        %v797 = vunpack.c.l.s4 1934713408
        %v798 = vunpack.c.0.s8 %v797
        %v799 = vlaneseq
        %v800 = vshrl.u32 %v799, 7
        %v801 = vsub.s32 %v798, %v800
        %v802 = vrot.slane %v794, %v801
        %v804 = vunpack.c.l.s4 1934713408
        %v805 = vunpack.c.0.s8 %v804
        %v806 = vlaneseq
        %v807 = vshrl.u32 %v806, 7
        %v808 = vsub.s32 %v805, %v807
        %v809 = vrot.slane %v795, %v808
        %v810 = vcombine.high %v786, 0.0
        %v811 = vcombine.high %v793, 0.0
        %v812 = vcombine.high %v802, 0.0
        %v813 = vcombine.high %v809, 0.0
        %v814 = vcombine.low %v786, %v793
        %v816 = vunpack.c.l.s4 1983009808
        %v817 = vunpack.c.0.s8 %v816
        %v818 = vlaneseq
        %v819 = vshrl.u32 %v818, 7
        %v820 = vsub.s32 %v817, %v819
        %v821 = vrot.slane %v814, %v820
        %v822 = vcombine.low %v810, %v811
        %v824 = vunpack.c.l.s4 1983009808
        %v825 = vunpack.c.0.s8 %v824
        %v826 = vlaneseq
        %v827 = vshrl.u32 %v826, 7
        %v828 = vsub.s32 %v825, %v827
        %v829 = vrot.slane %v822, %v828
        %v830 = vcombine.low %v802, %v809
        %v832 = vunpack.c.l.s4 1983009808
        %v833 = vunpack.c.0.s8 %v832
        %v834 = vlaneseq
        %v835 = vshrl.u32 %v834, 7
        %v836 = vsub.s32 %v833, %v835
        %v837 = vrot.slane %v830, %v836
        %v838 = vcombine.low %v812, %v813
        %v840 = vunpack.c.l.s4 1983009808
        %v841 = vunpack.c.0.s8 %v840
        %v842 = vlaneseq
        %v843 = vshrl.u32 %v842, 7
        %v844 = vsub.s32 %v841, %v843
        %v845 = vrot.slane %v838, %v844
        %v846 = vcombine.low %v821, %v829
        %v847 = vcombine.high %v821, %v829
        %v849 = vunpack.c.l.s4 1934713408
        %v850 = vunpack.c.0.s8 %v849
        %v851 = vlaneseq
        %v852 = vshrl.u32 %v851, 7
        %v853 = vsub.s32 %v850, %v852
        %v854 = vrot.slane %v846, %v853
        %v856 = vunpack.c.l.s4 1934713408
        %v857 = vunpack.c.0.s8 %v856
        %v858 = vlaneseq
        %v859 = vshrl.u32 %v858, 7
        %v860 = vsub.s32 %v857, %v859
        %v861 = vrot.slane %v847, %v860
        %v862 = vcombine.low %v837, %v845
        %v863 = vcombine.high %v837, %v845
        %v865 = vunpack.c.l.s4 1934713408
        %v866 = vunpack.c.0.s8 %v865
        %v867 = vlaneseq
        %v868 = vshrl.u32 %v867, 7
        %v869 = vsub.s32 %v866, %v868
        %v870 = vrot.slane %v862, %v869
        %v872 = vunpack.c.l.s4 1934713408
        %v873 = vunpack.c.0.s8 %v872
        %v874 = vlaneseq
        %v875 = vshrl.u32 %v874, 7
        %v876 = vsub.s32 %v873, %v875
        %v877 = vrot.slane %v863, %v876
        %v878 = vcombine.low %v854, %v870
        %v879 = vcombine.high %v854, %v870
        %v880 = vcombine.low %v861, %v877
        %v881 = vcombine.high %v861, %v877
        %v882 = vpack.c.bf16 %v878, %v878
        %v883 = vpack.c.bf16 %v879, %v879
        %v884 = vpack.c.bf16 %v880, %v880
        %v885 = vpack.c.bf16 %v881, %v881
        %886 = vrot.lane.b32.xlu0 %v579, 64
        %v887 = vpop.permute.xlu0 %886
        %888 = vrot.lane.b32.xlu0 %v586, 64
        %v889 = vpop.permute.xlu0 %888
        %890 = vrot.lane.b32.xlu0 %v589, 64
        %v891 = vpop.permute.xlu0 %890
        %892 = vrot.lane.b32.xlu0 %v592, 64
        %v893 = vpop.permute.xlu0 %892
        %v898 = vcombine.low %v887, %v891
        %v899 = vcombine.high %v887, %v891
        %v901 = vunpack.c.l.s4 1983009808
        %v902 = vunpack.c.0.s8 %v901
        %v903 = vlaneseq
        %v904 = vshrl.u32 %v903, 7
        %v905 = vsub.s32 %v902, %v904
        %v906 = vrot.slane %v898, %v905
        %v908 = vunpack.c.l.s4 1983009808
        %v909 = vunpack.c.0.s8 %v908
        %v910 = vlaneseq
        %v911 = vshrl.u32 %v910, 7
        %v912 = vsub.s32 %v909, %v911
        %v913 = vrot.slane %v899, %v912
        %v914 = vcombine.low %v889, %v893
        %v915 = vcombine.high %v889, %v893
        %v917 = vunpack.c.l.s4 1983009808
        %v918 = vunpack.c.0.s8 %v917
        %v919 = vlaneseq
        %v920 = vshrl.u32 %v919, 7
        %v921 = vsub.s32 %v918, %v920
        %v922 = vrot.slane %v914, %v921
        %v924 = vunpack.c.l.s4 1983009808
        %v925 = vunpack.c.0.s8 %v924
        %v926 = vlaneseq
        %v927 = vshrl.u32 %v926, 7
        %v928 = vsub.s32 %v925, %v927
        %v929 = vrot.slane %v915, %v928
        %v930 = vcombine.low %v906, %v922
        %v931 = vcombine.high %v906, %v922
        %v933 = vunpack.c.l.s4 1934713408
        %v934 = vunpack.c.0.s8 %v933
        %v935 = vlaneseq
        %v936 = vshrl.u32 %v935, 7
        %v937 = vsub.s32 %v934, %v936
        %v938 = vrot.slane %v930, %v937
        %v940 = vunpack.c.l.s4 1934713408
        %v941 = vunpack.c.0.s8 %v940
        %v942 = vlaneseq
        %v943 = vshrl.u32 %v942, 7
        %v944 = vsub.s32 %v941, %v943
        %v945 = vrot.slane %v931, %v944
        %v946 = vcombine.low %v913, %v929
        %v947 = vcombine.high %v913, %v929
        %v949 = vunpack.c.l.s4 1934713408
        %v950 = vunpack.c.0.s8 %v949
        %v951 = vlaneseq
        %v952 = vshrl.u32 %v951, 7
        %v953 = vsub.s32 %v950, %v952
        %v954 = vrot.slane %v946, %v953
        %v956 = vunpack.c.l.s4 1934713408
        %v957 = vunpack.c.0.s8 %v956
        %v958 = vlaneseq
        %v959 = vshrl.u32 %v958, 7
        %v960 = vsub.s32 %v957, %v959
        %v961 = vrot.slane %v947, %v960
        %v962 = vcombine.high %v938, 0.0
        %v963 = vcombine.high %v945, 0.0
        %v964 = vcombine.high %v954, 0.0
        %v965 = vcombine.high %v961, 0.0
        %v966 = vcombine.low %v938, %v945
        %v968 = vunpack.c.l.s4 1983009808
        %v969 = vunpack.c.0.s8 %v968
        %v970 = vlaneseq
        %v971 = vshrl.u32 %v970, 7
        %v972 = vsub.s32 %v969, %v971
        %v973 = vrot.slane %v966, %v972
        %v974 = vcombine.low %v962, %v963
        %v976 = vunpack.c.l.s4 1983009808
        %v977 = vunpack.c.0.s8 %v976
        %v978 = vlaneseq
        %v979 = vshrl.u32 %v978, 7
        %v980 = vsub.s32 %v977, %v979
        %v981 = vrot.slane %v974, %v980
        %v982 = vcombine.low %v954, %v961
        %v984 = vunpack.c.l.s4 1983009808
        %v985 = vunpack.c.0.s8 %v984
        %v986 = vlaneseq
        %v987 = vshrl.u32 %v986, 7
        %v988 = vsub.s32 %v985, %v987
        %v989 = vrot.slane %v982, %v988
        %v990 = vcombine.low %v964, %v965
        %v992 = vunpack.c.l.s4 1983009808
        %v993 = vunpack.c.0.s8 %v992
        %v994 = vlaneseq
        %v995 = vshrl.u32 %v994, 7
        %v996 = vsub.s32 %v993, %v995
        %v997 = vrot.slane %v990, %v996
        %v998 = vcombine.low %v973, %v981
        %v999 = vcombine.high %v973, %v981
        %v1001 = vunpack.c.l.s4 1934713408
        %v1002 = vunpack.c.0.s8 %v1001
        %v1003 = vlaneseq
        %v1004 = vshrl.u32 %v1003, 7
        %v1005 = vsub.s32 %v1002, %v1004
        %v1006 = vrot.slane %v998, %v1005
        %v1008 = vunpack.c.l.s4 1934713408
        %v1009 = vunpack.c.0.s8 %v1008
        %v1010 = vlaneseq
        %v1011 = vshrl.u32 %v1010, 7
        %v1012 = vsub.s32 %v1009, %v1011
        %v1013 = vrot.slane %v999, %v1012
        %v1014 = vcombine.low %v989, %v997
        %v1015 = vcombine.high %v989, %v997
        %v1017 = vunpack.c.l.s4 1934713408
        %v1018 = vunpack.c.0.s8 %v1017
        %v1019 = vlaneseq
        %v1020 = vshrl.u32 %v1019, 7
        %v1021 = vsub.s32 %v1018, %v1020
        %v1022 = vrot.slane %v1014, %v1021
        %v1024 = vunpack.c.l.s4 1934713408
        %v1025 = vunpack.c.0.s8 %v1024
        %v1026 = vlaneseq
        %v1027 = vshrl.u32 %v1026, 7
        %v1028 = vsub.s32 %v1025, %v1027
        %v1029 = vrot.slane %v1015, %v1028
        %v1030 = vcombine.low %v1006, %v1022
        %v1031 = vcombine.high %v1006, %v1022
        %v1032 = vcombine.low %v1013, %v1029
        %v1033 = vcombine.high %v1013, %v1029
        %v1034 = vpack.c.bf16 %v1030, %v1030
        %v1035 = vpack.c.bf16 %v1031, %v1031
        %v1036 = vpack.c.bf16 %v1032, %v1032
        %v1037 = vpack.c.bf16 %v1033, %v1033
        %v1038 = vld [vmem:[%s509] sm:$0x1]
        %v1039 = vsub.f32 1.0, %v1038
        %v1040 = vmul.f32 %v1039, -1e+09
        %v1042 = vlaneseq
        %v1043 = vshrl.u32 %v1042, 7
        %v1044 = vsub.s32 0, %v1043
        %v1045 = vrot.slane %v1040, %v1044
        %vm1047 = vcmask 64512
        %v1049 = vsel %vm1047, %v730, 0
        %v1052 = vsel %vm1047, %v882, 0
        %1054 = vmatprep.subr.bf16.mxu0 0
        %1055 = vmatpush1.bf16.xpose.msra.mxu0 %v1052
        %1056 = vmatprep.subr.bf16.mxu0 0
        %1057 = vmatpush1.bf16.xpose.msra.mxu0 0
        %1058 = vmatprep.subr.bf16.mxu0 0
        %1059 = vmatpush1.bf16.xpose.msra.mxu0 0
        %1060 = vmatprep.subr.bf16.mxu0 0
        %1061 = vmatpush1.bf16.xpose.msra.mxu0 0
        %1062 = vmatprep.subr.bf16.mxu0 0
        %1063 = vmatpush1.bf16.xpose.msra.mxu0 0
        %1064 = vmatprep.subr.bf16.mxu0 0
        %1065 = vmatpush1.bf16.xpose.msra.mxu0 0
        %1066 = vmatprep.subr.bf16.mxu0 0
        %1067 = vmatpush1.bf16.xpose.msra.mxu0 0
        %1068 = vmatprep.subr.bf16.mxu0 0
        %1069 = vmatpush1.bf16.xpose.msra.mxu0 0
        %1070 = vmatprep.subr.bf16.mxu0 0
        %1071 = vmatpush1.bf16.xpose.msra.mxu0 0
        %1072 = vmatprep.subr.bf16.mxu0 0
        %1073 = vmatpush1.bf16.xpose.msra.mxu0 0
        %1074 = vmatprep.subr.bf16.mxu0 0
        %1075 = vmatpush1.bf16.xpose.msra.mxu0 0
        %1076 = vmatprep.subr.bf16.mxu0 0
        %1077 = vmatpush1.bf16.xpose.msra.mxu0 0
        %1078 = vmatprep.subr.bf16.mxu0 0
        %1079 = vmatpush1.bf16.xpose.msra.mxu0 0
        %1080 = vmatprep.subr.bf16.mxu0 0
        %1081 = vmatpush1.bf16.xpose.msra.mxu0 0
        %1082 = vmatprep.subr.bf16.mxu0 0
        %1083 = vmatpush1.bf16.xpose.msra.mxu0 0
        %1084 = vmatprep.subr.bf16.mxu0 0
        %1085 = vmatpush1.bf16.xpose.msra.mxu0 0
        %1086 = vmatprep.mubr.bf16.mxu0 0
        %1087 = vmatmul.mubr.bf16.gmra.mrb[0].mxu0 %v1049
        %v1088 = vpop.f32.mrb[0].mxu0
        %v1089 = vadd.f32 %v1045, %v1088
        %v1090 = vpop.f32.mrb[0].mxu0
        %v1091 = vpop.f32.mrb[0].mxu0
        %v1092 = vpop.f32.mrb[0].mxu0
        %1093 = vdwg.mxu0
        %v1095 = vsel %vm1047, %v731, 0
        %v1098 = vsel %vm1047, %v883, 0
        %1100 = vmatprep.subr.bf16.mxu0 0
        %1101 = vmatpush1.bf16.xpose.msra.mxu0 %v1098
        %1102 = vmatprep.subr.bf16.mxu0 0
        %1103 = vmatpush1.bf16.xpose.msra.mxu0 0
        %1104 = vmatprep.subr.bf16.mxu0 0
        %1105 = vmatpush1.bf16.xpose.msra.mxu0 0
        %1106 = vmatprep.subr.bf16.mxu0 0
        %1107 = vmatpush1.bf16.xpose.msra.mxu0 0
        %1108 = vmatprep.subr.bf16.mxu0 0
        %1109 = vmatpush1.bf16.xpose.msra.mxu0 0
        %1110 = vmatprep.subr.bf16.mxu0 0
        %1111 = vmatpush1.bf16.xpose.msra.mxu0 0
        %1112 = vmatprep.subr.bf16.mxu0 0
        %1113 = vmatpush1.bf16.xpose.msra.mxu0 0
        %1114 = vmatprep.subr.bf16.mxu0 0
        %1115 = vmatpush1.bf16.xpose.msra.mxu0 0
        %1116 = vmatprep.subr.bf16.mxu0 0
        %1117 = vmatpush1.bf16.xpose.msra.mxu0 0
        %1118 = vmatprep.subr.bf16.mxu0 0
        %1119 = vmatpush1.bf16.xpose.msra.mxu0 0
        %1120 = vmatprep.subr.bf16.mxu0 0
        %1121 = vmatpush1.bf16.xpose.msra.mxu0 0
        %1122 = vmatprep.subr.bf16.mxu0 0
        %1123 = vmatpush1.bf16.xpose.msra.mxu0 0
        %1124 = vmatprep.subr.bf16.mxu0 0
        %1125 = vmatpush1.bf16.xpose.msra.mxu0 0
        %1126 = vmatprep.subr.bf16.mxu0 0
        %1127 = vmatpush1.bf16.xpose.msra.mxu0 0
        %1128 = vmatprep.subr.bf16.mxu0 0
        %1129 = vmatpush1.bf16.xpose.msra.mxu0 0
        %1130 = vmatprep.subr.bf16.mxu0 0
        %1131 = vmatpush1.bf16.xpose.msra.mxu0 0
        %1132 = vmatprep.mubr.bf16.mxu0 0
        %1133 = vmatmul.mubr.bf16.gmra.mrb[0].mxu0 %v1095
        %v1134 = vpop.f32.mrb[0].mxu0
        %v1135 = vadd.f32 %v1045, %v1134
        %v1136 = vpop.f32.mrb[0].mxu0
        %v1137 = vpop.f32.mrb[0].mxu0
        %v1138 = vpop.f32.mrb[0].mxu0
        %1139 = vdwg.mxu0
        %v1141 = vsel %vm1047, %v732, 0
        %v1144 = vsel %vm1047, %v884, 0
        %1146 = vmatprep.subr.bf16.mxu0 0
        %1147 = vmatpush1.bf16.xpose.msra.mxu0 %v1144
        %1148 = vmatprep.subr.bf16.mxu0 0
        %1149 = vmatpush1.bf16.xpose.msra.mxu0 0
        %1150 = vmatprep.subr.bf16.mxu0 0
        %1151 = vmatpush1.bf16.xpose.msra.mxu0 0
        %1152 = vmatprep.subr.bf16.mxu0 0
        %1153 = vmatpush1.bf16.xpose.msra.mxu0 0
        %1154 = vmatprep.subr.bf16.mxu0 0
        %1155 = vmatpush1.bf16.xpose.msra.mxu0 0
        %1156 = vmatprep.subr.bf16.mxu0 0
        %1157 = vmatpush1.bf16.xpose.msra.mxu0 0
        %1158 = vmatprep.subr.bf16.mxu0 0
        %1159 = vmatpush1.bf16.xpose.msra.mxu0 0
        %1160 = vmatprep.subr.bf16.mxu0 0
        %1161 = vmatpush1.bf16.xpose.msra.mxu0 0
        %1162 = vmatprep.subr.bf16.mxu0 0
        %1163 = vmatpush1.bf16.xpose.msra.mxu0 0
        %1164 = vmatprep.subr.bf16.mxu0 0
        %1165 = vmatpush1.bf16.xpose.msra.mxu0 0
        %1166 = vmatprep.subr.bf16.mxu0 0
        %1167 = vmatpush1.bf16.xpose.msra.mxu0 0
        %1168 = vmatprep.subr.bf16.mxu0 0
        %1169 = vmatpush1.bf16.xpose.msra.mxu0 0
        %1170 = vmatprep.subr.bf16.mxu0 0
        %1171 = vmatpush1.bf16.xpose.msra.mxu0 0
        %1172 = vmatprep.subr.bf16.mxu0 0
        %1173 = vmatpush1.bf16.xpose.msra.mxu0 0
        %1174 = vmatprep.subr.bf16.mxu0 0
        %1175 = vmatpush1.bf16.xpose.msra.mxu0 0
        %1176 = vmatprep.subr.bf16.mxu0 0
        %1177 = vmatpush1.bf16.xpose.msra.mxu0 0
        %1178 = vmatprep.mubr.bf16.mxu0 0
        %1179 = vmatmul.mubr.bf16.gmra.mrb[0].mxu0 %v1141
        %v1180 = vpop.f32.mrb[0].mxu0
        %v1181 = vadd.f32 %v1045, %v1180
        %v1182 = vpop.f32.mrb[0].mxu0
        %v1183 = vpop.f32.mrb[0].mxu0
        %v1184 = vpop.f32.mrb[0].mxu0
        %1185 = vdwg.mxu0
        %v1187 = vsel %vm1047, %v733, 0
        %v1190 = vsel %vm1047, %v885, 0
        %1192 = vmatprep.subr.bf16.mxu0 0
        %1193 = vmatpush1.bf16.xpose.msra.mxu0 %v1190
        %1194 = vmatprep.subr.bf16.mxu0 0
        %1195 = vmatpush1.bf16.xpose.msra.mxu0 0
        %1196 = vmatprep.subr.bf16.mxu0 0
        %1197 = vmatpush1.bf16.xpose.msra.mxu0 0
        %1198 = vmatprep.subr.bf16.mxu0 0
        %1199 = vmatpush1.bf16.xpose.msra.mxu0 0
        %1200 = vmatprep.subr.bf16.mxu0 0
        %1201 = vmatpush1.bf16.xpose.msra.mxu0 0
        %1202 = vmatprep.subr.bf16.mxu0 0
        %1203 = vmatpush1.bf16.xpose.msra.mxu0 0
        %1204 = vmatprep.subr.bf16.mxu0 0
        %1205 = vmatpush1.bf16.xpose.msra.mxu0 0
        %1206 = vmatprep.subr.bf16.mxu0 0
        %1207 = vmatpush1.bf16.xpose.msra.mxu0 0
        %1208 = vmatprep.subr.bf16.mxu0 0
        %1209 = vmatpush1.bf16.xpose.msra.mxu0 0
        %1210 = vmatprep.subr.bf16.mxu0 0
        %1211 = vmatpush1.bf16.xpose.msra.mxu0 0
        %1212 = vmatprep.subr.bf16.mxu0 0
        %1213 = vmatpush1.bf16.xpose.msra.mxu0 0
        %1214 = vmatprep.subr.bf16.mxu0 0
        %1215 = vmatpush1.bf16.xpose.msra.mxu0 0
        %1216 = vmatprep.subr.bf16.mxu0 0
        %1217 = vmatpush1.bf16.xpose.msra.mxu0 0
        %1218 = vmatprep.subr.bf16.mxu0 0
        %1219 = vmatpush1.bf16.xpose.msra.mxu0 0
        %1220 = vmatprep.subr.bf16.mxu0 0
        %1221 = vmatpush1.bf16.xpose.msra.mxu0 0
        %1222 = vmatprep.subr.bf16.mxu0 0
        %1223 = vmatpush1.bf16.xpose.msra.mxu0 0
        %1224 = vmatprep.mubr.bf16.mxu0 0
        %1225 = vmatmul.mubr.bf16.gmra.mrb[0].mxu0 %v1187
        %v1226 = vpop.f32.mrb[0].mxu0
        %v1227 = vadd.f32 %v1045, %v1226
        %v1228 = vpop.f32.mrb[0].mxu0
        %v1229 = vpop.f32.mrb[0].mxu0
        %v1230 = vpop.f32.mrb[0].mxu0
        %1231 = vdwg.mxu0
        %v1232 = vsel %vm1047, %v1089, -inf
        %1233 = vmax.xlane.f32.xlu0 %v1232
        %v1234 = vpop.xlane.xlu0 %1233
        %v1235 = vsel %vm1047, %v1135, -inf
        %1236 = vmax.xlane.f32.xlu0 %v1235
        %v1237 = vpop.xlane.xlu0 %1236
        %v1238 = vsel %vm1047, %v1181, -inf
        %1239 = vmax.xlane.f32.xlu0 %v1238
        %v1240 = vpop.xlane.xlu0 %1239
        %v1241 = vsel %vm1047, %v1227, -inf
        %1242 = vmax.xlane.f32.xlu0 %v1241
        %v1243 = vpop.xlane.xlu0 %1242
        %v1244 = vsub.f32 %v1089, %v1234
        %v1245 = vsub.f32 %v1135, %v1237
        %v1246 = vsub.f32 %v1181, %v1240
        %v1247 = vsub.f32 %v1227, %v1243
        %v1248 = vmul.f32 %v1244, 1.442695
        %v1249 = vpow.pop %v1248
        %v1250 = vmul.f32 %v1245, 1.442695
        %v1251 = vpow.pop %v1250
        %v1252 = vmul.f32 %v1246, 1.442695
        %v1253 = vpow.pop %v1252
        %v1254 = vmul.f32 %v1247, 1.442695
        %v1255 = vpow.pop %v1254
        %v1256 = vsel %vm1047, %v1249, 0.0
        %1257 = vadd.xlane.f32.xlu0 %v1256
        %v1258 = vpop.xlane.xlu0 %1257
        %v1259 = vsel %vm1047, %v1251, 0.0
        %1260 = vadd.xlane.f32.xlu0 %v1259
        %v1261 = vpop.xlane.xlu0 %1260
        %v1262 = vsel %vm1047, %v1253, 0.0
        %1263 = vadd.xlane.f32.xlu0 %v1262
        %v1264 = vpop.xlane.xlu0 %1263
        %v1265 = vsel %vm1047, %v1255, 0.0
        %1266 = vadd.xlane.f32.xlu0 %v1265
        %v1267 = vpop.xlane.xlu0 %1266
        %v1268 = vrcp.pop %v1258
        %v1269 = vrcp.pop %v1261
        %v1270 = vrcp.pop %v1264
        %v1271 = vrcp.pop %v1267
        %v1272 = vmul.f32 %v1249, %v1268
        %v1273 = vmul.f32 %v1251, %v1269
        %v1274 = vmul.f32 %v1253, %v1270
        %v1275 = vmul.f32 %v1255, %v1271
        %v1276 = vpack.c.bf16 %v1272, %v1272
        %v1277 = vpack.c.bf16 %v1273, %v1273
        %v1278 = vpack.c.bf16 %v1274, %v1274
        %v1279 = vpack.c.bf16 %v1275, %v1275
        %v1281 = vsel %vm1047, %v1276, 0
        %vm1283 = vcmask 1043456
        %v1285 = vsel %vm1283, %v1034, 0
        %1287 = vmatprep.subr.bf16.mxu0 0
        %1288 = vmatpush1.bf16.msra.mxu0 %v1285
        %1289 = vmatprep.subr.bf16.mxu0 0
        %1290 = vmatpush1.bf16.msra.mxu0 0
        %1291 = vmatprep.subr.bf16.mxu0 0
        %1292 = vmatpush1.bf16.msra.mxu0 0
        %1293 = vmatprep.subr.bf16.mxu0 0
        %1294 = vmatpush1.bf16.msra.mxu0 0
        %1295 = vmatprep.subr.bf16.mxu0 0
        %1296 = vmatpush1.bf16.msra.mxu0 0
        %1297 = vmatprep.subr.bf16.mxu0 0
        %1298 = vmatpush1.bf16.msra.mxu0 0
        %1299 = vmatprep.subr.bf16.mxu0 0
        %1300 = vmatpush1.bf16.msra.mxu0 0
        %1301 = vmatprep.subr.bf16.mxu0 0
        %1302 = vmatpush1.bf16.msra.mxu0 0
        %1303 = vmatprep.subr.bf16.mxu0 0
        %1304 = vmatpush1.bf16.msra.mxu0 0
        %1305 = vmatprep.subr.bf16.mxu0 0
        %1306 = vmatpush1.bf16.msra.mxu0 0
        %1307 = vmatprep.subr.bf16.mxu0 0
        %1308 = vmatpush1.bf16.msra.mxu0 0
        %1309 = vmatprep.subr.bf16.mxu0 0
        %1310 = vmatpush1.bf16.msra.mxu0 0
        %1311 = vmatprep.subr.bf16.mxu0 0
        %1312 = vmatpush1.bf16.msra.mxu0 0
        %1313 = vmatprep.subr.bf16.mxu0 0
        %1314 = vmatpush1.bf16.msra.mxu0 0
        %1315 = vmatprep.subr.bf16.mxu0 0
        %1316 = vmatpush1.bf16.msra.mxu0 0
        %1317 = vmatprep.subr.bf16.mxu0 0
        %1318 = vmatpush1.bf16.msra.mxu0 0
        %1319 = vmatprep.mubr.bf16.mxu0 0
        %1320 = vmatmul.mubr.bf16.gmra.mrb[0].mxu0 %v1281
        %v1321 = vpop.f32.mrb[0].mxu0
        %v1322 = vadd.f32 0.0, %v1321
        %v1323 = vpop.f32.mrb[0].mxu0
        %v1324 = vpop.f32.mrb[0].mxu0
        %v1325 = vpop.f32.mrb[0].mxu0
        %1326 = vdwg.mxu0
        %v1328 = vsel %vm1047, %v1277, 0
        %v1331 = vsel %vm1283, %v1035, 0
        %1333 = vmatprep.subr.bf16.mxu0 0
        %1334 = vmatpush1.bf16.msra.mxu0 %v1331
        %1335 = vmatprep.subr.bf16.mxu0 0
        %1336 = vmatpush1.bf16.msra.mxu0 0
        %1337 = vmatprep.subr.bf16.mxu0 0
        %1338 = vmatpush1.bf16.msra.mxu0 0
        %1339 = vmatprep.subr.bf16.mxu0 0
        %1340 = vmatpush1.bf16.msra.mxu0 0
        %1341 = vmatprep.subr.bf16.mxu0 0
        %1342 = vmatpush1.bf16.msra.mxu0 0
        %1343 = vmatprep.subr.bf16.mxu0 0
        %1344 = vmatpush1.bf16.msra.mxu0 0
        %1345 = vmatprep.subr.bf16.mxu0 0
        %1346 = vmatpush1.bf16.msra.mxu0 0
        %1347 = vmatprep.subr.bf16.mxu0 0
        %1348 = vmatpush1.bf16.msra.mxu0 0
        %1349 = vmatprep.subr.bf16.mxu0 0
        %1350 = vmatpush1.bf16.msra.mxu0 0
        %1351 = vmatprep.subr.bf16.mxu0 0
        %1352 = vmatpush1.bf16.msra.mxu0 0
        %1353 = vmatprep.subr.bf16.mxu0 0
        %1354 = vmatpush1.bf16.msra.mxu0 0
        %1355 = vmatprep.subr.bf16.mxu0 0
        %1356 = vmatpush1.bf16.msra.mxu0 0
        %1357 = vmatprep.subr.bf16.mxu0 0
        %1358 = vmatpush1.bf16.msra.mxu0 0
        %1359 = vmatprep.subr.bf16.mxu0 0
        %1360 = vmatpush1.bf16.msra.mxu0 0
        %1361 = vmatprep.subr.bf16.mxu0 0
        %1362 = vmatpush1.bf16.msra.mxu0 0
        %1363 = vmatprep.subr.bf16.mxu0 0
        %1364 = vmatpush1.bf16.msra.mxu0 0
        %1365 = vmatprep.mubr.bf16.mxu0 0
        %1366 = vmatmul.mubr.bf16.gmra.mrb[0].mxu0 %v1328
        %v1367 = vpop.f32.mrb[0].mxu0
        %v1368 = vadd.f32 0.0, %v1367
        %v1369 = vpop.f32.mrb[0].mxu0
        %v1370 = vpop.f32.mrb[0].mxu0
        %v1371 = vpop.f32.mrb[0].mxu0
        %1372 = vdwg.mxu0
        %v1374 = vsel %vm1047, %v1278, 0
        %v1377 = vsel %vm1283, %v1036, 0
        %1379 = vmatprep.subr.bf16.mxu0 0
        %1380 = vmatpush1.bf16.msra.mxu0 %v1377
        %1381 = vmatprep.subr.bf16.mxu0 0
        %1382 = vmatpush1.bf16.msra.mxu0 0
        %1383 = vmatprep.subr.bf16.mxu0 0
        %1384 = vmatpush1.bf16.msra.mxu0 0
        %1385 = vmatprep.subr.bf16.mxu0 0
        %1386 = vmatpush1.bf16.msra.mxu0 0
        %1387 = vmatprep.subr.bf16.mxu0 0
        %1388 = vmatpush1.bf16.msra.mxu0 0
        %1389 = vmatprep.subr.bf16.mxu0 0
        %1390 = vmatpush1.bf16.msra.mxu0 0
        %1391 = vmatprep.subr.bf16.mxu0 0
        %1392 = vmatpush1.bf16.msra.mxu0 0
        %1393 = vmatprep.subr.bf16.mxu0 0
        %1394 = vmatpush1.bf16.msra.mxu0 0
        %1395 = vmatprep.subr.bf16.mxu0 0
        %1396 = vmatpush1.bf16.msra.mxu0 0
        %1397 = vmatprep.subr.bf16.mxu0 0
        %1398 = vmatpush1.bf16.msra.mxu0 0
        %1399 = vmatprep.subr.bf16.mxu0 0
        %1400 = vmatpush1.bf16.msra.mxu0 0
        %1401 = vmatprep.subr.bf16.mxu0 0
        %1402 = vmatpush1.bf16.msra.mxu0 0
        %1403 = vmatprep.subr.bf16.mxu0 0
        %1404 = vmatpush1.bf16.msra.mxu0 0
        %1405 = vmatprep.subr.bf16.mxu0 0
        %1406 = vmatpush1.bf16.msra.mxu0 0
        %1407 = vmatprep.subr.bf16.mxu0 0
        %1408 = vmatpush1.bf16.msra.mxu0 0
        %1409 = vmatprep.subr.bf16.mxu0 0
        %1410 = vmatpush1.bf16.msra.mxu0 0
        %1411 = vmatprep.mubr.bf16.mxu0 0
        %1412 = vmatmul.mubr.bf16.gmra.mrb[0].mxu0 %v1374
        %v1413 = vpop.f32.mrb[0].mxu0
        %v1414 = vadd.f32 0.0, %v1413
        %v1415 = vpop.f32.mrb[0].mxu0
        %v1416 = vpop.f32.mrb[0].mxu0
        %v1417 = vpop.f32.mrb[0].mxu0
        %1418 = vdwg.mxu0
        %v1420 = vsel %vm1047, %v1279, 0
        %v1423 = vsel %vm1283, %v1037, 0
        %1425 = vmatprep.subr.bf16.mxu0 0
        %1426 = vmatpush1.bf16.msra.mxu0 %v1423
        %1427 = vmatprep.subr.bf16.mxu0 0
        %1428 = vmatpush1.bf16.msra.mxu0 0
        %1429 = vmatprep.subr.bf16.mxu0 0
        %1430 = vmatpush1.bf16.msra.mxu0 0
        %1431 = vmatprep.subr.bf16.mxu0 0
        %1432 = vmatpush1.bf16.msra.mxu0 0
        %1433 = vmatprep.subr.bf16.mxu0 0
        %1434 = vmatpush1.bf16.msra.mxu0 0
        %1435 = vmatprep.subr.bf16.mxu0 0
        %1436 = vmatpush1.bf16.msra.mxu0 0
        %1437 = vmatprep.subr.bf16.mxu0 0
        %1438 = vmatpush1.bf16.msra.mxu0 0
        %1439 = vmatprep.subr.bf16.mxu0 0
        %1440 = vmatpush1.bf16.msra.mxu0 0
        %1441 = vmatprep.subr.bf16.mxu0 0
        %1442 = vmatpush1.bf16.msra.mxu0 0
        %1443 = vmatprep.subr.bf16.mxu0 0
        %1444 = vmatpush1.bf16.msra.mxu0 0
        %1445 = vmatprep.subr.bf16.mxu0 0
        %1446 = vmatpush1.bf16.msra.mxu0 0
        %1447 = vmatprep.subr.bf16.mxu0 0
        %1448 = vmatpush1.bf16.msra.mxu0 0
        %1449 = vmatprep.subr.bf16.mxu0 0
        %1450 = vmatpush1.bf16.msra.mxu0 0
        %1451 = vmatprep.subr.bf16.mxu0 0
        %1452 = vmatpush1.bf16.msra.mxu0 0
        %1453 = vmatprep.subr.bf16.mxu0 0
        %1454 = vmatpush1.bf16.msra.mxu0 0
        %1455 = vmatprep.subr.bf16.mxu0 0
        %1456 = vmatpush1.bf16.msra.mxu0 0
        %1457 = vmatprep.mubr.bf16.mxu0 0
        %1458 = vmatmul.mubr.bf16.gmra.mrb[0].mxu0 %v1420
        %v1459 = vpop.f32.mrb[0].mxu0
        %v1460 = vadd.f32 0.0, %v1459
        %v1461 = vpop.f32.mrb[0].mxu0
        %v1462 = vpop.f32.mrb[0].mxu0
        %v1463 = vpop.f32.mrb[0].mxu0
        %1464 = vdwg.mxu0
        %v1465 = vcombine.low %v1322, %v1414
        %v1466 = vcombine.high %v1322, %v1414
        %v1468 = vunpack.c.l.s4 1983009808
        %v1469 = vunpack.c.0.s8 %v1468
        %v1470 = vlaneseq
        %v1471 = vshrl.u32 %v1470, 7
        %v1472 = vsub.s32 %v1469, %v1471
        %v1473 = vrot.slane %v1465, %v1472
        %v1475 = vunpack.c.l.s4 1983009808
        %v1476 = vunpack.c.0.s8 %v1475
        %v1477 = vlaneseq
        %v1478 = vshrl.u32 %v1477, 7
        %v1479 = vsub.s32 %v1476, %v1478
        %v1480 = vrot.slane %v1466, %v1479
        %v1481 = vcombine.low %v1368, %v1460
        %v1482 = vcombine.high %v1368, %v1460
        %v1484 = vunpack.c.l.s4 1983009808
        %v1485 = vunpack.c.0.s8 %v1484
        %v1486 = vlaneseq
        %v1487 = vshrl.u32 %v1486, 7
        %v1488 = vsub.s32 %v1485, %v1487
        %v1489 = vrot.slane %v1481, %v1488
        %v1491 = vunpack.c.l.s4 1983009808
        %v1492 = vunpack.c.0.s8 %v1491
        %v1493 = vlaneseq
        %v1494 = vshrl.u32 %v1493, 7
        %v1495 = vsub.s32 %v1492, %v1494
        %v1496 = vrot.slane %v1482, %v1495
        %v1497 = vcombine.low %v1473, %v1489
        %v1498 = vcombine.high %v1473, %v1489
        %v1500 = vunpack.c.l.s4 1934713408
        %v1501 = vunpack.c.0.s8 %v1500
        %v1502 = vlaneseq
        %v1503 = vshrl.u32 %v1502, 7
        %v1504 = vsub.s32 %v1501, %v1503
        %v1505 = vrot.slane %v1497, %v1504
        %v1507 = vunpack.c.l.s4 1934713408
        %v1508 = vunpack.c.0.s8 %v1507
        %v1509 = vlaneseq
        %v1510 = vshrl.u32 %v1509, 7
        %v1511 = vsub.s32 %v1508, %v1510
        %v1512 = vrot.slane %v1498, %v1511
        %v1513 = vcombine.low %v1480, %v1496
        %v1514 = vcombine.high %v1480, %v1496
        %v1516 = vunpack.c.l.s4 1934713408
        %v1517 = vunpack.c.0.s8 %v1516
        %v1518 = vlaneseq
        %v1519 = vshrl.u32 %v1518, 7
        %v1520 = vsub.s32 %v1517, %v1519
        %v1521 = vrot.slane %v1513, %v1520
        %v1523 = vunpack.c.l.s4 1934713408
        %v1524 = vunpack.c.0.s8 %v1523
        %v1525 = vlaneseq
        %v1526 = vshrl.u32 %v1525, 7
        %v1527 = vsub.s32 %v1524, %v1526
        %v1528 = vrot.slane %v1514, %v1527
        %v1529 = vcombine.high %v1505, 0.0
        %v1530 = vcombine.high %v1512, 0.0
        %v1531 = vcombine.high %v1521, 0.0
        %v1532 = vcombine.high %v1528, 0.0
        %v1533 = vcombine.low %v1505, %v1512
        %v1535 = vunpack.c.l.s4 1983009808
        %v1536 = vunpack.c.0.s8 %v1535
        %v1537 = vlaneseq
        %v1538 = vshrl.u32 %v1537, 7
        %v1539 = vsub.s32 %v1536, %v1538
        %v1540 = vrot.slane %v1533, %v1539
        %v1541 = vcombine.low %v1529, %v1530
        %v1543 = vunpack.c.l.s4 1983009808
        %v1544 = vunpack.c.0.s8 %v1543
        %v1545 = vlaneseq
        %v1546 = vshrl.u32 %v1545, 7
        %v1547 = vsub.s32 %v1544, %v1546
        %v1548 = vrot.slane %v1541, %v1547
        %v1549 = vcombine.low %v1521, %v1528
        %v1551 = vunpack.c.l.s4 1983009808
        %v1552 = vunpack.c.0.s8 %v1551
        %v1553 = vlaneseq
        %v1554 = vshrl.u32 %v1553, 7
        %v1555 = vsub.s32 %v1552, %v1554
        %v1556 = vrot.slane %v1549, %v1555
        %v1557 = vcombine.low %v1531, %v1532
        %v1559 = vunpack.c.l.s4 1983009808
        %v1560 = vunpack.c.0.s8 %v1559
        %v1561 = vlaneseq
        %v1562 = vshrl.u32 %v1561, 7
        %v1563 = vsub.s32 %v1560, %v1562
        %v1564 = vrot.slane %v1557, %v1563
        %v1565 = vcombine.low %v1540, %v1548
        %v1566 = vcombine.high %v1540, %v1548
        %v1568 = vunpack.c.l.s4 1934713408
        %v1569 = vunpack.c.0.s8 %v1568
        %v1570 = vlaneseq
        %v1571 = vshrl.u32 %v1570, 7
        %v1572 = vsub.s32 %v1569, %v1571
        %v1573 = vrot.slane %v1565, %v1572
        %v1575 = vunpack.c.l.s4 1934713408
        %v1576 = vunpack.c.0.s8 %v1575
        %v1577 = vlaneseq
        %v1578 = vshrl.u32 %v1577, 7
        %v1579 = vsub.s32 %v1576, %v1578
        %v1580 = vrot.slane %v1566, %v1579
        %v1581 = vcombine.low %v1556, %v1564
        %v1582 = vcombine.high %v1556, %v1564
        %v1584 = vunpack.c.l.s4 1934713408
        %v1585 = vunpack.c.0.s8 %v1584
        %v1586 = vlaneseq
        %v1587 = vshrl.u32 %v1586, 7
        %v1588 = vsub.s32 %v1585, %v1587
        %v1589 = vrot.slane %v1581, %v1588
        %v1591 = vunpack.c.l.s4 1934713408
        %v1592 = vunpack.c.0.s8 %v1591
        %v1593 = vlaneseq
        %v1594 = vshrl.u32 %v1593, 7
        %v1595 = vsub.s32 %v1592, %v1594
        %v1596 = vrot.slane %v1582, %v1595
        %v1597 = vcombine.low %v1573, %v1589
        %v1598 = vcombine.high %v1573, %v1589
        %v1599 = vcombine.low %v1580, %v1596
        %v1600 = vcombine.high %v1580, %v1596
        %1602 = vrot.lane.b32.xlu0 %v1598, 8
        %v1603 = vpop.permute.xlu0 %1602
        %1606 = vrot.lane.b32.xlu0 %v1599, 16
        %v1607 = vpop.permute.xlu0 %1606
        %1610 = vrot.lane.b32.xlu0 %v1600, 24
        %v1611 = vpop.permute.xlu0 %1610
        %v1613 = vsel %vm1047, %v1597, %v1603
        %vm1614 = vcmask 130048
        %v1615 = vsel %vm1614, %v1613, %v1607
        %vm1616 = vcmask 195584
        %v1617 = vsel %vm1616, %v1615, %v1611
        %v1618 = vpack.c.bf16 %v1617, %v1617
        %v1619 = vld [vmem:[%s4] sm:$0xf]
        %v1620 = vld [vmem:[%s4 + $0x4] sm:$0xf]
        %v1621 = vld [vmem:[%s4 + $0x8] sm:$0xf]
        %v1622 = vld [vmem:[%s4 + $0xc] sm:$0xf]
        %v1623 = vld [vmem:[%s5] sm:$0x1]
        %v1625 = vlaneseq
        %v1626 = vshrl.u32 %v1625, 7
        %v1627 = vsub.s32 0, %v1626
        %v1628 = vrot.slane %v1623, %v1627
        %v1634 = vunpack.c.l.b16 %v1619
        %v1635 = vunpack.c.l.b16 %v1620
        %v1636 = vunpack.c.l.b16 %v1621
        %v1637 = vunpack.c.l.b16 %v1622
        %v1638 = vpack.c.b16 %v1635, %v1634
        %v1639 = vpack.c.b16 %v1637, %v1636
        %v1643 = vsel %vm540, %v1618, 0
        %1645 = vmatprep.subr.bf16.mxu0 0
        %1646 = vmatpush1.bf16.msra.mxu0 %v1638
        %1647 = vmatprep.subr.bf16.mxu0 0
        %1648 = vmatpush1.bf16.msra.mxu0 %v1639
        %1649 = vmatprep.subr.bf16.mxu0 0
        %1650 = vmatpush1.bf16.msra.mxu0 0
        %1651 = vmatprep.subr.bf16.mxu0 0
        %1652 = vmatpush1.bf16.msra.mxu0 0
        %1653 = vmatprep.subr.bf16.mxu0 0
        %1654 = vmatpush1.bf16.msra.mxu0 0
        %1655 = vmatprep.subr.bf16.mxu0 0
        %1656 = vmatpush1.bf16.msra.mxu0 0
        %1657 = vmatprep.subr.bf16.mxu0 0
        %1658 = vmatpush1.bf16.msra.mxu0 0
        %1659 = vmatprep.subr.bf16.mxu0 0
        %1660 = vmatpush1.bf16.msra.mxu0 0
        %1661 = vmatprep.subr.bf16.mxu0 0
        %1662 = vmatpush1.bf16.msra.mxu0 0
        %1663 = vmatprep.subr.bf16.mxu0 0
        %1664 = vmatpush1.bf16.msra.mxu0 0
        %1665 = vmatprep.subr.bf16.mxu0 0
        %1666 = vmatpush1.bf16.msra.mxu0 0
        %1667 = vmatprep.subr.bf16.mxu0 0
        %1668 = vmatpush1.bf16.msra.mxu0 0
        %1669 = vmatprep.subr.bf16.mxu0 0
        %1670 = vmatpush1.bf16.msra.mxu0 0
        %1671 = vmatprep.subr.bf16.mxu0 0
        %1672 = vmatpush1.bf16.msra.mxu0 0
        %1673 = vmatprep.subr.bf16.mxu0 0
        %1674 = vmatpush1.bf16.msra.mxu0 0
        %1675 = vmatprep.subr.bf16.mxu0 0
        %1676 = vmatpush1.bf16.msra.mxu0 0
        %1677 = vmatprep.mubr.bf16.mxu0 0
        %1678 = vmatmul.mubr.bf16.gmra.mrb[0].mxu0 %v1643
        %v1679 = vpop.f32.mrb[0].mxu0
        %v1680 = vadd.f32 %v1628, %v1679
        %v1681 = vpop.f32.mrb[0].mxu0
        %v1682 = vpop.f32.mrb[0].mxu0
        %v1683 = vpop.f32.mrb[0].mxu0
        %1684 = vdwg.mxu0
        %v1685 = vadd.f32 %v516, %v1680
        %v1686 = vld [vmem:[%s6] sm:$0x1]
        %v1687 = vld [vmem:[%s7] sm:$0x1]
        %v1688 = vsel %vm540, %v1685, 0.0
        %1689 = vadd.xlane.f32.xlu0 %v1688
        %v1690 = vpop.xlane.xlu0 %1689
        %v1691 = vrcp.pop 32.0
        %v1692 = vmul.f32 %v1690, %v1691
        %v1693 = vsub.f32 %v1685, %v1692
        %v1694 = vmul.f32 %v1693, %v1693
        %v1695 = vsel %vm540, %v1694, 0.0
        %1696 = vadd.xlane.f32.xlu0 %v1695
        %v1697 = vpop.xlane.xlu0 %1696
        %v1698 = vmul.f32 %v1697, %v1691
        %v1699 = vadd.f32 %v1698, 1e-12
        %v1700 = vrsqrt.pop %v1699
        %v1701 = vmul.f32 %v1693, %v1700
        %v1703 = vlaneseq
        %v1704 = vshrl.u32 %v1703, 7
        %v1705 = vsub.s32 0, %v1704
        %v1706 = vrot.slane %v1686, %v1705
        %v1708 = vmul.f32 %v1701, %v1706
        %v1710 = vlaneseq
        %v1711 = vshrl.u32 %v1710, 7
        %v1712 = vsub.s32 0, %v1711
        %v1713 = vrot.slane %v1687, %v1712
        %v1715 = vadd.f32 %v1708, %v1713
        %v1716 = vpack.c.bf16 %v1715, %v1715
        %v1717 = vld [vmem:[%s8] sm:$0xf]
        %v1718 = vld [vmem:[%s8 + $0x4] sm:$0xf]
        %v1719 = vld [vmem:[%s8 + $0x8] sm:$0xf]
        %v1720 = vld [vmem:[%s8 + $0xc] sm:$0xf]
        %v1721 = vld [vmem:[%s9] sm:$0x1]
        %v1723 = vlaneseq
        %v1724 = vshrl.u32 %v1723, 7
        %v1725 = vsub.s32 0, %v1724
        %v1726 = vrot.slane %v1721, %v1725
        %v1732 = vunpack.c.l.b16 %v1717
        %v1733 = vunpack.c.l.b16 %v1718
        %v1734 = vunpack.c.l.b16 %v1719
        %v1735 = vunpack.c.l.b16 %v1720
        %v1736 = vpack.c.b16 %v1733, %v1732
        %v1737 = vpack.c.b16 %v1735, %v1734
        %v1741 = vsel %vm540, %v1716, 0
        %1743 = vmatprep.subr.bf16.mxu0 0
        %1744 = vmatpush1.bf16.msra.mxu0 %v1736
        %1745 = vmatprep.subr.bf16.mxu0 0
        %1746 = vmatpush1.bf16.msra.mxu0 %v1737
        %1747 = vmatprep.subr.bf16.mxu0 0
        %1748 = vmatpush1.bf16.msra.mxu0 0
        %1749 = vmatprep.subr.bf16.mxu0 0
        %1750 = vmatpush1.bf16.msra.mxu0 0
        %1751 = vmatprep.subr.bf16.mxu0 0
        %1752 = vmatpush1.bf16.msra.mxu0 0
        %1753 = vmatprep.subr.bf16.mxu0 0
        %1754 = vmatpush1.bf16.msra.mxu0 0
        %1755 = vmatprep.subr.bf16.mxu0 0
        %1756 = vmatpush1.bf16.msra.mxu0 0
        %1757 = vmatprep.subr.bf16.mxu0 0
        %1758 = vmatpush1.bf16.msra.mxu0 0
        %1759 = vmatprep.subr.bf16.mxu0 0
        %1760 = vmatpush1.bf16.msra.mxu0 0
        %1761 = vmatprep.subr.bf16.mxu0 0
        %1762 = vmatpush1.bf16.msra.mxu0 0
        %1763 = vmatprep.subr.bf16.mxu0 0
        %1764 = vmatpush1.bf16.msra.mxu0 0
        %1765 = vmatprep.subr.bf16.mxu0 0
        %1766 = vmatpush1.bf16.msra.mxu0 0
        %1767 = vmatprep.subr.bf16.mxu0 0
        %1768 = vmatpush1.bf16.msra.mxu0 0
        %1769 = vmatprep.subr.bf16.mxu0 0
        %1770 = vmatpush1.bf16.msra.mxu0 0
        %1771 = vmatprep.subr.bf16.mxu0 0
        %1772 = vmatpush1.bf16.msra.mxu0 0
        %1773 = vmatprep.subr.bf16.mxu0 0
        %1774 = vmatpush1.bf16.msra.mxu0 0
        %1775 = vmatprep.mubr.bf16.mxu0 0
        %1776 = vmatmul.mubr.bf16.gmra.mrb[0].mxu0 %v1741
        %v1777 = vpop.f32.mrb[0].mxu0
        %v1778 = vadd.f32 %v1726, %v1777
        %v1779 = vpop.f32.mrb[0].mxu0
        %v1780 = vpop.f32.mrb[0].mxu0
        %v1781 = vpop.f32.mrb[0].mxu0
        %1782 = vdwg.mxu0
        %v1783 = vmul.f32 %v1778, 0.5
        %v1784 = vmul.f32 %v1778, 0.044715
        %v1785 = vmul.f32 %v1784, %v1778
        %v1786 = vmul.f32 %v1785, %v1778
        %v1787 = vadd.f32 %v1778, %v1786
        %v1788 = vmul.f32 %v1787, 0.7978846
        %v1789 = vtanh.pop %v1788
        %v1790 = vadd.f32 %v1789, 1.0
        %v1791 = vmul.f32 %v1783, %v1790
        %v1792 = vpack.c.bf16 %v1791, %v1791
        %v1793 = vld [vmem:[%s10] sm:$0xf]
        %v1794 = vld [vmem:[%s10 + $0x4] sm:$0xf]
        %v1795 = vld [vmem:[%s10 + $0x8] sm:$0xf]
        %v1796 = vld [vmem:[%s10 + $0xc] sm:$0xf]
        %v1797 = vld [vmem:[%s10 + $0x10] sm:$0xf]
        %v1798 = vld [vmem:[%s10 + $0x14] sm:$0xf]
        %v1799 = vld [vmem:[%s10 + $0x18] sm:$0xf]
        %v1800 = vld [vmem:[%s10 + $0x1c] sm:$0xf]
        %v1801 = vld [vmem:[%s11] sm:$0x1]
        %v1803 = vlaneseq
        %v1804 = vshrl.u32 %v1803, 7
        %v1805 = vsub.s32 0, %v1804
        %v1806 = vrot.slane %v1801, %v1805
        %v1816 = vunpack.c.l.b16 %v1793
        %v1817 = vunpack.c.l.b16 %v1794
        %v1818 = vunpack.c.l.b16 %v1795
        %v1819 = vunpack.c.l.b16 %v1796
        %v1820 = vunpack.c.l.b16 %v1797
        %v1821 = vunpack.c.l.b16 %v1798
        %v1822 = vunpack.c.l.b16 %v1799
        %v1823 = vunpack.c.l.b16 %v1800
        %v1824 = vpack.c.b16 %v1817, %v1816
        %v1825 = vpack.c.b16 %v1819, %v1818
        %v1826 = vpack.c.b16 %v1821, %v1820
        %v1827 = vpack.c.b16 %v1823, %v1822
        %vm1832 = vcmask 523264
        %v1834 = vsel %vm1832, %v1792, 0
        %1836 = vmatprep.subr.bf16.mxu0 0
        %1837 = vmatpush1.bf16.msra.mxu0 %v1824
        %1838 = vmatprep.subr.bf16.mxu0 0
        %1839 = vmatpush1.bf16.msra.mxu0 %v1825
        %1840 = vmatprep.subr.bf16.mxu0 0
        %1841 = vmatpush1.bf16.msra.mxu0 %v1826
        %1842 = vmatprep.subr.bf16.mxu0 0
        %1843 = vmatpush1.bf16.msra.mxu0 %v1827
        %1844 = vmatprep.subr.bf16.mxu0 0
        %1845 = vmatpush1.bf16.msra.mxu0 0
        %1846 = vmatprep.subr.bf16.mxu0 0
        %1847 = vmatpush1.bf16.msra.mxu0 0
        %1848 = vmatprep.subr.bf16.mxu0 0
        %1849 = vmatpush1.bf16.msra.mxu0 0
        %1850 = vmatprep.subr.bf16.mxu0 0
        %1851 = vmatpush1.bf16.msra.mxu0 0
        %1852 = vmatprep.subr.bf16.mxu0 0
        %1853 = vmatpush1.bf16.msra.mxu0 0
        %1854 = vmatprep.subr.bf16.mxu0 0
        %1855 = vmatpush1.bf16.msra.mxu0 0
        %1856 = vmatprep.subr.bf16.mxu0 0
        %1857 = vmatpush1.bf16.msra.mxu0 0
        %1858 = vmatprep.subr.bf16.mxu0 0
        %1859 = vmatpush1.bf16.msra.mxu0 0
        %1860 = vmatprep.subr.bf16.mxu0 0
        %1861 = vmatpush1.bf16.msra.mxu0 0
        %1862 = vmatprep.subr.bf16.mxu0 0
        %1863 = vmatpush1.bf16.msra.mxu0 0
        %1864 = vmatprep.subr.bf16.mxu0 0
        %1865 = vmatpush1.bf16.msra.mxu0 0
        %1866 = vmatprep.subr.bf16.mxu0 0
        %1867 = vmatpush1.bf16.msra.mxu0 0
        %1868 = vmatprep.mubr.bf16.mxu0 0
        %1869 = vmatmul.mubr.bf16.gmra.mrb[0].mxu0 %v1834
        %v1870 = vpop.f32.mrb[0].mxu0
        %v1871 = vadd.f32 %v1806, %v1870
        %v1872 = vpop.f32.mrb[0].mxu0
        %v1873 = vpop.f32.mrb[0].mxu0
        %v1874 = vpop.f32.mrb[0].mxu0
        %1875 = vdwg.mxu0
        %v1876 = vadd.f32 %v1715, %v1871
        %v1877 = vld [vmem:[%s12] sm:$0x1]
        %v1878 = vld [vmem:[%s13] sm:$0x1]
        %v1879 = vsel %vm540, %v1876, 0.0
        %1880 = vadd.xlane.f32.xlu0 %v1879
        %v1881 = vpop.xlane.xlu0 %1880
        %v1882 = vmul.f32 %v1881, %v1691
        %v1883 = vsub.f32 %v1876, %v1882
        %v1884 = vmul.f32 %v1883, %v1883
        %v1885 = vsel %vm540, %v1884, 0.0
        %1886 = vadd.xlane.f32.xlu0 %v1885
        %v1887 = vpop.xlane.xlu0 %1886
        %v1888 = vmul.f32 %v1887, %v1691
        %v1889 = vadd.f32 %v1888, 1e-12
        %v1890 = vrsqrt.pop %v1889
        %v1891 = vmul.f32 %v1883, %v1890
        %v1893 = vlaneseq
        %v1894 = vshrl.u32 %v1893, 7
        %v1895 = vsub.s32 0, %v1894
        %v1896 = vrot.slane %v1877, %v1895
        %v1898 = vmul.f32 %v1891, %v1896
        %v1900 = vlaneseq
        %v1901 = vshrl.u32 %v1900, 7
        %v1902 = vsub.s32 0, %v1901
        %v1903 = vrot.slane %v1878, %v1902
        %v1905 = vadd.f32 %v1898, %v1903
        %v1906 = vpack.c.bf16 %v1905, %v1905
        %vm1907 = vcmask 257024
        %1908 = vst.msk [vmem:[%s513] sm:$0xf] %vm1907, %v1906
        %vm1909 = vcmask 253952
        %vm1910 = vsmask.f32 256
        %vm1911 = vmand %vm1909, %vm1910
        %v1912 = vld [vmem:[%s502] sm:$0x1]
        %v1913 = vsel %vm1911, %v1906, %v1912
        %1914 = vst [vmem:[%s502] sm:$0x1] %v1913
        %p1915 = scmp.lt.s32.totalorder %s30, 1
        %s1916 = scalar_select %p1915, %s30, 1
        %s1917 = smul.addr %s1916, 4
        %s1918 = scalar_lea.vmem %s14, %s1917
        %s1919 = sand.u32 %s368, 1
        %s1920 = scalar_lea.sflag [#allocation3], %s1919
        %s1921 = sand.u32 %s368, 1
        %s1922 = scalar_lea.vmem [#allocation2], %s1921
        // Predicated region
        $region77: #{_lambda_.5} parent=75 // pred_check
          %p1923 = pneg %p352
        $region78: #{_lambda_.5} parent=75 // pred_check_branch
          %1925 = sbr.rel (%p1923) target = $region80
        $region79: #{_lambda_.5} parent=75 // pred_region
          _
        $region80: #{_lambda_.5} parent=75 // pred_fallthru
          _
        // Predicated region
        $region81: #{_lambda_.5} parent=75 // pred_check
          %p1926 = pneg %p378
        $region82: #{_lambda_.5} parent=75 // pred_check_branch
          %1928 = sbr.rel (%p1926) target = $region84
        $region83: #{_lambda_.5} parent=75 // pred_region
          %s1930 = ssub.s32 16, 16
          %1931 = vsyncadd %s1920, %s1930
          %s1932 = smul.addr %s30, 16
          %s1933 = scalar_lea.hbm %s15, %s1932
          %s1935 = sshll.u32 %s1922, 4
          %s1936 = int_to_ptr.vmem [resolvable:$true] %s1935
          %1938 = dma.vmem_to_hbm [thread:$0]  %s1936, 16, %s1933, %s1920
        $region84: #{_lambda_.5} parent=75 // pred_fallthru
          _
      $region76: #{_lambda_.5} parent=5 // pred_fallthru
        _
      %p1939 = scmp.le.s32.totalorder 2, %s25
      // Predicated region
      $region85: #{_lambda_.5} parent=5 // pred_check
        %p1940 = pneg %p1939
      $region86: #{_lambda_.5} parent=5 // pred_check_branch
        %1942 = sbr.rel (%p1940) target = $region88
      $region87: #{_lambda_.5} parent=5 // pred_region
        %s1943 = ssub.s32 %s25, 2
        // Predicated region
        $region89: #{_lambda_.5} parent=87 // pred_check
          %p1944 = pneg %p358
        $region90: #{_lambda_.5} parent=87 // pred_check_branch
          %1946 = sbr.rel (%p1944) target = $region92
        $region91: #{_lambda_.5} parent=87 // pred_region
          %p1947 = scmp.lt.s32.totalorder %s31, 1
          %s1948 = scalar_select %p1947, %s31, 1
          %s1949 = smul.addr %s1948, 4
          %s1950 = scalar_lea.vmem %s14, %s1949
        $region92: #{_lambda_.5} parent=87 // pred_fallthru
          _
        // Predicated region
        $region93: #{_lambda_.5} parent=87 // pred_check
          %p1951 = pneg %p384
        $region94: #{_lambda_.5} parent=87 // pred_check_branch
          %1953 = sbr.rel (%p1951) target = $region96
        $region95: #{_lambda_.5} parent=87 // pred_region
          %s1954 = sand.u32 %s369, 1
          %s1955 = scalar_lea.sflag [#allocation3], %s1954
          %s1956 = sand.u32 %s369, 1
          %s1957 = scalar_lea.vmem [#allocation2], %s1956
          %1958 = dma.done %s1955, 16
        $region96: #{_lambda_.5} parent=87 // pred_fallthru
          _
      $region88: #{_lambda_.5} parent=5 // pred_fallthru
        _
    $region6: #{_lambda_.5} parent=1 // loop_footer
      %s29 = sadd.s32 1, %s25
    $region7: #{_lambda_.5} parent=1 // loop_footer_branch
      %24 = sbr.rel target = $region3
    $region8: #{_lambda_.5} parent=1 // loop_exit
      _
    %1959 = vsyncpa [#allocation3], 1
    %s1960 = scalar_lea.sflag [#allocation3], 1
    %1961 = vsyncpa %s1960, 1

// kernel: _lambda_.6
$region0: #{_lambda_.6}
  #allocation0 [shape = 'u32[]', space=smem, size = 0x4, offset = 0x4, fixed_abs, tag = 'smem constant byte address 0x4 - core index']
  #allocation1 [shape = 'u32[144,128]{1,0:T(1,128)}', space=vmem, size = 0x12000, scoped, tag = 'internal scratch']
  %s0 = inlined_call_operand.vmem [shape: bf16[2,8,32], index: 0, kind: input, shape index: {}]
  %s1 = inlined_call_operand.vmem [shape: f32[2,1,8], index: 1, kind: input, shape index: {}]
  %s2 = inlined_call_operand.vmem [shape: bf16[32,96], index: 2, kind: input, shape index: {}]
  %s3 = inlined_call_operand.vmem [shape: f32[1,96], index: 3, kind: input, shape index: {}]
  %s4 = inlined_call_operand.vmem [shape: bf16[32,32], index: 4, kind: input, shape index: {}]
  %s5 = inlined_call_operand.vmem [shape: f32[1,32], index: 5, kind: input, shape index: {}]
  %s6 = inlined_call_operand.vmem [shape: f32[1,32], index: 6, kind: input, shape index: {}]
  %s7 = inlined_call_operand.vmem [shape: f32[1,32], index: 7, kind: input, shape index: {}]
  %s8 = inlined_call_operand.vmem [shape: bf16[32,64], index: 8, kind: input, shape index: {}]
  %s9 = inlined_call_operand.vmem [shape: f32[1,64], index: 9, kind: input, shape index: {}]
  %s10 = inlined_call_operand.vmem [shape: bf16[64,32], index: 10, kind: input, shape index: {}]
  %s11 = inlined_call_operand.vmem [shape: f32[1,32], index: 11, kind: input, shape index: {}]
  %s12 = inlined_call_operand.vmem [shape: f32[1,32], index: 12, kind: input, shape index: {}]
  %s13 = inlined_call_operand.vmem [shape: f32[1,32], index: 13, kind: input, shape index: {}]
  %s14 = inlined_call_operand.hbm [shape: bf16[2,8,32], index: 14, kind: output, shape index: {0}]
  %s15 = inlined_call_operand.vmem [shape: bf16[2,1,32], index: 15, kind: output, shape index: {1}]
  %16 = xla_tuple %s14, %s15
  %s17 = sld [smem:[#allocation0]]
  $region97: #{_lambda_.6} parent=0
    _
  %s19 = ssub.s32 1, %s17
  %s20 = scalar_select 0, %s19, %s17
  $region1: #{_lambda_.6} parent=0
    #allocation2 [shape = 'u8[4096]{0}', space=vmem, size = 0x1000, scoped, tag = 'output window, operand 0']
    #allocation3 [shape = 's32[2]{0}', space=sflag, size = 0x8, scoped, tag = 'scoped memory for _lambda_.6']
    %21 = vsyncpa [#allocation3], 0
    %s22 = scalar_lea.sflag [#allocation3], 1
    %23 = vsyncpa %s22, 0
    loop: start=0, step=1, limit=4
    $region2: #{_lambda_.6} parent=1 // loop_pre_header
      _
    $region3: #{_lambda_.6} parent=1 // loop_header
      %s25 = sphi 0, %s29
      %p26 = scmp.ge.s32.totalorder %s25, 4
      %s35 = sphi 0, %s37
      %s38 = sphi 0, %s35
      %s39 = sphi 0, %s38
      %s55 = sphi 0, %s39
      %s61 = sphi 0, %s63
      %s64 = sphi 0, %s61
      %s65 = sphi 0, %s64
      %s81 = sphi 0, %s65
      %s85 = sphi 0, %s85
      %s87 = sphi 0, %s85
      %s88 = sphi 0, %s87
      %s102 = sphi 0, %s88
      %s106 = sphi 0, %s106
      %s108 = sphi 0, %s106
      %s109 = sphi 0, %s108
      %s123 = sphi 0, %s109
      %s127 = sphi 0, %s127
      %s129 = sphi 0, %s127
      %s130 = sphi 0, %s129
      %s144 = sphi 0, %s130
      %s148 = sphi 0, %s148
      %s150 = sphi 0, %s148
      %s151 = sphi 0, %s150
      %s165 = sphi 0, %s151
      %s169 = sphi 0, %s169
      %s171 = sphi 0, %s169
      %s172 = sphi 0, %s171
      %s186 = sphi 0, %s172
      %s190 = sphi 0, %s190
      %s192 = sphi 0, %s190
      %s193 = sphi 0, %s192
      %s207 = sphi 0, %s193
      %s211 = sphi 0, %s211
      %s213 = sphi 0, %s211
      %s214 = sphi 0, %s213
      %s228 = sphi 0, %s214
      %s232 = sphi 0, %s232
      %s234 = sphi 0, %s232
      %s235 = sphi 0, %s234
      %s249 = sphi 0, %s235
      %s253 = sphi 0, %s253
      %s255 = sphi 0, %s253
      %s256 = sphi 0, %s255
      %s270 = sphi 0, %s256
      %s274 = sphi 0, %s274
      %s276 = sphi 0, %s274
      %s277 = sphi 0, %s276
      %s291 = sphi 0, %s277
      %s295 = sphi 0, %s295
      %s297 = sphi 0, %s295
      %s298 = sphi 0, %s297
      %s312 = sphi 0, %s298
      %s316 = sphi 0, %s316
      %s318 = sphi 0, %s316
      %s319 = sphi 0, %s318
      %s333 = sphi 0, %s319
      %s339 = sphi 0, %s341
      %s342 = sphi 0, %s339
      %s343 = sphi 0, %s342
      %s359 = sphi 0, %s343
      %s365 = sphi 0, %s367
      %s368 = sphi 0, %s365
      %s369 = sphi 0, %s368
      %s385 = sphi 0, %s369
    $region4: #{_lambda_.6} parent=1 // loop_header_branch
      %28 = sbr.rel (%p26) target = $region8
    $region5: #{_lambda_.6} parent=1 // loop_body
      %s30 = ssub.s32 %s25, 1
      %s31 = ssub.s32 %s25, 2
      %s32 = sadd.s32 %s25, 1
      %s33 = ssub.s32 %s25, %s32
      %p34 = scmp.eq.s32.totalorder %s33, 0
      %s36 = sadd.s32 %s35, 1
      %s37 = scalar_select %p34, %s35, %s36
      %p40 = pneg %p34
      %p41 = scmp.eq.s32.totalorder %s25, 1
      %p42 = por %p40, %p41
      %p43 = scmp.ne.s32.totalorder %s35, %s38
      %p44 = scmp.eq.s32.totalorder %s25, 0
      %p45 = por %p43, %p44
      %p46 = scmp.ne.s32.totalorder %s35, %s38
      %p47 = scmp.eq.s32.totalorder %s30, 1
      %p48 = por %p46, %p47
      %p49 = scmp.ne.s32.totalorder %s38, %s39
      %p50 = scmp.eq.s32.totalorder %s30, 0
      %p51 = por %p49, %p50
      %p52 = scmp.ne.s32.totalorder %s38, %s39
      %p53 = scmp.eq.s32.totalorder %s31, 1
      %p54 = por %p52, %p53
      %p56 = scmp.ne.s32.totalorder %s39, %s55
      %p57 = scmp.eq.s32.totalorder %s31, 0
      %p58 = por %p56, %p57
      %s59 = ssub.s32 %s25, %s32
      %p60 = scmp.eq.s32.totalorder %s59, 0
      %s62 = sadd.s32 %s61, 1
      %s63 = scalar_select %p60, %s61, %s62
      %p66 = pneg %p60
      %p67 = scmp.eq.s32.totalorder %s25, 1
      %p68 = por %p66, %p67
      %p69 = scmp.ne.s32.totalorder %s61, %s64
      %p70 = scmp.eq.s32.totalorder %s25, 0
      %p71 = por %p69, %p70
      %p72 = scmp.ne.s32.totalorder %s61, %s64
      %p73 = scmp.eq.s32.totalorder %s30, 1
      %p74 = por %p72, %p73
      %p75 = scmp.ne.s32.totalorder %s64, %s65
      %p76 = scmp.eq.s32.totalorder %s30, 0
      %p77 = por %p75, %p76
      %p78 = scmp.ne.s32.totalorder %s64, %s65
      %p79 = scmp.eq.s32.totalorder %s31, 1
      %p80 = por %p78, %p79
      %p82 = scmp.ne.s32.totalorder %s65, %s81
      %p83 = scmp.eq.s32.totalorder %s31, 0
      %p84 = por %p82, %p83
      %s86 = sadd.s32 %s85, 1
      %p89 = scmp.eq.s32.totalorder %s25, 1
      %p90 = scmp.ne.s32.totalorder %s85, %s87
      %p91 = scmp.eq.s32.totalorder %s25, 0
      %p92 = por %p90, %p91
      %p93 = scmp.ne.s32.totalorder %s85, %s87
      %p94 = scmp.eq.s32.totalorder %s30, 1
      %p95 = por %p93, %p94
      %p96 = scmp.ne.s32.totalorder %s87, %s88
      %p97 = scmp.eq.s32.totalorder %s30, 0
      %p98 = por %p96, %p97
      %p99 = scmp.ne.s32.totalorder %s87, %s88
      %p100 = scmp.eq.s32.totalorder %s31, 1
      %p101 = por %p99, %p100
      %p103 = scmp.ne.s32.totalorder %s88, %s102
      %p104 = scmp.eq.s32.totalorder %s31, 0
      %p105 = por %p103, %p104
      %s107 = sadd.s32 %s106, 1
      %p110 = scmp.eq.s32.totalorder %s25, 1
      %p111 = scmp.ne.s32.totalorder %s106, %s108
      %p112 = scmp.eq.s32.totalorder %s25, 0
      %p113 = por %p111, %p112
      %p114 = scmp.ne.s32.totalorder %s106, %s108
      %p115 = scmp.eq.s32.totalorder %s30, 1
      %p116 = por %p114, %p115
      %p117 = scmp.ne.s32.totalorder %s108, %s109
      %p118 = scmp.eq.s32.totalorder %s30, 0
      %p119 = por %p117, %p118
      %p120 = scmp.ne.s32.totalorder %s108, %s109
      %p121 = scmp.eq.s32.totalorder %s31, 1
      %p122 = por %p120, %p121
      %p124 = scmp.ne.s32.totalorder %s109, %s123
      %p125 = scmp.eq.s32.totalorder %s31, 0
      %p126 = por %p124, %p125
      %s128 = sadd.s32 %s127, 1
      %p131 = scmp.eq.s32.totalorder %s25, 1
      %p132 = scmp.ne.s32.totalorder %s127, %s129
      %p133 = scmp.eq.s32.totalorder %s25, 0
      %p134 = por %p132, %p133
      %p135 = scmp.ne.s32.totalorder %s127, %s129
      %p136 = scmp.eq.s32.totalorder %s30, 1
      %p137 = por %p135, %p136
      %p138 = scmp.ne.s32.totalorder %s129, %s130
      %p139 = scmp.eq.s32.totalorder %s30, 0
      %p140 = por %p138, %p139
      %p141 = scmp.ne.s32.totalorder %s129, %s130
      %p142 = scmp.eq.s32.totalorder %s31, 1
      %p143 = por %p141, %p142
      %p145 = scmp.ne.s32.totalorder %s130, %s144
      %p146 = scmp.eq.s32.totalorder %s31, 0
      %p147 = por %p145, %p146
      %s149 = sadd.s32 %s148, 1
      %p152 = scmp.eq.s32.totalorder %s25, 1
      %p153 = scmp.ne.s32.totalorder %s148, %s150
      %p154 = scmp.eq.s32.totalorder %s25, 0
      %p155 = por %p153, %p154
      %p156 = scmp.ne.s32.totalorder %s148, %s150
      %p157 = scmp.eq.s32.totalorder %s30, 1
      %p158 = por %p156, %p157
      %p159 = scmp.ne.s32.totalorder %s150, %s151
      %p160 = scmp.eq.s32.totalorder %s30, 0
      %p161 = por %p159, %p160
      %p162 = scmp.ne.s32.totalorder %s150, %s151
      %p163 = scmp.eq.s32.totalorder %s31, 1
      %p164 = por %p162, %p163
      %p166 = scmp.ne.s32.totalorder %s151, %s165
      %p167 = scmp.eq.s32.totalorder %s31, 0
      %p168 = por %p166, %p167
      %s170 = sadd.s32 %s169, 1
      %p173 = scmp.eq.s32.totalorder %s25, 1
      %p174 = scmp.ne.s32.totalorder %s169, %s171
      %p175 = scmp.eq.s32.totalorder %s25, 0
      %p176 = por %p174, %p175
      %p177 = scmp.ne.s32.totalorder %s169, %s171
      %p178 = scmp.eq.s32.totalorder %s30, 1
      %p179 = por %p177, %p178
      %p180 = scmp.ne.s32.totalorder %s171, %s172
      %p181 = scmp.eq.s32.totalorder %s30, 0
      %p182 = por %p180, %p181
      %p183 = scmp.ne.s32.totalorder %s171, %s172
      %p184 = scmp.eq.s32.totalorder %s31, 1
      %p185 = por %p183, %p184
      %p187 = scmp.ne.s32.totalorder %s172, %s186
      %p188 = scmp.eq.s32.totalorder %s31, 0
      %p189 = por %p187, %p188
      %s191 = sadd.s32 %s190, 1
      %p194 = scmp.eq.s32.totalorder %s25, 1
      %p195 = scmp.ne.s32.totalorder %s190, %s192
      %p196 = scmp.eq.s32.totalorder %s25, 0
      %p197 = por %p195, %p196
      %p198 = scmp.ne.s32.totalorder %s190, %s192
      %p199 = scmp.eq.s32.totalorder %s30, 1
      %p200 = por %p198, %p199
      %p201 = scmp.ne.s32.totalorder %s192, %s193
      %p202 = scmp.eq.s32.totalorder %s30, 0
      %p203 = por %p201, %p202
      %p204 = scmp.ne.s32.totalorder %s192, %s193
      %p205 = scmp.eq.s32.totalorder %s31, 1
      %p206 = por %p204, %p205
      %p208 = scmp.ne.s32.totalorder %s193, %s207
      %p209 = scmp.eq.s32.totalorder %s31, 0
      %p210 = por %p208, %p209
      %s212 = sadd.s32 %s211, 1
      %p215 = scmp.eq.s32.totalorder %s25, 1
      %p216 = scmp.ne.s32.totalorder %s211, %s213
      %p217 = scmp.eq.s32.totalorder %s25, 0
      %p218 = por %p216, %p217
      %p219 = scmp.ne.s32.totalorder %s211, %s213
      %p220 = scmp.eq.s32.totalorder %s30, 1
      %p221 = por %p219, %p220
      %p222 = scmp.ne.s32.totalorder %s213, %s214
      %p223 = scmp.eq.s32.totalorder %s30, 0
      %p224 = por %p222, %p223
      %p225 = scmp.ne.s32.totalorder %s213, %s214
      %p226 = scmp.eq.s32.totalorder %s31, 1
      %p227 = por %p225, %p226
      %p229 = scmp.ne.s32.totalorder %s214, %s228
      %p230 = scmp.eq.s32.totalorder %s31, 0
      %p231 = por %p229, %p230
      %s233 = sadd.s32 %s232, 1
      %p236 = scmp.eq.s32.totalorder %s25, 1
      %p237 = scmp.ne.s32.totalorder %s232, %s234
      %p238 = scmp.eq.s32.totalorder %s25, 0
      %p239 = por %p237, %p238
      %p240 = scmp.ne.s32.totalorder %s232, %s234
      %p241 = scmp.eq.s32.totalorder %s30, 1
      %p242 = por %p240, %p241
      %p243 = scmp.ne.s32.totalorder %s234, %s235
      %p244 = scmp.eq.s32.totalorder %s30, 0
      %p245 = por %p243, %p244
      %p246 = scmp.ne.s32.totalorder %s234, %s235
      %p247 = scmp.eq.s32.totalorder %s31, 1
      %p248 = por %p246, %p247
      %p250 = scmp.ne.s32.totalorder %s235, %s249
      %p251 = scmp.eq.s32.totalorder %s31, 0
      %p252 = por %p250, %p251
      %s254 = sadd.s32 %s253, 1
      %p257 = scmp.eq.s32.totalorder %s25, 1
      %p258 = scmp.ne.s32.totalorder %s253, %s255
      %p259 = scmp.eq.s32.totalorder %s25, 0
      %p260 = por %p258, %p259
      %p261 = scmp.ne.s32.totalorder %s253, %s255
      %p262 = scmp.eq.s32.totalorder %s30, 1
      %p263 = por %p261, %p262
      %p264 = scmp.ne.s32.totalorder %s255, %s256
      %p265 = scmp.eq.s32.totalorder %s30, 0
      %p266 = por %p264, %p265
      %p267 = scmp.ne.s32.totalorder %s255, %s256
      %p268 = scmp.eq.s32.totalorder %s31, 1
      %p269 = por %p267, %p268
      %p271 = scmp.ne.s32.totalorder %s256, %s270
      %p272 = scmp.eq.s32.totalorder %s31, 0
      %p273 = por %p271, %p272
      %s275 = sadd.s32 %s274, 1
      %p278 = scmp.eq.s32.totalorder %s25, 1
      %p279 = scmp.ne.s32.totalorder %s274, %s276
      %p280 = scmp.eq.s32.totalorder %s25, 0
      %p281 = por %p279, %p280
      %p282 = scmp.ne.s32.totalorder %s274, %s276
      %p283 = scmp.eq.s32.totalorder %s30, 1
      %p284 = por %p282, %p283
      %p285 = scmp.ne.s32.totalorder %s276, %s277
      %p286 = scmp.eq.s32.totalorder %s30, 0
      %p287 = por %p285, %p286
      %p288 = scmp.ne.s32.totalorder %s276, %s277
      %p289 = scmp.eq.s32.totalorder %s31, 1
      %p290 = por %p288, %p289
      %p292 = scmp.ne.s32.totalorder %s277, %s291
      %p293 = scmp.eq.s32.totalorder %s31, 0
      %p294 = por %p292, %p293
      %s296 = sadd.s32 %s295, 1
      %p299 = scmp.eq.s32.totalorder %s25, 1
      %p300 = scmp.ne.s32.totalorder %s295, %s297
      %p301 = scmp.eq.s32.totalorder %s25, 0
      %p302 = por %p300, %p301
      %p303 = scmp.ne.s32.totalorder %s295, %s297
      %p304 = scmp.eq.s32.totalorder %s30, 1
      %p305 = por %p303, %p304
      %p306 = scmp.ne.s32.totalorder %s297, %s298
      %p307 = scmp.eq.s32.totalorder %s30, 0
      %p308 = por %p306, %p307
      %p309 = scmp.ne.s32.totalorder %s297, %s298
      %p310 = scmp.eq.s32.totalorder %s31, 1
      %p311 = por %p309, %p310
      %p313 = scmp.ne.s32.totalorder %s298, %s312
      %p314 = scmp.eq.s32.totalorder %s31, 0
      %p315 = por %p313, %p314
      %s317 = sadd.s32 %s316, 1
      %p320 = scmp.eq.s32.totalorder %s25, 1
      %p321 = scmp.ne.s32.totalorder %s316, %s318
      %p322 = scmp.eq.s32.totalorder %s25, 0
      %p323 = por %p321, %p322
      %p324 = scmp.ne.s32.totalorder %s316, %s318
      %p325 = scmp.eq.s32.totalorder %s30, 1
      %p326 = por %p324, %p325
      %p327 = scmp.ne.s32.totalorder %s318, %s319
      %p328 = scmp.eq.s32.totalorder %s30, 0
      %p329 = por %p327, %p328
      %p330 = scmp.ne.s32.totalorder %s318, %s319
      %p331 = scmp.eq.s32.totalorder %s31, 1
      %p332 = por %p330, %p331
      %p334 = scmp.ne.s32.totalorder %s319, %s333
      %p335 = scmp.eq.s32.totalorder %s31, 0
      %p336 = por %p334, %p335
      %s337 = ssub.s32 %s25, %s32
      %p338 = scmp.eq.s32.totalorder %s337, 0
      %s340 = sadd.s32 %s339, 1
      %s341 = scalar_select %p338, %s339, %s340
      %p344 = pneg %p338
      %p345 = scmp.eq.s32.totalorder %s25, 1
      %p346 = por %p344, %p345
      %p347 = scmp.ne.s32.totalorder %s339, %s342
      %p348 = scmp.eq.s32.totalorder %s25, 0
      %p349 = por %p347, %p348
      %p350 = scmp.ne.s32.totalorder %s339, %s342
      %p351 = scmp.eq.s32.totalorder %s30, 1
      %p352 = por %p350, %p351
      %p353 = scmp.ne.s32.totalorder %s342, %s343
      %p354 = scmp.eq.s32.totalorder %s30, 0
      %p355 = por %p353, %p354
      %p356 = scmp.ne.s32.totalorder %s342, %s343
      %p357 = scmp.eq.s32.totalorder %s31, 1
      %p358 = por %p356, %p357
      %p360 = scmp.ne.s32.totalorder %s343, %s359
      %p361 = scmp.eq.s32.totalorder %s31, 0
      %p362 = por %p360, %p361
      %s363 = ssub.s32 %s25, %s32
      %p364 = scmp.eq.s32.totalorder %s363, 0
      %s366 = sadd.s32 %s365, 1
      %s367 = scalar_select %p364, %s365, %s366
      %p370 = pneg %p364
      %p371 = scmp.eq.s32.totalorder %s25, 1
      %p372 = por %p370, %p371
      %p373 = scmp.ne.s32.totalorder %s365, %s368
      %p374 = scmp.eq.s32.totalorder %s25, 0
      %p375 = por %p373, %p374
      %p376 = scmp.ne.s32.totalorder %s365, %s368
      %p377 = scmp.eq.s32.totalorder %s30, 1
      %p378 = por %p376, %p377
      %p379 = scmp.ne.s32.totalorder %s368, %s369
      %p380 = scmp.eq.s32.totalorder %s30, 0
      %p381 = por %p379, %p380
      %p382 = scmp.ne.s32.totalorder %s368, %s369
      %p383 = scmp.eq.s32.totalorder %s31, 1
      %p384 = por %p382, %p383
      %p386 = scmp.ne.s32.totalorder %s369, %s385
      %p387 = scmp.eq.s32.totalorder %s31, 0
      %p388 = por %p386, %p387
      %p389 = scmp.le.s32.totalorder 1, %s25
      %p390 = scmp.lt.s32.totalorder %s25, 3
      %p391 = pnand %p389, %p390
      %p392 = pneg %p391
      // Predicated region
      $region9: #{_lambda_.6} parent=5 // pred_check
        _
      $region10: #{_lambda_.6} parent=5 // pred_check_branch
        %394 = sbr.rel (%p391) target = $region12
      $region11: #{_lambda_.6} parent=5 // pred_region
        %s395 = ssub.s32 %s25, 1
        // Predicated region
        $region13: #{_lambda_.6} parent=11 // pred_check
          %p396 = pneg %p98
        $region14: #{_lambda_.6} parent=11 // pred_check_branch
          %398 = sbr.rel (%p396) target = $region16
        $region15: #{_lambda_.6} parent=11 // pred_region
          _
        $region16: #{_lambda_.6} parent=11 // pred_fallthru
          _
        // Predicated region
        $region17: #{_lambda_.6} parent=11 // pred_check
          %p399 = pneg %p119
        $region18: #{_lambda_.6} parent=11 // pred_check_branch
          %401 = sbr.rel (%p399) target = $region20
        $region19: #{_lambda_.6} parent=11 // pred_region
          _
        $region20: #{_lambda_.6} parent=11 // pred_fallthru
          _
        // Predicated region
        $region21: #{_lambda_.6} parent=11 // pred_check
          %p402 = pneg %p140
        $region22: #{_lambda_.6} parent=11 // pred_check_branch
          %404 = sbr.rel (%p402) target = $region24
        $region23: #{_lambda_.6} parent=11 // pred_region
          _
        $region24: #{_lambda_.6} parent=11 // pred_fallthru
          _
        // Predicated region
        $region25: #{_lambda_.6} parent=11 // pred_check
          %p405 = pneg %p161
        $region26: #{_lambda_.6} parent=11 // pred_check_branch
          %407 = sbr.rel (%p405) target = $region28
        $region27: #{_lambda_.6} parent=11 // pred_region
          _
        $region28: #{_lambda_.6} parent=11 // pred_fallthru
          _
        // Predicated region
        $region29: #{_lambda_.6} parent=11 // pred_check
          %p408 = pneg %p182
        $region30: #{_lambda_.6} parent=11 // pred_check_branch
          %410 = sbr.rel (%p408) target = $region32
        $region31: #{_lambda_.6} parent=11 // pred_region
          _
        $region32: #{_lambda_.6} parent=11 // pred_fallthru
          _
        // Predicated region
        $region33: #{_lambda_.6} parent=11 // pred_check
          %p411 = pneg %p203
        $region34: #{_lambda_.6} parent=11 // pred_check_branch
          %413 = sbr.rel (%p411) target = $region36
        $region35: #{_lambda_.6} parent=11 // pred_region
          _
        $region36: #{_lambda_.6} parent=11 // pred_fallthru
          _
        // Predicated region
        $region37: #{_lambda_.6} parent=11 // pred_check
          %p414 = pneg %p224
        $region38: #{_lambda_.6} parent=11 // pred_check_branch
          %416 = sbr.rel (%p414) target = $region40
        $region39: #{_lambda_.6} parent=11 // pred_region
          _
        $region40: #{_lambda_.6} parent=11 // pred_fallthru
          _
        // Predicated region
        $region41: #{_lambda_.6} parent=11 // pred_check
          %p417 = pneg %p245
        $region42: #{_lambda_.6} parent=11 // pred_check_branch
          %419 = sbr.rel (%p417) target = $region44
        $region43: #{_lambda_.6} parent=11 // pred_region
          _
        $region44: #{_lambda_.6} parent=11 // pred_fallthru
          _
        // Predicated region
        $region45: #{_lambda_.6} parent=11 // pred_check
          %p420 = pneg %p266
        $region46: #{_lambda_.6} parent=11 // pred_check_branch
          %422 = sbr.rel (%p420) target = $region48
        $region47: #{_lambda_.6} parent=11 // pred_region
          _
        $region48: #{_lambda_.6} parent=11 // pred_fallthru
          _
        // Predicated region
        $region49: #{_lambda_.6} parent=11 // pred_check
          %p423 = pneg %p287
        $region50: #{_lambda_.6} parent=11 // pred_check_branch
          %425 = sbr.rel (%p423) target = $region52
        $region51: #{_lambda_.6} parent=11 // pred_region
          _
        $region52: #{_lambda_.6} parent=11 // pred_fallthru
          _
        // Predicated region
        $region53: #{_lambda_.6} parent=11 // pred_check
          %p426 = pneg %p308
        $region54: #{_lambda_.6} parent=11 // pred_check_branch
          %428 = sbr.rel (%p426) target = $region56
        $region55: #{_lambda_.6} parent=11 // pred_region
          _
        $region56: #{_lambda_.6} parent=11 // pred_fallthru
          _
        // Predicated region
        $region57: #{_lambda_.6} parent=11 // pred_check
          %p429 = pneg %p329
        $region58: #{_lambda_.6} parent=11 // pred_check_branch
          %431 = sbr.rel (%p429) target = $region60
        $region59: #{_lambda_.6} parent=11 // pred_region
          _
        $region60: #{_lambda_.6} parent=11 // pred_fallthru
          _
      $region12: #{_lambda_.6} parent=5 // pred_fallthru
        _
      %p432 = scmp.lt.s32.totalorder %s25, 2
      // Predicated region
      $region61: #{_lambda_.6} parent=5 // pred_check
        %p433 = pneg %p432
      $region62: #{_lambda_.6} parent=5 // pred_check_branch
        %435 = sbr.rel (%p433) target = $region64
      $region63: #{_lambda_.6} parent=5 // pred_region
        // Predicated region
        $region65: #{_lambda_.6} parent=63 // pred_check
          %p436 = pneg %p45
        $region66: #{_lambda_.6} parent=63 // pred_check_branch
          %438 = sbr.rel (%p436) target = $region68
        $region67: #{_lambda_.6} parent=63 // pred_region
          %p439 = scmp.lt.s32.totalorder %s25, 1
          %s440 = scalar_select %p439, %s25, 1
          %s441 = smul.addr %s440, 4
          %s442 = scalar_lea.vmem %s0, %s441
        $region68: #{_lambda_.6} parent=63 // pred_fallthru
          _
        // Predicated region
        $region69: #{_lambda_.6} parent=63 // pred_check
          %p443 = pneg %p71
        $region70: #{_lambda_.6} parent=63 // pred_check_branch
          %445 = sbr.rel (%p443) target = $region72
        $region71: #{_lambda_.6} parent=63 // pred_region
          %p446 = scmp.lt.s32.totalorder %s25, 1
          %s447 = scalar_select %p446, %s25, 1
          %s448 = scalar_lea.vmem %s1, %s447
        $region72: #{_lambda_.6} parent=63 // pred_fallthru
          _
      $region64: #{_lambda_.6} parent=5 // pred_fallthru
        _
      %p449 = scmp.le.s32.totalorder 1, %s25
      %p450 = scmp.lt.s32.totalorder %s25, 3
      %p451 = pnand %p449, %p450
      %p452 = pneg %p451
      // Predicated region
      $region73: #{_lambda_.6} parent=5 // pred_check
        _
      $region74: #{_lambda_.6} parent=5 // pred_check_branch
        %454 = sbr.rel (%p451) target = $region76
      $region75: #{_lambda_.6} parent=5 // pred_region
        %s455 = ssub.s32 %s25, 1
        %p456 = scmp.lt.s32.totalorder %s30, 1
        %s457 = scalar_select %p456, %s30, 1
        %s458 = smul.addr %s457, 4
        %s459 = scalar_lea.vmem %s0, %s458
        %p460 = pneg %p51
        %p461 = pneg %p48
        %p462 = scmp.lt.s32.totalorder %s30, 1
        %s463 = scalar_select %p462, %s30, 1
        %s464 = scalar_lea.vmem %s1, %s463
        %p465 = pneg %p77
        %p466 = pneg %p74
        %p467 = pneg %p98
        %p468 = pneg %p95
        %p469 = pneg %p119
        %p470 = pneg %p116
        %p471 = pneg %p140
        %p472 = pneg %p137
        %p473 = pneg %p161
        %p474 = pneg %p158
        %p475 = pneg %p182
        %p476 = pneg %p179
        %p477 = pneg %p203
        %p478 = pneg %p200
        %p479 = pneg %p224
        %p480 = pneg %p221
        %p481 = pneg %p245
        %p482 = pneg %p242
        %p483 = pneg %p266
        %p484 = pneg %p263
        %p485 = pneg %p287
        %p486 = pneg %p284
        %p487 = pneg %p308
        %p488 = pneg %p305
        %p489 = pneg %p329
        %p490 = pneg %p326
        %p491 = pneg %p355
        %p492 = pneg %p352
        %s493 = sand.u32 %s342, 1
        %s494 = scalar_lea.sflag [#allocation3], %s493
        %s495 = sand.u32 %s342, 1
        %s496 = smul.addr %s495, 4
        %s497 = scalar_lea.vmem [#allocation2], %s496
        %p498 = pneg %p381
        %p499 = pneg %p378
        %p500 = scmp.lt.s32.totalorder %s30, 1
        %s501 = scalar_select %p500, %s30, 1
        %s502 = scalar_lea.vmem %s15, %s501
        %p503 = scmp.lt.s32.totalorder %s30, 1
        %s504 = scalar_select %p503, %s30, 1
        %s505 = smul.addr %s504, 4
        %s506 = scalar_lea.vmem %s0, %s505
        %p507 = scmp.lt.s32.totalorder %s30, 1
        %s508 = scalar_select %p507, %s30, 1
        %s509 = scalar_lea.vmem %s1, %s508
        %p510 = scmp.lt.s32.totalorder %s30, 1
        %s511 = scalar_select %p510, %s30, 1
        %s512 = scalar_lea.vmem %s15, %s511
        %v514 = vld [vmem:[%s506] sm:$0xf]
        %v515 = vunpack.c.l.bf16 %v514
        %v516 = vld [vmem:[%s2] sm:$0xf]
        %v517 = vld [vmem:[%s2 + $0x4] sm:$0xf]
        %v518 = vld [vmem:[%s2 + $0x8] sm:$0xf]
        %v519 = vld [vmem:[%s2 + $0xc] sm:$0xf]
        %v520 = vld [vmem:[%s3] sm:$0x1]
        %v522 = vlaneseq
        %v523 = vshrl.u32 %v522, 7
        %v524 = vsub.s32 0, %v523
        %v525 = vrot.slane %v520, %v524
        %v531 = vunpack.c.l.b16 %v516
        %v532 = vunpack.c.l.b16 %v517
        %v533 = vunpack.c.l.b16 %v518
        %v534 = vunpack.c.l.b16 %v519
        %v535 = vpack.c.b16 %v532, %v531
        %v536 = vpack.c.b16 %v534, %v533
        %vm539 = vcmask 261120
        %v541 = vsel %vm539, %v514, 0
        %543 = vmatprep.subr.bf16.mxu0 0
        %544 = vmatpush1.bf16.msra.mxu0 %v535
        %545 = vmatprep.subr.bf16.mxu0 0
        %546 = vmatpush1.bf16.msra.mxu0 %v536
        %547 = vmatprep.subr.bf16.mxu0 0
        %548 = vmatpush1.bf16.msra.mxu0 0
        %549 = vmatprep.subr.bf16.mxu0 0
        %550 = vmatpush1.bf16.msra.mxu0 0
        %551 = vmatprep.subr.bf16.mxu0 0
        %552 = vmatpush1.bf16.msra.mxu0 0
        %553 = vmatprep.subr.bf16.mxu0 0
        %554 = vmatpush1.bf16.msra.mxu0 0
        %555 = vmatprep.subr.bf16.mxu0 0
        %556 = vmatpush1.bf16.msra.mxu0 0
        %557 = vmatprep.subr.bf16.mxu0 0
        %558 = vmatpush1.bf16.msra.mxu0 0
        %559 = vmatprep.subr.bf16.mxu0 0
        %560 = vmatpush1.bf16.msra.mxu0 0
        %561 = vmatprep.subr.bf16.mxu0 0
        %562 = vmatpush1.bf16.msra.mxu0 0
        %563 = vmatprep.subr.bf16.mxu0 0
        %564 = vmatpush1.bf16.msra.mxu0 0
        %565 = vmatprep.subr.bf16.mxu0 0
        %566 = vmatpush1.bf16.msra.mxu0 0
        %567 = vmatprep.subr.bf16.mxu0 0
        %568 = vmatpush1.bf16.msra.mxu0 0
        %569 = vmatprep.subr.bf16.mxu0 0
        %570 = vmatpush1.bf16.msra.mxu0 0
        %571 = vmatprep.subr.bf16.mxu0 0
        %572 = vmatpush1.bf16.msra.mxu0 0
        %573 = vmatprep.subr.bf16.mxu0 0
        %574 = vmatpush1.bf16.msra.mxu0 0
        %575 = vmatprep.mubr.bf16.mxu0 0
        %576 = vmatmul.mubr.bf16.gmra.mrb[0].mxu0 %v541
        %v577 = vpop.f32.mrb[0].mxu0
        %v578 = vadd.f32 %v525, %v577
        %v579 = vpop.f32.mrb[0].mxu0
        %v580 = vpop.f32.mrb[0].mxu0
        %v581 = vpop.f32.mrb[0].mxu0
        %582 = vdwg.mxu0
        %584 = vrot.lane.b32.xlu0 %v578, 120
        %v585 = vpop.permute.xlu0 %584
        %587 = vrot.lane.b32.xlu0 %v578, 112
        %v588 = vpop.permute.xlu0 %587
        %590 = vrot.lane.b32.xlu0 %v578, 104
        %v591 = vpop.permute.xlu0 %590
        %v593 = vcombine.low %v578, %v588
        %v594 = vcombine.high %v578, %v588
        %v596 = vunpack.c.l.s4 1983009808
        %v597 = vunpack.c.0.s8 %v596
        %v598 = vlaneseq
        %v599 = vshrl.u32 %v598, 7
        %v600 = vsub.s32 %v597, %v599
        %v601 = vrot.slane %v593, %v600
        %v603 = vunpack.c.l.s4 1983009808
        %v604 = vunpack.c.0.s8 %v603
        %v605 = vlaneseq
        %v606 = vshrl.u32 %v605, 7
        %v607 = vsub.s32 %v604, %v606
        %v608 = vrot.slane %v594, %v607
        %v609 = vcombine.low %v585, %v591
        %v610 = vcombine.high %v585, %v591
        %v612 = vunpack.c.l.s4 1983009808
        %v613 = vunpack.c.0.s8 %v612
        %v614 = vlaneseq
        %v615 = vshrl.u32 %v614, 7
        %v616 = vsub.s32 %v613, %v615
        %v617 = vrot.slane %v609, %v616
        %v619 = vunpack.c.l.s4 1983009808
        %v620 = vunpack.c.0.s8 %v619
        %v621 = vlaneseq
        %v622 = vshrl.u32 %v621, 7
        %v623 = vsub.s32 %v620, %v622
        %v624 = vrot.slane %v610, %v623
        %v625 = vcombine.low %v601, %v617
        %v626 = vcombine.high %v601, %v617
        %v628 = vunpack.c.l.s4 1934713408
        %v629 = vunpack.c.0.s8 %v628
        %v630 = vlaneseq
        %v631 = vshrl.u32 %v630, 7
        %v632 = vsub.s32 %v629, %v631
        %v633 = vrot.slane %v625, %v632
        %v635 = vunpack.c.l.s4 1934713408
        %v636 = vunpack.c.0.s8 %v635
        %v637 = vlaneseq
        %v638 = vshrl.u32 %v637, 7
        %v639 = vsub.s32 %v636, %v638
        %v640 = vrot.slane %v626, %v639
        %v641 = vcombine.low %v608, %v624
        %v642 = vcombine.high %v608, %v624
        %v644 = vunpack.c.l.s4 1934713408
        %v645 = vunpack.c.0.s8 %v644
        %v646 = vlaneseq
        %v647 = vshrl.u32 %v646, 7
        %v648 = vsub.s32 %v645, %v647
        %v649 = vrot.slane %v641, %v648
        %v651 = vunpack.c.l.s4 1934713408
        %v652 = vunpack.c.0.s8 %v651
        %v653 = vlaneseq
        %v654 = vshrl.u32 %v653, 7
        %v655 = vsub.s32 %v652, %v654
        %v656 = vrot.slane %v642, %v655
        %v657 = vcombine.high %v633, 0.0
        %v658 = vcombine.high %v640, 0.0
        %v659 = vcombine.high %v649, 0.0
        %v660 = vcombine.high %v656, 0.0
        %v661 = vcombine.low %v633, %v640
        %v663 = vunpack.c.l.s4 1983009808
        %v664 = vunpack.c.0.s8 %v663
        %v665 = vlaneseq
        %v666 = vshrl.u32 %v665, 7
        %v667 = vsub.s32 %v664, %v666
        %v668 = vrot.slane %v661, %v667
        %v669 = vcombine.low %v657, %v658
        %v671 = vunpack.c.l.s4 1983009808
        %v672 = vunpack.c.0.s8 %v671
        %v673 = vlaneseq
        %v674 = vshrl.u32 %v673, 7
        %v675 = vsub.s32 %v672, %v674
        %v676 = vrot.slane %v669, %v675
        %v677 = vcombine.low %v649, %v656
        %v679 = vunpack.c.l.s4 1983009808
        %v680 = vunpack.c.0.s8 %v679
        %v681 = vlaneseq
        %v682 = vshrl.u32 %v681, 7
        %v683 = vsub.s32 %v680, %v682
        %v684 = vrot.slane %v677, %v683
        %v685 = vcombine.low %v659, %v660
        %v687 = vunpack.c.l.s4 1983009808
        %v688 = vunpack.c.0.s8 %v687
        %v689 = vlaneseq
        %v690 = vshrl.u32 %v689, 7
        %v691 = vsub.s32 %v688, %v690
        %v692 = vrot.slane %v685, %v691
        %v693 = vcombine.low %v668, %v676
        %v694 = vcombine.high %v668, %v676
        %v696 = vunpack.c.l.s4 1934713408
        %v697 = vunpack.c.0.s8 %v696
        %v698 = vlaneseq
        %v699 = vshrl.u32 %v698, 7
        %v700 = vsub.s32 %v697, %v699
        %v701 = vrot.slane %v693, %v700
        %v703 = vunpack.c.l.s4 1934713408
        %v704 = vunpack.c.0.s8 %v703
        %v705 = vlaneseq
        %v706 = vshrl.u32 %v705, 7
        %v707 = vsub.s32 %v704, %v706
        %v708 = vrot.slane %v694, %v707
        %v709 = vcombine.low %v684, %v692
        %v710 = vcombine.high %v684, %v692
        %v712 = vunpack.c.l.s4 1934713408
        %v713 = vunpack.c.0.s8 %v712
        %v714 = vlaneseq
        %v715 = vshrl.u32 %v714, 7
        %v716 = vsub.s32 %v713, %v715
        %v717 = vrot.slane %v709, %v716
        %v719 = vunpack.c.l.s4 1934713408
        %v720 = vunpack.c.0.s8 %v719
        %v721 = vlaneseq
        %v722 = vshrl.u32 %v721, 7
        %v723 = vsub.s32 %v720, %v722
        %v724 = vrot.slane %v710, %v723
        %v725 = vcombine.low %v701, %v717
        %v726 = vcombine.high %v701, %v717
        %v727 = vcombine.low %v708, %v724
        %v728 = vcombine.high %v708, %v724
        %v729 = vpack.c.bf16 %v725, %v725
        %v730 = vpack.c.bf16 %v726, %v726
        %v731 = vpack.c.bf16 %v727, %v727
        %v732 = vpack.c.bf16 %v728, %v728
        %733 = vrot.lane.b32.xlu0 %v578, 96
        %v734 = vpop.permute.xlu0 %733
        %735 = vrot.lane.b32.xlu0 %v585, 96
        %v736 = vpop.permute.xlu0 %735
        %737 = vrot.lane.b32.xlu0 %v588, 96
        %v738 = vpop.permute.xlu0 %737
        %739 = vrot.lane.b32.xlu0 %v591, 96
        %v740 = vpop.permute.xlu0 %739
        %v745 = vcombine.low %v734, %v738
        %v746 = vcombine.high %v734, %v738
        %v748 = vunpack.c.l.s4 1983009808
        %v749 = vunpack.c.0.s8 %v748
        %v750 = vlaneseq
        %v751 = vshrl.u32 %v750, 7
        %v752 = vsub.s32 %v749, %v751
        %v753 = vrot.slane %v745, %v752
        %v755 = vunpack.c.l.s4 1983009808
        %v756 = vunpack.c.0.s8 %v755
        %v757 = vlaneseq
        %v758 = vshrl.u32 %v757, 7
        %v759 = vsub.s32 %v756, %v758
        %v760 = vrot.slane %v746, %v759
        %v761 = vcombine.low %v736, %v740
        %v762 = vcombine.high %v736, %v740
        %v764 = vunpack.c.l.s4 1983009808
        %v765 = vunpack.c.0.s8 %v764
        %v766 = vlaneseq
        %v767 = vshrl.u32 %v766, 7
        %v768 = vsub.s32 %v765, %v767
        %v769 = vrot.slane %v761, %v768
        %v771 = vunpack.c.l.s4 1983009808
        %v772 = vunpack.c.0.s8 %v771
        %v773 = vlaneseq
        %v774 = vshrl.u32 %v773, 7
        %v775 = vsub.s32 %v772, %v774
        %v776 = vrot.slane %v762, %v775
        %v777 = vcombine.low %v753, %v769
        %v778 = vcombine.high %v753, %v769
        %v780 = vunpack.c.l.s4 1934713408
        %v781 = vunpack.c.0.s8 %v780
        %v782 = vlaneseq
        %v783 = vshrl.u32 %v782, 7
        %v784 = vsub.s32 %v781, %v783
        %v785 = vrot.slane %v777, %v784
        %v787 = vunpack.c.l.s4 1934713408
        %v788 = vunpack.c.0.s8 %v787
        %v789 = vlaneseq
        %v790 = vshrl.u32 %v789, 7
        %v791 = vsub.s32 %v788, %v790
        %v792 = vrot.slane %v778, %v791
        %v793 = vcombine.low %v760, %v776
        %v794 = vcombine.high %v760, %v776
        %v796 = vunpack.c.l.s4 1934713408
        %v797 = vunpack.c.0.s8 %v796
        %v798 = vlaneseq
        %v799 = vshrl.u32 %v798, 7
        %v800 = vsub.s32 %v797, %v799
        %v801 = vrot.slane %v793, %v800
        %v803 = vunpack.c.l.s4 1934713408
        %v804 = vunpack.c.0.s8 %v803
        %v805 = vlaneseq
        %v806 = vshrl.u32 %v805, 7
        %v807 = vsub.s32 %v804, %v806
        %v808 = vrot.slane %v794, %v807
        %v809 = vcombine.high %v785, 0.0
        %v810 = vcombine.high %v792, 0.0
        %v811 = vcombine.high %v801, 0.0
        %v812 = vcombine.high %v808, 0.0
        %v813 = vcombine.low %v785, %v792
        %v815 = vunpack.c.l.s4 1983009808
        %v816 = vunpack.c.0.s8 %v815
        %v817 = vlaneseq
        %v818 = vshrl.u32 %v817, 7
        %v819 = vsub.s32 %v816, %v818
        %v820 = vrot.slane %v813, %v819
        %v821 = vcombine.low %v809, %v810
        %v823 = vunpack.c.l.s4 1983009808
        %v824 = vunpack.c.0.s8 %v823
        %v825 = vlaneseq
        %v826 = vshrl.u32 %v825, 7
        %v827 = vsub.s32 %v824, %v826
        %v828 = vrot.slane %v821, %v827
        %v829 = vcombine.low %v801, %v808
        %v831 = vunpack.c.l.s4 1983009808
        %v832 = vunpack.c.0.s8 %v831
        %v833 = vlaneseq
        %v834 = vshrl.u32 %v833, 7
        %v835 = vsub.s32 %v832, %v834
        %v836 = vrot.slane %v829, %v835
        %v837 = vcombine.low %v811, %v812
        %v839 = vunpack.c.l.s4 1983009808
        %v840 = vunpack.c.0.s8 %v839
        %v841 = vlaneseq
        %v842 = vshrl.u32 %v841, 7
        %v843 = vsub.s32 %v840, %v842
        %v844 = vrot.slane %v837, %v843
        %v845 = vcombine.low %v820, %v828
        %v846 = vcombine.high %v820, %v828
        %v848 = vunpack.c.l.s4 1934713408
        %v849 = vunpack.c.0.s8 %v848
        %v850 = vlaneseq
        %v851 = vshrl.u32 %v850, 7
        %v852 = vsub.s32 %v849, %v851
        %v853 = vrot.slane %v845, %v852
        %v855 = vunpack.c.l.s4 1934713408
        %v856 = vunpack.c.0.s8 %v855
        %v857 = vlaneseq
        %v858 = vshrl.u32 %v857, 7
        %v859 = vsub.s32 %v856, %v858
        %v860 = vrot.slane %v846, %v859
        %v861 = vcombine.low %v836, %v844
        %v862 = vcombine.high %v836, %v844
        %v864 = vunpack.c.l.s4 1934713408
        %v865 = vunpack.c.0.s8 %v864
        %v866 = vlaneseq
        %v867 = vshrl.u32 %v866, 7
        %v868 = vsub.s32 %v865, %v867
        %v869 = vrot.slane %v861, %v868
        %v871 = vunpack.c.l.s4 1934713408
        %v872 = vunpack.c.0.s8 %v871
        %v873 = vlaneseq
        %v874 = vshrl.u32 %v873, 7
        %v875 = vsub.s32 %v872, %v874
        %v876 = vrot.slane %v862, %v875
        %v877 = vcombine.low %v853, %v869
        %v878 = vcombine.high %v853, %v869
        %v879 = vcombine.low %v860, %v876
        %v880 = vcombine.high %v860, %v876
        %v881 = vpack.c.bf16 %v877, %v877
        %v882 = vpack.c.bf16 %v878, %v878
        %v883 = vpack.c.bf16 %v879, %v879
        %v884 = vpack.c.bf16 %v880, %v880
        %885 = vrot.lane.b32.xlu0 %v578, 64
        %v886 = vpop.permute.xlu0 %885
        %887 = vrot.lane.b32.xlu0 %v585, 64
        %v888 = vpop.permute.xlu0 %887
        %889 = vrot.lane.b32.xlu0 %v588, 64
        %v890 = vpop.permute.xlu0 %889
        %891 = vrot.lane.b32.xlu0 %v591, 64
        %v892 = vpop.permute.xlu0 %891
        %v897 = vcombine.low %v886, %v890
        %v898 = vcombine.high %v886, %v890
        %v900 = vunpack.c.l.s4 1983009808
        %v901 = vunpack.c.0.s8 %v900
        %v902 = vlaneseq
        %v903 = vshrl.u32 %v902, 7
        %v904 = vsub.s32 %v901, %v903
        %v905 = vrot.slane %v897, %v904
        %v907 = vunpack.c.l.s4 1983009808
        %v908 = vunpack.c.0.s8 %v907
        %v909 = vlaneseq
        %v910 = vshrl.u32 %v909, 7
        %v911 = vsub.s32 %v908, %v910
        %v912 = vrot.slane %v898, %v911
        %v913 = vcombine.low %v888, %v892
        %v914 = vcombine.high %v888, %v892
        %v916 = vunpack.c.l.s4 1983009808
        %v917 = vunpack.c.0.s8 %v916
        %v918 = vlaneseq
        %v919 = vshrl.u32 %v918, 7
        %v920 = vsub.s32 %v917, %v919
        %v921 = vrot.slane %v913, %v920
        %v923 = vunpack.c.l.s4 1983009808
        %v924 = vunpack.c.0.s8 %v923
        %v925 = vlaneseq
        %v926 = vshrl.u32 %v925, 7
        %v927 = vsub.s32 %v924, %v926
        %v928 = vrot.slane %v914, %v927
        %v929 = vcombine.low %v905, %v921
        %v930 = vcombine.high %v905, %v921
        %v932 = vunpack.c.l.s4 1934713408
        %v933 = vunpack.c.0.s8 %v932
        %v934 = vlaneseq
        %v935 = vshrl.u32 %v934, 7
        %v936 = vsub.s32 %v933, %v935
        %v937 = vrot.slane %v929, %v936
        %v939 = vunpack.c.l.s4 1934713408
        %v940 = vunpack.c.0.s8 %v939
        %v941 = vlaneseq
        %v942 = vshrl.u32 %v941, 7
        %v943 = vsub.s32 %v940, %v942
        %v944 = vrot.slane %v930, %v943
        %v945 = vcombine.low %v912, %v928
        %v946 = vcombine.high %v912, %v928
        %v948 = vunpack.c.l.s4 1934713408
        %v949 = vunpack.c.0.s8 %v948
        %v950 = vlaneseq
        %v951 = vshrl.u32 %v950, 7
        %v952 = vsub.s32 %v949, %v951
        %v953 = vrot.slane %v945, %v952
        %v955 = vunpack.c.l.s4 1934713408
        %v956 = vunpack.c.0.s8 %v955
        %v957 = vlaneseq
        %v958 = vshrl.u32 %v957, 7
        %v959 = vsub.s32 %v956, %v958
        %v960 = vrot.slane %v946, %v959
        %v961 = vcombine.high %v937, 0.0
        %v962 = vcombine.high %v944, 0.0
        %v963 = vcombine.high %v953, 0.0
        %v964 = vcombine.high %v960, 0.0
        %v965 = vcombine.low %v937, %v944
        %v967 = vunpack.c.l.s4 1983009808
        %v968 = vunpack.c.0.s8 %v967
        %v969 = vlaneseq
        %v970 = vshrl.u32 %v969, 7
        %v971 = vsub.s32 %v968, %v970
        %v972 = vrot.slane %v965, %v971
        %v973 = vcombine.low %v961, %v962
        %v975 = vunpack.c.l.s4 1983009808
        %v976 = vunpack.c.0.s8 %v975
        %v977 = vlaneseq
        %v978 = vshrl.u32 %v977, 7
        %v979 = vsub.s32 %v976, %v978
        %v980 = vrot.slane %v973, %v979
        %v981 = vcombine.low %v953, %v960
        %v983 = vunpack.c.l.s4 1983009808
        %v984 = vunpack.c.0.s8 %v983
        %v985 = vlaneseq
        %v986 = vshrl.u32 %v985, 7
        %v987 = vsub.s32 %v984, %v986
        %v988 = vrot.slane %v981, %v987
        %v989 = vcombine.low %v963, %v964
        %v991 = vunpack.c.l.s4 1983009808
        %v992 = vunpack.c.0.s8 %v991
        %v993 = vlaneseq
        %v994 = vshrl.u32 %v993, 7
        %v995 = vsub.s32 %v992, %v994
        %v996 = vrot.slane %v989, %v995
        %v997 = vcombine.low %v972, %v980
        %v998 = vcombine.high %v972, %v980
        %v1000 = vunpack.c.l.s4 1934713408
        %v1001 = vunpack.c.0.s8 %v1000
        %v1002 = vlaneseq
        %v1003 = vshrl.u32 %v1002, 7
        %v1004 = vsub.s32 %v1001, %v1003
        %v1005 = vrot.slane %v997, %v1004
        %v1007 = vunpack.c.l.s4 1934713408
        %v1008 = vunpack.c.0.s8 %v1007
        %v1009 = vlaneseq
        %v1010 = vshrl.u32 %v1009, 7
        %v1011 = vsub.s32 %v1008, %v1010
        %v1012 = vrot.slane %v998, %v1011
        %v1013 = vcombine.low %v988, %v996
        %v1014 = vcombine.high %v988, %v996
        %v1016 = vunpack.c.l.s4 1934713408
        %v1017 = vunpack.c.0.s8 %v1016
        %v1018 = vlaneseq
        %v1019 = vshrl.u32 %v1018, 7
        %v1020 = vsub.s32 %v1017, %v1019
        %v1021 = vrot.slane %v1013, %v1020
        %v1023 = vunpack.c.l.s4 1934713408
        %v1024 = vunpack.c.0.s8 %v1023
        %v1025 = vlaneseq
        %v1026 = vshrl.u32 %v1025, 7
        %v1027 = vsub.s32 %v1024, %v1026
        %v1028 = vrot.slane %v1014, %v1027
        %v1029 = vcombine.low %v1005, %v1021
        %v1030 = vcombine.high %v1005, %v1021
        %v1031 = vcombine.low %v1012, %v1028
        %v1032 = vcombine.high %v1012, %v1028
        %v1033 = vpack.c.bf16 %v1029, %v1029
        %v1034 = vpack.c.bf16 %v1030, %v1030
        %v1035 = vpack.c.bf16 %v1031, %v1031
        %v1036 = vpack.c.bf16 %v1032, %v1032
        %v1037 = vld [vmem:[%s509] sm:$0x1]
        %v1038 = vsub.f32 1.0, %v1037
        %v1039 = vmul.f32 %v1038, -1e+09
        %v1041 = vlaneseq
        %v1042 = vshrl.u32 %v1041, 7
        %v1043 = vsub.s32 0, %v1042
        %v1044 = vrot.slane %v1039, %v1043
        %vm1046 = vcmask 64512
        %v1048 = vsel %vm1046, %v729, 0
        %v1051 = vsel %vm1046, %v881, 0
        %1053 = vmatprep.subr.bf16.mxu0 0
        %1054 = vmatpush1.bf16.xpose.msra.mxu0 %v1051
        %1055 = vmatprep.subr.bf16.mxu0 0
        %1056 = vmatpush1.bf16.xpose.msra.mxu0 0
        %1057 = vmatprep.subr.bf16.mxu0 0
        %1058 = vmatpush1.bf16.xpose.msra.mxu0 0
        %1059 = vmatprep.subr.bf16.mxu0 0
        %1060 = vmatpush1.bf16.xpose.msra.mxu0 0
        %1061 = vmatprep.subr.bf16.mxu0 0
        %1062 = vmatpush1.bf16.xpose.msra.mxu0 0
        %1063 = vmatprep.subr.bf16.mxu0 0
        %1064 = vmatpush1.bf16.xpose.msra.mxu0 0
        %1065 = vmatprep.subr.bf16.mxu0 0
        %1066 = vmatpush1.bf16.xpose.msra.mxu0 0
        %1067 = vmatprep.subr.bf16.mxu0 0
        %1068 = vmatpush1.bf16.xpose.msra.mxu0 0
        %1069 = vmatprep.subr.bf16.mxu0 0
        %1070 = vmatpush1.bf16.xpose.msra.mxu0 0
        %1071 = vmatprep.subr.bf16.mxu0 0
        %1072 = vmatpush1.bf16.xpose.msra.mxu0 0
        %1073 = vmatprep.subr.bf16.mxu0 0
        %1074 = vmatpush1.bf16.xpose.msra.mxu0 0
        %1075 = vmatprep.subr.bf16.mxu0 0
        %1076 = vmatpush1.bf16.xpose.msra.mxu0 0
        %1077 = vmatprep.subr.bf16.mxu0 0
        %1078 = vmatpush1.bf16.xpose.msra.mxu0 0
        %1079 = vmatprep.subr.bf16.mxu0 0
        %1080 = vmatpush1.bf16.xpose.msra.mxu0 0
        %1081 = vmatprep.subr.bf16.mxu0 0
        %1082 = vmatpush1.bf16.xpose.msra.mxu0 0
        %1083 = vmatprep.subr.bf16.mxu0 0
        %1084 = vmatpush1.bf16.xpose.msra.mxu0 0
        %1085 = vmatprep.mubr.bf16.mxu0 0
        %1086 = vmatmul.mubr.bf16.gmra.mrb[0].mxu0 %v1048
        %v1087 = vpop.f32.mrb[0].mxu0
        %v1088 = vadd.f32 %v1044, %v1087
        %v1089 = vpop.f32.mrb[0].mxu0
        %v1090 = vpop.f32.mrb[0].mxu0
        %v1091 = vpop.f32.mrb[0].mxu0
        %1092 = vdwg.mxu0
        %v1094 = vsel %vm1046, %v730, 0
        %v1097 = vsel %vm1046, %v882, 0
        %1099 = vmatprep.subr.bf16.mxu0 0
        %1100 = vmatpush1.bf16.xpose.msra.mxu0 %v1097
        %1101 = vmatprep.subr.bf16.mxu0 0
        %1102 = vmatpush1.bf16.xpose.msra.mxu0 0
        %1103 = vmatprep.subr.bf16.mxu0 0
        %1104 = vmatpush1.bf16.xpose.msra.mxu0 0
        %1105 = vmatprep.subr.bf16.mxu0 0
        %1106 = vmatpush1.bf16.xpose.msra.mxu0 0
        %1107 = vmatprep.subr.bf16.mxu0 0
        %1108 = vmatpush1.bf16.xpose.msra.mxu0 0
        %1109 = vmatprep.subr.bf16.mxu0 0
        %1110 = vmatpush1.bf16.xpose.msra.mxu0 0
        %1111 = vmatprep.subr.bf16.mxu0 0
        %1112 = vmatpush1.bf16.xpose.msra.mxu0 0
        %1113 = vmatprep.subr.bf16.mxu0 0
        %1114 = vmatpush1.bf16.xpose.msra.mxu0 0
        %1115 = vmatprep.subr.bf16.mxu0 0
        %1116 = vmatpush1.bf16.xpose.msra.mxu0 0
        %1117 = vmatprep.subr.bf16.mxu0 0
        %1118 = vmatpush1.bf16.xpose.msra.mxu0 0
        %1119 = vmatprep.subr.bf16.mxu0 0
        %1120 = vmatpush1.bf16.xpose.msra.mxu0 0
        %1121 = vmatprep.subr.bf16.mxu0 0
        %1122 = vmatpush1.bf16.xpose.msra.mxu0 0
        %1123 = vmatprep.subr.bf16.mxu0 0
        %1124 = vmatpush1.bf16.xpose.msra.mxu0 0
        %1125 = vmatprep.subr.bf16.mxu0 0
        %1126 = vmatpush1.bf16.xpose.msra.mxu0 0
        %1127 = vmatprep.subr.bf16.mxu0 0
        %1128 = vmatpush1.bf16.xpose.msra.mxu0 0
        %1129 = vmatprep.subr.bf16.mxu0 0
        %1130 = vmatpush1.bf16.xpose.msra.mxu0 0
        %1131 = vmatprep.mubr.bf16.mxu0 0
        %1132 = vmatmul.mubr.bf16.gmra.mrb[0].mxu0 %v1094
        %v1133 = vpop.f32.mrb[0].mxu0
        %v1134 = vadd.f32 %v1044, %v1133
        %v1135 = vpop.f32.mrb[0].mxu0
        %v1136 = vpop.f32.mrb[0].mxu0
        %v1137 = vpop.f32.mrb[0].mxu0
        %1138 = vdwg.mxu0
        %v1140 = vsel %vm1046, %v731, 0
        %v1143 = vsel %vm1046, %v883, 0
        %1145 = vmatprep.subr.bf16.mxu0 0
        %1146 = vmatpush1.bf16.xpose.msra.mxu0 %v1143
        %1147 = vmatprep.subr.bf16.mxu0 0
        %1148 = vmatpush1.bf16.xpose.msra.mxu0 0
        %1149 = vmatprep.subr.bf16.mxu0 0
        %1150 = vmatpush1.bf16.xpose.msra.mxu0 0
        %1151 = vmatprep.subr.bf16.mxu0 0
        %1152 = vmatpush1.bf16.xpose.msra.mxu0 0
        %1153 = vmatprep.subr.bf16.mxu0 0
        %1154 = vmatpush1.bf16.xpose.msra.mxu0 0
        %1155 = vmatprep.subr.bf16.mxu0 0
        %1156 = vmatpush1.bf16.xpose.msra.mxu0 0
        %1157 = vmatprep.subr.bf16.mxu0 0
        %1158 = vmatpush1.bf16.xpose.msra.mxu0 0
        %1159 = vmatprep.subr.bf16.mxu0 0
        %1160 = vmatpush1.bf16.xpose.msra.mxu0 0
        %1161 = vmatprep.subr.bf16.mxu0 0
        %1162 = vmatpush1.bf16.xpose.msra.mxu0 0
        %1163 = vmatprep.subr.bf16.mxu0 0
        %1164 = vmatpush1.bf16.xpose.msra.mxu0 0
        %1165 = vmatprep.subr.bf16.mxu0 0
        %1166 = vmatpush1.bf16.xpose.msra.mxu0 0
        %1167 = vmatprep.subr.bf16.mxu0 0
        %1168 = vmatpush1.bf16.xpose.msra.mxu0 0
        %1169 = vmatprep.subr.bf16.mxu0 0
        %1170 = vmatpush1.bf16.xpose.msra.mxu0 0
        %1171 = vmatprep.subr.bf16.mxu0 0
        %1172 = vmatpush1.bf16.xpose.msra.mxu0 0
        %1173 = vmatprep.subr.bf16.mxu0 0
        %1174 = vmatpush1.bf16.xpose.msra.mxu0 0
        %1175 = vmatprep.subr.bf16.mxu0 0
        %1176 = vmatpush1.bf16.xpose.msra.mxu0 0
        %1177 = vmatprep.mubr.bf16.mxu0 0
        %1178 = vmatmul.mubr.bf16.gmra.mrb[0].mxu0 %v1140
        %v1179 = vpop.f32.mrb[0].mxu0
        %v1180 = vadd.f32 %v1044, %v1179
        %v1181 = vpop.f32.mrb[0].mxu0
        %v1182 = vpop.f32.mrb[0].mxu0
        %v1183 = vpop.f32.mrb[0].mxu0
        %1184 = vdwg.mxu0
        %v1186 = vsel %vm1046, %v732, 0
        %v1189 = vsel %vm1046, %v884, 0
        %1191 = vmatprep.subr.bf16.mxu0 0
        %1192 = vmatpush1.bf16.xpose.msra.mxu0 %v1189
        %1193 = vmatprep.subr.bf16.mxu0 0
        %1194 = vmatpush1.bf16.xpose.msra.mxu0 0
        %1195 = vmatprep.subr.bf16.mxu0 0
        %1196 = vmatpush1.bf16.xpose.msra.mxu0 0
        %1197 = vmatprep.subr.bf16.mxu0 0
        %1198 = vmatpush1.bf16.xpose.msra.mxu0 0
        %1199 = vmatprep.subr.bf16.mxu0 0
        %1200 = vmatpush1.bf16.xpose.msra.mxu0 0
        %1201 = vmatprep.subr.bf16.mxu0 0
        %1202 = vmatpush1.bf16.xpose.msra.mxu0 0
        %1203 = vmatprep.subr.bf16.mxu0 0
        %1204 = vmatpush1.bf16.xpose.msra.mxu0 0
        %1205 = vmatprep.subr.bf16.mxu0 0
        %1206 = vmatpush1.bf16.xpose.msra.mxu0 0
        %1207 = vmatprep.subr.bf16.mxu0 0
        %1208 = vmatpush1.bf16.xpose.msra.mxu0 0
        %1209 = vmatprep.subr.bf16.mxu0 0
        %1210 = vmatpush1.bf16.xpose.msra.mxu0 0
        %1211 = vmatprep.subr.bf16.mxu0 0
        %1212 = vmatpush1.bf16.xpose.msra.mxu0 0
        %1213 = vmatprep.subr.bf16.mxu0 0
        %1214 = vmatpush1.bf16.xpose.msra.mxu0 0
        %1215 = vmatprep.subr.bf16.mxu0 0
        %1216 = vmatpush1.bf16.xpose.msra.mxu0 0
        %1217 = vmatprep.subr.bf16.mxu0 0
        %1218 = vmatpush1.bf16.xpose.msra.mxu0 0
        %1219 = vmatprep.subr.bf16.mxu0 0
        %1220 = vmatpush1.bf16.xpose.msra.mxu0 0
        %1221 = vmatprep.subr.bf16.mxu0 0
        %1222 = vmatpush1.bf16.xpose.msra.mxu0 0
        %1223 = vmatprep.mubr.bf16.mxu0 0
        %1224 = vmatmul.mubr.bf16.gmra.mrb[0].mxu0 %v1186
        %v1225 = vpop.f32.mrb[0].mxu0
        %v1226 = vadd.f32 %v1044, %v1225
        %v1227 = vpop.f32.mrb[0].mxu0
        %v1228 = vpop.f32.mrb[0].mxu0
        %v1229 = vpop.f32.mrb[0].mxu0
        %1230 = vdwg.mxu0
        %v1231 = vsel %vm1046, %v1088, -inf
        %1232 = vmax.xlane.f32.xlu0 %v1231
        %v1233 = vpop.xlane.xlu0 %1232
        %v1234 = vsel %vm1046, %v1134, -inf
        %1235 = vmax.xlane.f32.xlu0 %v1234
        %v1236 = vpop.xlane.xlu0 %1235
        %v1237 = vsel %vm1046, %v1180, -inf
        %1238 = vmax.xlane.f32.xlu0 %v1237
        %v1239 = vpop.xlane.xlu0 %1238
        %v1240 = vsel %vm1046, %v1226, -inf
        %1241 = vmax.xlane.f32.xlu0 %v1240
        %v1242 = vpop.xlane.xlu0 %1241
        %v1243 = vsub.f32 %v1088, %v1233
        %v1244 = vsub.f32 %v1134, %v1236
        %v1245 = vsub.f32 %v1180, %v1239
        %v1246 = vsub.f32 %v1226, %v1242
        %v1247 = vmul.f32 %v1243, 1.442695
        %v1248 = vpow.pop %v1247
        %v1249 = vmul.f32 %v1244, 1.442695
        %v1250 = vpow.pop %v1249
        %v1251 = vmul.f32 %v1245, 1.442695
        %v1252 = vpow.pop %v1251
        %v1253 = vmul.f32 %v1246, 1.442695
        %v1254 = vpow.pop %v1253
        %v1255 = vsel %vm1046, %v1248, 0.0
        %1256 = vadd.xlane.f32.xlu0 %v1255
        %v1257 = vpop.xlane.xlu0 %1256
        %v1258 = vsel %vm1046, %v1250, 0.0
        %1259 = vadd.xlane.f32.xlu0 %v1258
        %v1260 = vpop.xlane.xlu0 %1259
        %v1261 = vsel %vm1046, %v1252, 0.0
        %1262 = vadd.xlane.f32.xlu0 %v1261
        %v1263 = vpop.xlane.xlu0 %1262
        %v1264 = vsel %vm1046, %v1254, 0.0
        %1265 = vadd.xlane.f32.xlu0 %v1264
        %v1266 = vpop.xlane.xlu0 %1265
        %v1267 = vrcp.pop %v1257
        %v1268 = vrcp.pop %v1260
        %v1269 = vrcp.pop %v1263
        %v1270 = vrcp.pop %v1266
        %v1271 = vmul.f32 %v1248, %v1267
        %v1272 = vmul.f32 %v1250, %v1268
        %v1273 = vmul.f32 %v1252, %v1269
        %v1274 = vmul.f32 %v1254, %v1270
        %v1275 = vpack.c.bf16 %v1271, %v1271
        %v1276 = vpack.c.bf16 %v1272, %v1272
        %v1277 = vpack.c.bf16 %v1273, %v1273
        %v1278 = vpack.c.bf16 %v1274, %v1274
        %v1280 = vsel %vm1046, %v1275, 0
        %vm1282 = vcmask 1043456
        %v1284 = vsel %vm1282, %v1033, 0
        %1286 = vmatprep.subr.bf16.mxu0 0
        %1287 = vmatpush1.bf16.msra.mxu0 %v1284
        %1288 = vmatprep.subr.bf16.mxu0 0
        %1289 = vmatpush1.bf16.msra.mxu0 0
        %1290 = vmatprep.subr.bf16.mxu0 0
        %1291 = vmatpush1.bf16.msra.mxu0 0
        %1292 = vmatprep.subr.bf16.mxu0 0
        %1293 = vmatpush1.bf16.msra.mxu0 0
        %1294 = vmatprep.subr.bf16.mxu0 0
        %1295 = vmatpush1.bf16.msra.mxu0 0
        %1296 = vmatprep.subr.bf16.mxu0 0
        %1297 = vmatpush1.bf16.msra.mxu0 0
        %1298 = vmatprep.subr.bf16.mxu0 0
        %1299 = vmatpush1.bf16.msra.mxu0 0
        %1300 = vmatprep.subr.bf16.mxu0 0
        %1301 = vmatpush1.bf16.msra.mxu0 0
        %1302 = vmatprep.subr.bf16.mxu0 0
        %1303 = vmatpush1.bf16.msra.mxu0 0
        %1304 = vmatprep.subr.bf16.mxu0 0
        %1305 = vmatpush1.bf16.msra.mxu0 0
        %1306 = vmatprep.subr.bf16.mxu0 0
        %1307 = vmatpush1.bf16.msra.mxu0 0
        %1308 = vmatprep.subr.bf16.mxu0 0
        %1309 = vmatpush1.bf16.msra.mxu0 0
        %1310 = vmatprep.subr.bf16.mxu0 0
        %1311 = vmatpush1.bf16.msra.mxu0 0
        %1312 = vmatprep.subr.bf16.mxu0 0
        %1313 = vmatpush1.bf16.msra.mxu0 0
        %1314 = vmatprep.subr.bf16.mxu0 0
        %1315 = vmatpush1.bf16.msra.mxu0 0
        %1316 = vmatprep.subr.bf16.mxu0 0
        %1317 = vmatpush1.bf16.msra.mxu0 0
        %1318 = vmatprep.mubr.bf16.mxu0 0
        %1319 = vmatmul.mubr.bf16.gmra.mrb[0].mxu0 %v1280
        %v1320 = vpop.f32.mrb[0].mxu0
        %v1321 = vadd.f32 0.0, %v1320
        %v1322 = vpop.f32.mrb[0].mxu0
        %v1323 = vpop.f32.mrb[0].mxu0
        %v1324 = vpop.f32.mrb[0].mxu0
        %1325 = vdwg.mxu0
        %v1327 = vsel %vm1046, %v1276, 0
        %v1330 = vsel %vm1282, %v1034, 0
        %1332 = vmatprep.subr.bf16.mxu0 0
        %1333 = vmatpush1.bf16.msra.mxu0 %v1330
        %1334 = vmatprep.subr.bf16.mxu0 0
        %1335 = vmatpush1.bf16.msra.mxu0 0
        %1336 = vmatprep.subr.bf16.mxu0 0
        %1337 = vmatpush1.bf16.msra.mxu0 0
        %1338 = vmatprep.subr.bf16.mxu0 0
        %1339 = vmatpush1.bf16.msra.mxu0 0
        %1340 = vmatprep.subr.bf16.mxu0 0
        %1341 = vmatpush1.bf16.msra.mxu0 0
        %1342 = vmatprep.subr.bf16.mxu0 0
        %1343 = vmatpush1.bf16.msra.mxu0 0
        %1344 = vmatprep.subr.bf16.mxu0 0
        %1345 = vmatpush1.bf16.msra.mxu0 0
        %1346 = vmatprep.subr.bf16.mxu0 0
        %1347 = vmatpush1.bf16.msra.mxu0 0
        %1348 = vmatprep.subr.bf16.mxu0 0
        %1349 = vmatpush1.bf16.msra.mxu0 0
        %1350 = vmatprep.subr.bf16.mxu0 0
        %1351 = vmatpush1.bf16.msra.mxu0 0
        %1352 = vmatprep.subr.bf16.mxu0 0
        %1353 = vmatpush1.bf16.msra.mxu0 0
        %1354 = vmatprep.subr.bf16.mxu0 0
        %1355 = vmatpush1.bf16.msra.mxu0 0
        %1356 = vmatprep.subr.bf16.mxu0 0
        %1357 = vmatpush1.bf16.msra.mxu0 0
        %1358 = vmatprep.subr.bf16.mxu0 0
        %1359 = vmatpush1.bf16.msra.mxu0 0
        %1360 = vmatprep.subr.bf16.mxu0 0
        %1361 = vmatpush1.bf16.msra.mxu0 0
        %1362 = vmatprep.subr.bf16.mxu0 0
        %1363 = vmatpush1.bf16.msra.mxu0 0
        %1364 = vmatprep.mubr.bf16.mxu0 0
        %1365 = vmatmul.mubr.bf16.gmra.mrb[0].mxu0 %v1327
        %v1366 = vpop.f32.mrb[0].mxu0
        %v1367 = vadd.f32 0.0, %v1366
        %v1368 = vpop.f32.mrb[0].mxu0
        %v1369 = vpop.f32.mrb[0].mxu0
        %v1370 = vpop.f32.mrb[0].mxu0
        %1371 = vdwg.mxu0
        %v1373 = vsel %vm1046, %v1277, 0
        %v1376 = vsel %vm1282, %v1035, 0
        %1378 = vmatprep.subr.bf16.mxu0 0
        %1379 = vmatpush1.bf16.msra.mxu0 %v1376
        %1380 = vmatprep.subr.bf16.mxu0 0
        %1381 = vmatpush1.bf16.msra.mxu0 0
        %1382 = vmatprep.subr.bf16.mxu0 0
        %1383 = vmatpush1.bf16.msra.mxu0 0
        %1384 = vmatprep.subr.bf16.mxu0 0
        %1385 = vmatpush1.bf16.msra.mxu0 0
        %1386 = vmatprep.subr.bf16.mxu0 0
        %1387 = vmatpush1.bf16.msra.mxu0 0
        %1388 = vmatprep.subr.bf16.mxu0 0
        %1389 = vmatpush1.bf16.msra.mxu0 0
        %1390 = vmatprep.subr.bf16.mxu0 0
        %1391 = vmatpush1.bf16.msra.mxu0 0
        %1392 = vmatprep.subr.bf16.mxu0 0
        %1393 = vmatpush1.bf16.msra.mxu0 0
        %1394 = vmatprep.subr.bf16.mxu0 0
        %1395 = vmatpush1.bf16.msra.mxu0 0
        %1396 = vmatprep.subr.bf16.mxu0 0
        %1397 = vmatpush1.bf16.msra.mxu0 0
        %1398 = vmatprep.subr.bf16.mxu0 0
        %1399 = vmatpush1.bf16.msra.mxu0 0
        %1400 = vmatprep.subr.bf16.mxu0 0
        %1401 = vmatpush1.bf16.msra.mxu0 0
        %1402 = vmatprep.subr.bf16.mxu0 0
        %1403 = vmatpush1.bf16.msra.mxu0 0
        %1404 = vmatprep.subr.bf16.mxu0 0
        %1405 = vmatpush1.bf16.msra.mxu0 0
        %1406 = vmatprep.subr.bf16.mxu0 0
        %1407 = vmatpush1.bf16.msra.mxu0 0
        %1408 = vmatprep.subr.bf16.mxu0 0
        %1409 = vmatpush1.bf16.msra.mxu0 0
        %1410 = vmatprep.mubr.bf16.mxu0 0
        %1411 = vmatmul.mubr.bf16.gmra.mrb[0].mxu0 %v1373
        %v1412 = vpop.f32.mrb[0].mxu0
        %v1413 = vadd.f32 0.0, %v1412
        %v1414 = vpop.f32.mrb[0].mxu0
        %v1415 = vpop.f32.mrb[0].mxu0
        %v1416 = vpop.f32.mrb[0].mxu0
        %1417 = vdwg.mxu0
        %v1419 = vsel %vm1046, %v1278, 0
        %v1422 = vsel %vm1282, %v1036, 0
        %1424 = vmatprep.subr.bf16.mxu0 0
        %1425 = vmatpush1.bf16.msra.mxu0 %v1422
        %1426 = vmatprep.subr.bf16.mxu0 0
        %1427 = vmatpush1.bf16.msra.mxu0 0
        %1428 = vmatprep.subr.bf16.mxu0 0
        %1429 = vmatpush1.bf16.msra.mxu0 0
        %1430 = vmatprep.subr.bf16.mxu0 0
        %1431 = vmatpush1.bf16.msra.mxu0 0
        %1432 = vmatprep.subr.bf16.mxu0 0
        %1433 = vmatpush1.bf16.msra.mxu0 0
        %1434 = vmatprep.subr.bf16.mxu0 0
        %1435 = vmatpush1.bf16.msra.mxu0 0
        %1436 = vmatprep.subr.bf16.mxu0 0
        %1437 = vmatpush1.bf16.msra.mxu0 0
        %1438 = vmatprep.subr.bf16.mxu0 0
        %1439 = vmatpush1.bf16.msra.mxu0 0
        %1440 = vmatprep.subr.bf16.mxu0 0
        %1441 = vmatpush1.bf16.msra.mxu0 0
        %1442 = vmatprep.subr.bf16.mxu0 0
        %1443 = vmatpush1.bf16.msra.mxu0 0
        %1444 = vmatprep.subr.bf16.mxu0 0
        %1445 = vmatpush1.bf16.msra.mxu0 0
        %1446 = vmatprep.subr.bf16.mxu0 0
        %1447 = vmatpush1.bf16.msra.mxu0 0
        %1448 = vmatprep.subr.bf16.mxu0 0
        %1449 = vmatpush1.bf16.msra.mxu0 0
        %1450 = vmatprep.subr.bf16.mxu0 0
        %1451 = vmatpush1.bf16.msra.mxu0 0
        %1452 = vmatprep.subr.bf16.mxu0 0
        %1453 = vmatpush1.bf16.msra.mxu0 0
        %1454 = vmatprep.subr.bf16.mxu0 0
        %1455 = vmatpush1.bf16.msra.mxu0 0
        %1456 = vmatprep.mubr.bf16.mxu0 0
        %1457 = vmatmul.mubr.bf16.gmra.mrb[0].mxu0 %v1419
        %v1458 = vpop.f32.mrb[0].mxu0
        %v1459 = vadd.f32 0.0, %v1458
        %v1460 = vpop.f32.mrb[0].mxu0
        %v1461 = vpop.f32.mrb[0].mxu0
        %v1462 = vpop.f32.mrb[0].mxu0
        %1463 = vdwg.mxu0
        %v1464 = vcombine.low %v1321, %v1413
        %v1465 = vcombine.high %v1321, %v1413
        %v1467 = vunpack.c.l.s4 1983009808
        %v1468 = vunpack.c.0.s8 %v1467
        %v1469 = vlaneseq
        %v1470 = vshrl.u32 %v1469, 7
        %v1471 = vsub.s32 %v1468, %v1470
        %v1472 = vrot.slane %v1464, %v1471
        %v1474 = vunpack.c.l.s4 1983009808
        %v1475 = vunpack.c.0.s8 %v1474
        %v1476 = vlaneseq
        %v1477 = vshrl.u32 %v1476, 7
        %v1478 = vsub.s32 %v1475, %v1477
        %v1479 = vrot.slane %v1465, %v1478
        %v1480 = vcombine.low %v1367, %v1459
        %v1481 = vcombine.high %v1367, %v1459
        %v1483 = vunpack.c.l.s4 1983009808
        %v1484 = vunpack.c.0.s8 %v1483
        %v1485 = vlaneseq
        %v1486 = vshrl.u32 %v1485, 7
        %v1487 = vsub.s32 %v1484, %v1486
        %v1488 = vrot.slane %v1480, %v1487
        %v1490 = vunpack.c.l.s4 1983009808
        %v1491 = vunpack.c.0.s8 %v1490
        %v1492 = vlaneseq
        %v1493 = vshrl.u32 %v1492, 7
        %v1494 = vsub.s32 %v1491, %v1493
        %v1495 = vrot.slane %v1481, %v1494
        %v1496 = vcombine.low %v1472, %v1488
        %v1497 = vcombine.high %v1472, %v1488
        %v1499 = vunpack.c.l.s4 1934713408
        %v1500 = vunpack.c.0.s8 %v1499
        %v1501 = vlaneseq
        %v1502 = vshrl.u32 %v1501, 7
        %v1503 = vsub.s32 %v1500, %v1502
        %v1504 = vrot.slane %v1496, %v1503
        %v1506 = vunpack.c.l.s4 1934713408
        %v1507 = vunpack.c.0.s8 %v1506
        %v1508 = vlaneseq
        %v1509 = vshrl.u32 %v1508, 7
        %v1510 = vsub.s32 %v1507, %v1509
        %v1511 = vrot.slane %v1497, %v1510
        %v1512 = vcombine.low %v1479, %v1495
        %v1513 = vcombine.high %v1479, %v1495
        %v1515 = vunpack.c.l.s4 1934713408
        %v1516 = vunpack.c.0.s8 %v1515
        %v1517 = vlaneseq
        %v1518 = vshrl.u32 %v1517, 7
        %v1519 = vsub.s32 %v1516, %v1518
        %v1520 = vrot.slane %v1512, %v1519
        %v1522 = vunpack.c.l.s4 1934713408
        %v1523 = vunpack.c.0.s8 %v1522
        %v1524 = vlaneseq
        %v1525 = vshrl.u32 %v1524, 7
        %v1526 = vsub.s32 %v1523, %v1525
        %v1527 = vrot.slane %v1513, %v1526
        %v1528 = vcombine.high %v1504, 0.0
        %v1529 = vcombine.high %v1511, 0.0
        %v1530 = vcombine.high %v1520, 0.0
        %v1531 = vcombine.high %v1527, 0.0
        %v1532 = vcombine.low %v1504, %v1511
        %v1534 = vunpack.c.l.s4 1983009808
        %v1535 = vunpack.c.0.s8 %v1534
        %v1536 = vlaneseq
        %v1537 = vshrl.u32 %v1536, 7
        %v1538 = vsub.s32 %v1535, %v1537
        %v1539 = vrot.slane %v1532, %v1538
        %v1540 = vcombine.low %v1528, %v1529
        %v1542 = vunpack.c.l.s4 1983009808
        %v1543 = vunpack.c.0.s8 %v1542
        %v1544 = vlaneseq
        %v1545 = vshrl.u32 %v1544, 7
        %v1546 = vsub.s32 %v1543, %v1545
        %v1547 = vrot.slane %v1540, %v1546
        %v1548 = vcombine.low %v1520, %v1527
        %v1550 = vunpack.c.l.s4 1983009808
        %v1551 = vunpack.c.0.s8 %v1550
        %v1552 = vlaneseq
        %v1553 = vshrl.u32 %v1552, 7
        %v1554 = vsub.s32 %v1551, %v1553
        %v1555 = vrot.slane %v1548, %v1554
        %v1556 = vcombine.low %v1530, %v1531
        %v1558 = vunpack.c.l.s4 1983009808
        %v1559 = vunpack.c.0.s8 %v1558
        %v1560 = vlaneseq
        %v1561 = vshrl.u32 %v1560, 7
        %v1562 = vsub.s32 %v1559, %v1561
        %v1563 = vrot.slane %v1556, %v1562
        %v1564 = vcombine.low %v1539, %v1547
        %v1565 = vcombine.high %v1539, %v1547
        %v1567 = vunpack.c.l.s4 1934713408
        %v1568 = vunpack.c.0.s8 %v1567
        %v1569 = vlaneseq
        %v1570 = vshrl.u32 %v1569, 7
        %v1571 = vsub.s32 %v1568, %v1570
        %v1572 = vrot.slane %v1564, %v1571
        %v1574 = vunpack.c.l.s4 1934713408
        %v1575 = vunpack.c.0.s8 %v1574
        %v1576 = vlaneseq
        %v1577 = vshrl.u32 %v1576, 7
        %v1578 = vsub.s32 %v1575, %v1577
        %v1579 = vrot.slane %v1565, %v1578
        %v1580 = vcombine.low %v1555, %v1563
        %v1581 = vcombine.high %v1555, %v1563
        %v1583 = vunpack.c.l.s4 1934713408
        %v1584 = vunpack.c.0.s8 %v1583
        %v1585 = vlaneseq
        %v1586 = vshrl.u32 %v1585, 7
        %v1587 = vsub.s32 %v1584, %v1586
        %v1588 = vrot.slane %v1580, %v1587
        %v1590 = vunpack.c.l.s4 1934713408
        %v1591 = vunpack.c.0.s8 %v1590
        %v1592 = vlaneseq
        %v1593 = vshrl.u32 %v1592, 7
        %v1594 = vsub.s32 %v1591, %v1593
        %v1595 = vrot.slane %v1581, %v1594
        %v1596 = vcombine.low %v1572, %v1588
        %v1597 = vcombine.high %v1572, %v1588
        %v1598 = vcombine.low %v1579, %v1595
        %v1599 = vcombine.high %v1579, %v1595
        %1601 = vrot.lane.b32.xlu0 %v1597, 8
        %v1602 = vpop.permute.xlu0 %1601
        %1605 = vrot.lane.b32.xlu0 %v1598, 16
        %v1606 = vpop.permute.xlu0 %1605
        %1609 = vrot.lane.b32.xlu0 %v1599, 24
        %v1610 = vpop.permute.xlu0 %1609
        %v1612 = vsel %vm1046, %v1596, %v1602
        %vm1613 = vcmask 130048
        %v1614 = vsel %vm1613, %v1612, %v1606
        %vm1615 = vcmask 195584
        %v1616 = vsel %vm1615, %v1614, %v1610
        %v1617 = vpack.c.bf16 %v1616, %v1616
        %v1618 = vld [vmem:[%s4] sm:$0xf]
        %v1619 = vld [vmem:[%s4 + $0x4] sm:$0xf]
        %v1620 = vld [vmem:[%s4 + $0x8] sm:$0xf]
        %v1621 = vld [vmem:[%s4 + $0xc] sm:$0xf]
        %v1622 = vld [vmem:[%s5] sm:$0x1]
        %v1624 = vlaneseq
        %v1625 = vshrl.u32 %v1624, 7
        %v1626 = vsub.s32 0, %v1625
        %v1627 = vrot.slane %v1622, %v1626
        %v1633 = vunpack.c.l.b16 %v1618
        %v1634 = vunpack.c.l.b16 %v1619
        %v1635 = vunpack.c.l.b16 %v1620
        %v1636 = vunpack.c.l.b16 %v1621
        %v1637 = vpack.c.b16 %v1634, %v1633
        %v1638 = vpack.c.b16 %v1636, %v1635
        %v1642 = vsel %vm539, %v1617, 0
        %1644 = vmatprep.subr.bf16.mxu0 0
        %1645 = vmatpush1.bf16.msra.mxu0 %v1637
        %1646 = vmatprep.subr.bf16.mxu0 0
        %1647 = vmatpush1.bf16.msra.mxu0 %v1638
        %1648 = vmatprep.subr.bf16.mxu0 0
        %1649 = vmatpush1.bf16.msra.mxu0 0
        %1650 = vmatprep.subr.bf16.mxu0 0
        %1651 = vmatpush1.bf16.msra.mxu0 0
        %1652 = vmatprep.subr.bf16.mxu0 0
        %1653 = vmatpush1.bf16.msra.mxu0 0
        %1654 = vmatprep.subr.bf16.mxu0 0
        %1655 = vmatpush1.bf16.msra.mxu0 0
        %1656 = vmatprep.subr.bf16.mxu0 0
        %1657 = vmatpush1.bf16.msra.mxu0 0
        %1658 = vmatprep.subr.bf16.mxu0 0
        %1659 = vmatpush1.bf16.msra.mxu0 0
        %1660 = vmatprep.subr.bf16.mxu0 0
        %1661 = vmatpush1.bf16.msra.mxu0 0
        %1662 = vmatprep.subr.bf16.mxu0 0
        %1663 = vmatpush1.bf16.msra.mxu0 0
        %1664 = vmatprep.subr.bf16.mxu0 0
        %1665 = vmatpush1.bf16.msra.mxu0 0
        %1666 = vmatprep.subr.bf16.mxu0 0
        %1667 = vmatpush1.bf16.msra.mxu0 0
        %1668 = vmatprep.subr.bf16.mxu0 0
        %1669 = vmatpush1.bf16.msra.mxu0 0
        %1670 = vmatprep.subr.bf16.mxu0 0
        %1671 = vmatpush1.bf16.msra.mxu0 0
        %1672 = vmatprep.subr.bf16.mxu0 0
        %1673 = vmatpush1.bf16.msra.mxu0 0
        %1674 = vmatprep.subr.bf16.mxu0 0
        %1675 = vmatpush1.bf16.msra.mxu0 0
        %1676 = vmatprep.mubr.bf16.mxu0 0
        %1677 = vmatmul.mubr.bf16.gmra.mrb[0].mxu0 %v1642
        %v1678 = vpop.f32.mrb[0].mxu0
        %v1679 = vadd.f32 %v1627, %v1678
        %v1680 = vpop.f32.mrb[0].mxu0
        %v1681 = vpop.f32.mrb[0].mxu0
        %v1682 = vpop.f32.mrb[0].mxu0
        %1683 = vdwg.mxu0
        %v1684 = vadd.f32 %v515, %v1679
        %v1685 = vld [vmem:[%s6] sm:$0x1]
        %v1686 = vld [vmem:[%s7] sm:$0x1]
        %v1687 = vsel %vm539, %v1684, 0.0
        %1688 = vadd.xlane.f32.xlu0 %v1687
        %v1689 = vpop.xlane.xlu0 %1688
        %v1690 = vrcp.pop 32.0
        %v1691 = vmul.f32 %v1689, %v1690
        %v1692 = vsub.f32 %v1684, %v1691
        %v1693 = vmul.f32 %v1692, %v1692
        %v1694 = vsel %vm539, %v1693, 0.0
        %1695 = vadd.xlane.f32.xlu0 %v1694
        %v1696 = vpop.xlane.xlu0 %1695
        %v1697 = vmul.f32 %v1696, %v1690
        %v1698 = vadd.f32 %v1697, 1e-12
        %v1699 = vrsqrt.pop %v1698
        %v1700 = vmul.f32 %v1692, %v1699
        %v1702 = vlaneseq
        %v1703 = vshrl.u32 %v1702, 7
        %v1704 = vsub.s32 0, %v1703
        %v1705 = vrot.slane %v1685, %v1704
        %v1707 = vmul.f32 %v1700, %v1705
        %v1709 = vlaneseq
        %v1710 = vshrl.u32 %v1709, 7
        %v1711 = vsub.s32 0, %v1710
        %v1712 = vrot.slane %v1686, %v1711
        %v1714 = vadd.f32 %v1707, %v1712
        %v1715 = vpack.c.bf16 %v1714, %v1714
        %v1716 = vld [vmem:[%s8] sm:$0xf]
        %v1717 = vld [vmem:[%s8 + $0x4] sm:$0xf]
        %v1718 = vld [vmem:[%s8 + $0x8] sm:$0xf]
        %v1719 = vld [vmem:[%s8 + $0xc] sm:$0xf]
        %v1720 = vld [vmem:[%s9] sm:$0x1]
        %v1722 = vlaneseq
        %v1723 = vshrl.u32 %v1722, 7
        %v1724 = vsub.s32 0, %v1723
        %v1725 = vrot.slane %v1720, %v1724
        %v1731 = vunpack.c.l.b16 %v1716
        %v1732 = vunpack.c.l.b16 %v1717
        %v1733 = vunpack.c.l.b16 %v1718
        %v1734 = vunpack.c.l.b16 %v1719
        %v1735 = vpack.c.b16 %v1732, %v1731
        %v1736 = vpack.c.b16 %v1734, %v1733
        %v1740 = vsel %vm539, %v1715, 0
        %1742 = vmatprep.subr.bf16.mxu0 0
        %1743 = vmatpush1.bf16.msra.mxu0 %v1735
        %1744 = vmatprep.subr.bf16.mxu0 0
        %1745 = vmatpush1.bf16.msra.mxu0 %v1736
        %1746 = vmatprep.subr.bf16.mxu0 0
        %1747 = vmatpush1.bf16.msra.mxu0 0
        %1748 = vmatprep.subr.bf16.mxu0 0
        %1749 = vmatpush1.bf16.msra.mxu0 0
        %1750 = vmatprep.subr.bf16.mxu0 0
        %1751 = vmatpush1.bf16.msra.mxu0 0
        %1752 = vmatprep.subr.bf16.mxu0 0
        %1753 = vmatpush1.bf16.msra.mxu0 0
        %1754 = vmatprep.subr.bf16.mxu0 0
        %1755 = vmatpush1.bf16.msra.mxu0 0
        %1756 = vmatprep.subr.bf16.mxu0 0
        %1757 = vmatpush1.bf16.msra.mxu0 0
        %1758 = vmatprep.subr.bf16.mxu0 0
        %1759 = vmatpush1.bf16.msra.mxu0 0
        %1760 = vmatprep.subr.bf16.mxu0 0
        %1761 = vmatpush1.bf16.msra.mxu0 0
        %1762 = vmatprep.subr.bf16.mxu0 0
        %1763 = vmatpush1.bf16.msra.mxu0 0
        %1764 = vmatprep.subr.bf16.mxu0 0
        %1765 = vmatpush1.bf16.msra.mxu0 0
        %1766 = vmatprep.subr.bf16.mxu0 0
        %1767 = vmatpush1.bf16.msra.mxu0 0
        %1768 = vmatprep.subr.bf16.mxu0 0
        %1769 = vmatpush1.bf16.msra.mxu0 0
        %1770 = vmatprep.subr.bf16.mxu0 0
        %1771 = vmatpush1.bf16.msra.mxu0 0
        %1772 = vmatprep.subr.bf16.mxu0 0
        %1773 = vmatpush1.bf16.msra.mxu0 0
        %1774 = vmatprep.mubr.bf16.mxu0 0
        %1775 = vmatmul.mubr.bf16.gmra.mrb[0].mxu0 %v1740
        %v1776 = vpop.f32.mrb[0].mxu0
        %v1777 = vadd.f32 %v1725, %v1776
        %v1778 = vpop.f32.mrb[0].mxu0
        %v1779 = vpop.f32.mrb[0].mxu0
        %v1780 = vpop.f32.mrb[0].mxu0
        %1781 = vdwg.mxu0
        %v1782 = vmul.f32 %v1777, 0.5
        %v1783 = vmul.f32 %v1777, 0.044715
        %v1784 = vmul.f32 %v1783, %v1777
        %v1785 = vmul.f32 %v1784, %v1777
        %v1786 = vadd.f32 %v1777, %v1785
        %v1787 = vmul.f32 %v1786, 0.7978846
        %v1788 = vtanh.pop %v1787
        %v1789 = vadd.f32 %v1788, 1.0
        %v1790 = vmul.f32 %v1782, %v1789
        %v1791 = vpack.c.bf16 %v1790, %v1790
        %v1792 = vld [vmem:[%s10] sm:$0xf]
        %v1793 = vld [vmem:[%s10 + $0x4] sm:$0xf]
        %v1794 = vld [vmem:[%s10 + $0x8] sm:$0xf]
        %v1795 = vld [vmem:[%s10 + $0xc] sm:$0xf]
        %v1796 = vld [vmem:[%s10 + $0x10] sm:$0xf]
        %v1797 = vld [vmem:[%s10 + $0x14] sm:$0xf]
        %v1798 = vld [vmem:[%s10 + $0x18] sm:$0xf]
        %v1799 = vld [vmem:[%s10 + $0x1c] sm:$0xf]
        %v1800 = vld [vmem:[%s11] sm:$0x1]
        %v1802 = vlaneseq
        %v1803 = vshrl.u32 %v1802, 7
        %v1804 = vsub.s32 0, %v1803
        %v1805 = vrot.slane %v1800, %v1804
        %v1815 = vunpack.c.l.b16 %v1792
        %v1816 = vunpack.c.l.b16 %v1793
        %v1817 = vunpack.c.l.b16 %v1794
        %v1818 = vunpack.c.l.b16 %v1795
        %v1819 = vunpack.c.l.b16 %v1796
        %v1820 = vunpack.c.l.b16 %v1797
        %v1821 = vunpack.c.l.b16 %v1798
        %v1822 = vunpack.c.l.b16 %v1799
        %v1823 = vpack.c.b16 %v1816, %v1815
        %v1824 = vpack.c.b16 %v1818, %v1817
        %v1825 = vpack.c.b16 %v1820, %v1819
        %v1826 = vpack.c.b16 %v1822, %v1821
        %vm1831 = vcmask 523264
        %v1833 = vsel %vm1831, %v1791, 0
        %1835 = vmatprep.subr.bf16.mxu0 0
        %1836 = vmatpush1.bf16.msra.mxu0 %v1823
        %1837 = vmatprep.subr.bf16.mxu0 0
        %1838 = vmatpush1.bf16.msra.mxu0 %v1824
        %1839 = vmatprep.subr.bf16.mxu0 0
        %1840 = vmatpush1.bf16.msra.mxu0 %v1825
        %1841 = vmatprep.subr.bf16.mxu0 0
        %1842 = vmatpush1.bf16.msra.mxu0 %v1826
        %1843 = vmatprep.subr.bf16.mxu0 0
        %1844 = vmatpush1.bf16.msra.mxu0 0
        %1845 = vmatprep.subr.bf16.mxu0 0
        %1846 = vmatpush1.bf16.msra.mxu0 0
        %1847 = vmatprep.subr.bf16.mxu0 0
        %1848 = vmatpush1.bf16.msra.mxu0 0
        %1849 = vmatprep.subr.bf16.mxu0 0
        %1850 = vmatpush1.bf16.msra.mxu0 0
        %1851 = vmatprep.subr.bf16.mxu0 0
        %1852 = vmatpush1.bf16.msra.mxu0 0
        %1853 = vmatprep.subr.bf16.mxu0 0
        %1854 = vmatpush1.bf16.msra.mxu0 0
        %1855 = vmatprep.subr.bf16.mxu0 0
        %1856 = vmatpush1.bf16.msra.mxu0 0
        %1857 = vmatprep.subr.bf16.mxu0 0
        %1858 = vmatpush1.bf16.msra.mxu0 0
        %1859 = vmatprep.subr.bf16.mxu0 0
        %1860 = vmatpush1.bf16.msra.mxu0 0
        %1861 = vmatprep.subr.bf16.mxu0 0
        %1862 = vmatpush1.bf16.msra.mxu0 0
        %1863 = vmatprep.subr.bf16.mxu0 0
        %1864 = vmatpush1.bf16.msra.mxu0 0
        %1865 = vmatprep.subr.bf16.mxu0 0
        %1866 = vmatpush1.bf16.msra.mxu0 0
        %1867 = vmatprep.mubr.bf16.mxu0 0
        %1868 = vmatmul.mubr.bf16.gmra.mrb[0].mxu0 %v1833
        %v1869 = vpop.f32.mrb[0].mxu0
        %v1870 = vadd.f32 %v1805, %v1869
        %v1871 = vpop.f32.mrb[0].mxu0
        %v1872 = vpop.f32.mrb[0].mxu0
        %v1873 = vpop.f32.mrb[0].mxu0
        %1874 = vdwg.mxu0
        %v1875 = vadd.f32 %v1714, %v1870
        %v1876 = vld [vmem:[%s12] sm:$0x1]
        %v1877 = vld [vmem:[%s13] sm:$0x1]
        %v1878 = vsel %vm539, %v1875, 0.0
        %1879 = vadd.xlane.f32.xlu0 %v1878
        %v1880 = vpop.xlane.xlu0 %1879
        %v1881 = vmul.f32 %v1880, %v1690
        %v1882 = vsub.f32 %v1875, %v1881
        %v1883 = vmul.f32 %v1882, %v1882
        %v1884 = vsel %vm539, %v1883, 0.0
        %1885 = vadd.xlane.f32.xlu0 %v1884
        %v1886 = vpop.xlane.xlu0 %1885
        %v1887 = vmul.f32 %v1886, %v1690
        %v1888 = vadd.f32 %v1887, 1e-12
        %v1889 = vrsqrt.pop %v1888
        %v1890 = vmul.f32 %v1882, %v1889
        %v1892 = vlaneseq
        %v1893 = vshrl.u32 %v1892, 7
        %v1894 = vsub.s32 0, %v1893
        %v1895 = vrot.slane %v1876, %v1894
        %v1897 = vmul.f32 %v1890, %v1895
        %v1899 = vlaneseq
        %v1900 = vshrl.u32 %v1899, 7
        %v1901 = vsub.s32 0, %v1900
        %v1902 = vrot.slane %v1877, %v1901
        %v1904 = vadd.f32 %v1897, %v1902
        %v1905 = vpack.c.bf16 %v1904, %v1904
        %vm1906 = vcmask 257024
        %1907 = vst.msk [vmem:[%s497] sm:$0xf] %vm1906, %v1905
        %vm1908 = vcmask 253952
        %vm1909 = vsmask.f32 256
        %vm1910 = vmand %vm1908, %vm1909
        %v1911 = vld [vmem:[%s512] sm:$0x1]
        %v1912 = vsel %vm1910, %v1905, %v1911
        %1913 = vst [vmem:[%s512] sm:$0x1] %v1912
        %s1914 = sand.u32 %s342, 1
        %s1915 = scalar_lea.sflag [#allocation3], %s1914
        %s1916 = sand.u32 %s342, 1
        %s1917 = smul.addr %s1916, 4
        %s1918 = scalar_lea.vmem [#allocation2], %s1917
        %p1919 = scmp.lt.s32.totalorder %s30, 1
        %s1920 = scalar_select %p1919, %s30, 1
        %s1921 = scalar_lea.vmem %s15, %s1920
        // Predicated region
        $region77: #{_lambda_.6} parent=75 // pred_check
          %p1922 = pneg %p352
        $region78: #{_lambda_.6} parent=75 // pred_check_branch
          %1924 = sbr.rel (%p1922) target = $region80
        $region79: #{_lambda_.6} parent=75 // pred_region
          %s1926 = ssub.s32 64, 64
          %1927 = vsyncadd %s1915, %s1926
          %s1928 = smul.addr %s30, 64
          %s1929 = scalar_lea.hbm %s14, %s1928
          %s1931 = sshll.u32 %s1918, 4
          %s1932 = int_to_ptr.vmem [resolvable:$true] %s1931
          %1934 = dma.vmem_to_hbm [thread:$0]  %s1932, 64, %s1929, %s1915
        $region80: #{_lambda_.6} parent=75 // pred_fallthru
          _
        // Predicated region
        $region81: #{_lambda_.6} parent=75 // pred_check
          %p1935 = pneg %p378
        $region82: #{_lambda_.6} parent=75 // pred_check_branch
          %1937 = sbr.rel (%p1935) target = $region84
        $region83: #{_lambda_.6} parent=75 // pred_region
          _
        $region84: #{_lambda_.6} parent=75 // pred_fallthru
          _
      $region76: #{_lambda_.6} parent=5 // pred_fallthru
        _
      %p1938 = scmp.le.s32.totalorder 2, %s25
      // Predicated region
      $region85: #{_lambda_.6} parent=5 // pred_check
        %p1939 = pneg %p1938
      $region86: #{_lambda_.6} parent=5 // pred_check_branch
        %1941 = sbr.rel (%p1939) target = $region88
      $region87: #{_lambda_.6} parent=5 // pred_region
        %s1942 = ssub.s32 %s25, 2
        // Predicated region
        $region89: #{_lambda_.6} parent=87 // pred_check
          %p1943 = pneg %p358
        $region90: #{_lambda_.6} parent=87 // pred_check_branch
          %1945 = sbr.rel (%p1943) target = $region92
        $region91: #{_lambda_.6} parent=87 // pred_region
          %s1946 = sand.u32 %s343, 1
          %s1947 = scalar_lea.sflag [#allocation3], %s1946
          %s1948 = sand.u32 %s343, 1
          %s1949 = smul.addr %s1948, 4
          %s1950 = scalar_lea.vmem [#allocation2], %s1949
          %1951 = dma.done %s1947, 64
        $region92: #{_lambda_.6} parent=87 // pred_fallthru
          _
        // Predicated region
        $region93: #{_lambda_.6} parent=87 // pred_check
          %p1952 = pneg %p384
        $region94: #{_lambda_.6} parent=87 // pred_check_branch
          %1954 = sbr.rel (%p1952) target = $region96
        $region95: #{_lambda_.6} parent=87 // pred_region
          %p1955 = scmp.lt.s32.totalorder %s31, 1
          %s1956 = scalar_select %p1955, %s31, 1
          %s1957 = scalar_lea.vmem %s15, %s1956
        $region96: #{_lambda_.6} parent=87 // pred_fallthru
          _
      $region88: #{_lambda_.6} parent=5 // pred_fallthru
        _
    $region6: #{_lambda_.6} parent=1 // loop_footer
      %s29 = sadd.s32 1, %s25
    $region7: #{_lambda_.6} parent=1 // loop_footer_branch
      %24 = sbr.rel target = $region3
    $region8: #{_lambda_.6} parent=1 // loop_exit
      _
    %1958 = vsyncpa [#allocation3], 1
    %s1959 = scalar_lea.sflag [#allocation3], 1
    %1960 = vsyncpa %s1959, 1

</llo_original>
